<compile_context>
chip_gen: v7x
topology: tpu7x:2x2x1
jax: 0.10.0
libtpu: 0.0.40
codegen_flags: <defaults>
</compile_context>

<pallas_src>
import numpy as np
import jax
import jax.numpy as jnp
from jax.experimental import pallas as pl
from jax.experimental.pallas import tpu as pltpu

EPS = 1e-5


# ----------------------------------------------------------------------------
# Host-side constants (compile-time): boundary masks + stride-2 gather matrix
# ----------------------------------------------------------------------------
def _tap_masks(N, H, W, stride2_domain):
    """Per-tap 0/1 masks over the flattened (n, h, w) lane axis.

    mask[t, j] == 1 iff the 3x3 tap t = kh*3+kw applied at position j reads a
    real pixel (not zero padding).  For the conv2 "wide domain" only the
    stride-2-sampled columns matter (h, w even), so only kh==0 / kw==0 taps
    ever step outside the image there.
    """
    j = np.arange(N * H * W)
    h = (j // W) % H
    w = j % W
    masks = np.zeros((9, N * H * W), np.float32)
    for kh in range(3):
        for kw in range(3):
            ok = np.ones_like(j, dtype=bool)
            if kh == 0:
                ok &= h > 0
            if kw == 0:
                ok &= w > 0
            if not stride2_domain:
                if kh == 2:
                    ok &= h < H - 1
                if kw == 2:
                    ok &= w < W - 1
            masks[kh * 3 + kw] = ok.astype(np.float32)
    return masks


def _downsample_matrix(N, H, W):
    """0/1 matrix D (N*H*W, N*H2*W2): column m2 selects the even-(h,w) sample."""
    H2, W2 = H // 2, W // 2
    D = np.zeros((N * H * W, N * H2 * W2), np.float32)
    for n in range(N):
        for h2 in range(H2):
            for w2 in range(W2):
                D[(n * H + 2 * h2) * W + 2 * w2, (n * H2 + h2) * W2 + w2] = 1.0
    return D


# ----------------------------------------------------------------------------
# Fused Pallas kernel: conv1 + ReLU + BN + conv2(stride 2) + ReLU + BN
# ----------------------------------------------------------------------------
def _make_fused_kernel(N, H, W, Cin, Cout):
    H2, W2 = H // 2, W // 2
    M1 = N * H * W          # conv1 output positions (lane axis, 512 here)
    M2 = N * H2 * W2        # conv2 output positions (lane axis, 128 here)

    def kernel(x_ref, w1_ref, w2_ref, p_ref, m1_ref, m2_ref, d_ref, o_ref):
        x = x_ref[...]                 # (Cin, M1)  lane-dense activations
        w1 = w1_ref[...]               # (9, Cout, Cin) per-tap weights
        w2 = w2_ref[...]               # (9, Cout, Cin)
        m1 = m1_ref[...]               # (9, M1) conv1 padding masks
        m2 = m2_ref[...]               # (9, M1) conv2 padding masks

        # packed per-channel params: cols = b1, g1, beta1, b2, g2, beta2
        b1 = p_ref[:, 0:1]
        g1 = p_ref[:, 1:2]
        bt1 = p_ref[:, 2:3]
        b2 = p_ref[:, 3:4]
        g2 = p_ref[:, 4:5]
        bt2 = p_ref[:, 5:6]

        def conv_3x3(inp, w_taps, tap_masks):
            # in-kernel im2col: each tap is a lane roll of the flattened
            # (C, N*H*W) map + a 0/1 boundary mask, contracted by a small
            # (Cout, Cin) matmul.  Everything stays lane-dense in VMEM.
            acc = jnp.zeros((Cout, M1), jnp.float32)
            for kh in range(3):
                for kw in range(3):
                    t = kh * 3 + kw
                    off = (kh - 1) * W + (kw - 1)
                    shifted = inp if off == 0 else pltpu.roll(inp, (-off) % M1, 1)
                    shifted = shifted * tap_masks[t:t + 1, :]
                    acc = acc + jnp.dot(w_taps[t], shifted,
                                        preferred_element_type=jnp.float32)
            return acc

        def relu_bn(y, b, g, bt, count):
            # bias -> ReLU -> BatchNorm (batch stats, one reduction pass,
            # gamma folded into the scale -> mul/add epilogue)
            y = jnp.maximum(y + b, 0.0)
            s1 = jnp.sum(y, axis=1, keepdims=True)
            s2 = jnp.sum(y * y, axis=1, keepdims=True)
            mean = s1 * (1.0 / count)
            var = s2 * (1.0 / count) - mean * mean
            scale = g * jax.lax.rsqrt(var + EPS)
            shift = bt - mean * scale
            return y * scale + shift

        # ---- stage 1: Conv2d(3x3, pad=1) -> ReLU -> BN  (lane-dense (C, M1))
        y1 = relu_bn(conv_3x3(x, w1, m1), b1, g1, bt1, float(M1))

        # ---- stage 2: Conv2d(3x3, stride=2, pad=1) -> ReLU -> BN
        # compute in the dense M1 domain, then gather the stride-2 samples
        # with one 0/1 matmul (MXU as gather), then the cheap epilogue on M2.
        y2_wide = conv_3x3(y1, w2, m2)
        y2 = jnp.dot(y2_wide, d_ref[...], preferred_element_type=jnp.float32)
        o_ref[...] = relu_bn(y2, b2, g2, bt2, float(M2))

    return kernel, M1, M2


# ----------------------------------------------------------------------------
# Full ConvolutionBlock forward (NCHW in, NCHW out)
# ----------------------------------------------------------------------------
@jax.jit
def convolution_block(x_nchw, params):
    w1, b1, g1, bt1, w2, b2, g2, bt2 = params     # conv weights in HWIO (3,3,Cin,Cout)
    N, Cin, H, W = x_nchw.shape
    Cout = w1.shape[-1]
    assert Cin == Cout, "PyTorch module only runs when in_channels == out_channels"
    assert H % 2 == 0 and W % 2 == 0

    kernel, M1, M2 = _make_fused_kernel(N, H, W, Cin, Cout)

    # --- tiny layout plumbing (fused by XLA under jit) ---
    # activations: NCHW -> channel-major, lane-dense (C, N*H*W)
    x2d = jnp.transpose(x_nchw, (1, 0, 2, 3)).reshape(Cin, M1).astype(jnp.float32)
    # weights: per-tap (Cout, Cin) matrices, tap index t = kh*3 + kw
    w1_taps = jnp.transpose(w1, (0, 1, 3, 2)).reshape(9, Cout, Cin).astype(jnp.float32)
    w2_taps = jnp.transpose(w2, (0, 1, 3, 2)).reshape(9, Cout, Cin).astype(jnp.float32)
    # all per-channel vectors packed into one block -> single small DMA
    pp = jnp.stack([b1, g1, bt1, b2, g2, bt2], axis=1).astype(jnp.float32)   # (C, 6)
    # compile-time constants: padding masks + stride-2 gather matrix
    m1 = jnp.asarray(_tap_masks(N, H, W, stride2_domain=False))
    m2 = jnp.asarray(_tap_masks(N, H, W, stride2_domain=True))
    dmat = jnp.asarray(_downsample_matrix(N, H, W))

    out = pl.pallas_call(
        kernel,
        out_shape=jax.ShapeDtypeStruct((Cout, M2), jnp.float32),
        in_specs=[
            pl.BlockSpec((Cin, M1), lambda: (0, 0)),
            pl.BlockSpec((9, Cout, Cin), lambda: (0, 0, 0)),
            pl.BlockSpec((9, Cout, Cin), lambda: (0, 0, 0)),
            pl.BlockSpec((Cout, 6), lambda: (0, 0)),
            pl.BlockSpec((9, M1), lambda: (0, 0)),
            pl.BlockSpec((9, M1), lambda: (0, 0)),
            pl.BlockSpec((M1, M2), lambda: (0, 0)),
        ],
        out_specs=pl.BlockSpec((Cout, M2), lambda: (0, 0)),
    )(x2d, w1_taps, w2_taps, pp, m1, m2, dmat)

    # (Cout, N*H2*W2) -> NCHW
    return jnp.transpose(out.reshape(Cout, N, H // 2, W // 2), (1, 0, 2, 3))


# ----------------------------------------------------------------------------
# Pure-JAX reference (correctness check)
# ----------------------------------------------------------------------------
def _reference(x_nchw, params):
    w1, b1, g1, bt1, w2, b2, g2, bt2 = params
    x = jnp.transpose(x_nchw, (0, 2, 3, 1))

    def conv(x, w, b, stride):
        y = jax.lax.conv_general_dilated(
            x, w, (stride, stride), ((1, 1), (1, 1)),
            dimension_numbers=("NHWC", "HWIO", "NHWC"))
        return y + b

    def bn(y, g, bt):
        m = jnp.mean(y, axis=(0, 1, 2), keepdims=True)
        v = jnp.mean((y - m) ** 2, axis=(0, 1, 2), keepdims=True)
        return (y - m) * jax.lax.rsqrt(v + EPS) * g + bt

    y = bn(jnp.maximum(conv(x, w1, b1, 1), 0.0), g1, bt1)
    y = bn(jnp.maximum(conv(y, w2, b2, 2), 0.0), g2, bt2)
    return jnp.transpose(y, (0, 3, 1, 2))


if __name__ == "__main__":
    # in_channels == out_channels == 4 (required for the PyTorch module to run)
    N, C, H, W = 2, 4, 16, 16
    key = jax.random.PRNGKey(0)
    ks = jax.random.split(key, 9)

    w1 = jax.random.normal(ks[0], (3, 3, C, C), jnp.float32) * 0.2   # conv1 weight (kh,kw,Cin,Cout)
    b1 = jax.random.normal(ks[1], (C,), jnp.float32) * 0.1           # conv1 bias
    g1 = 1.0 + 0.1 * jax.random.normal(ks[2], (C,), jnp.float32)     # bn1 gamma
    bt1 = 0.1 * jax.random.normal(ks[3], (C,), jnp.float32)          # bn1 beta
    w2 = jax.random.normal(ks[4], (3, 3, C, C), jnp.float32) * 0.2   # conv2 weight
    b2 = jax.random.normal(ks[5], (C,), jnp.float32) * 0.1
    g2 = 1.0 + 0.1 * jax.random.normal(ks[6], (C,), jnp.float32)
    bt2 = 0.1 * jax.random.normal(ks[7], (C,), jnp.float32)
    params = (w1, b1, g1, bt1, w2, b2, g2, bt2)

    x = jax.random.normal(ks[8], (N, C, H, W), jnp.float32)

    out = jax.block_until_ready(convolution_block(x, params))
    assert out.shape == (N, C, H // 2, W // 2), out.shape

    ref = jax.block_until_ready(_reference(x, params))
    err = float(jnp.max(jnp.abs(out - ref)))
    assert jnp.allclose(out, ref, atol=1e-3, rtol=1e-3), err

    print("KERNEL_OK")
</pallas_src>

<mosaic_0001>
module attributes {stable_mosaic.version = 11 : i64} {
  func.func @kernel(%arg0: memref<4x512xf32, #tpu.memory_space<vmem>>, %arg1: memref<9x4x4xf32, #tpu.memory_space<vmem>>, %arg2: memref<9x4x4xf32, #tpu.memory_space<vmem>>, %arg3: memref<4x6xf32, #tpu.memory_space<vmem>>, %arg4: memref<9x512xf32, #tpu.memory_space<vmem>>, %arg5: memref<9x512xf32, #tpu.memory_space<vmem>>, %arg6: memref<512x128xf32, #tpu.memory_space<vmem>>, %arg7: memref<4x128xf32, #tpu.memory_space<vmem>>) attributes {dimension_semantics = [], scalar_prefetch = 0 : i64, scratch_operands = 0 : i64, tpu.core_type = #tpu.core_type<tc>} {
    %c0 = arith.constant 0 : index
    %c0_0 = arith.constant 0 : index
    %0 = vector.load %arg0[%c0, %c0_0] : memref<4x512xf32, #tpu.memory_space<vmem>>, vector<4x512xf32>
    %c0_1 = arith.constant 0 : index
    %c0_2 = arith.constant 0 : index
    %c0_3 = arith.constant 0 : index
    %1 = vector.load %arg1[%c0_1, %c0_2, %c0_3] : memref<9x4x4xf32, #tpu.memory_space<vmem>>, vector<9x4x4xf32>
    %c0_4 = arith.constant 0 : index
    %c0_5 = arith.constant 0 : index
    %c0_6 = arith.constant 0 : index
    %2 = vector.load %arg2[%c0_4, %c0_5, %c0_6] : memref<9x4x4xf32, #tpu.memory_space<vmem>>, vector<9x4x4xf32>
    %c0_7 = arith.constant 0 : index
    %c0_8 = arith.constant 0 : index
    %3 = vector.load %arg4[%c0_7, %c0_8] : memref<9x512xf32, #tpu.memory_space<vmem>>, vector<9x512xf32>
    %c0_9 = arith.constant 0 : index
    %c0_10 = arith.constant 0 : index
    %4 = vector.load %arg5[%c0_9, %c0_10] : memref<9x512xf32, #tpu.memory_space<vmem>>, vector<9x512xf32>
    %c0_11 = arith.constant 0 : index
    %c0_12 = arith.constant 0 : index
    %5 = vector.load %arg3[%c0_11, %c0_12] : memref<4x6xf32, #tpu.memory_space<vmem>>, vector<4x1xf32>
    %c0_13 = arith.constant 0 : index
    %c1 = arith.constant 1 : index
    %6 = vector.load %arg3[%c0_13, %c1] : memref<4x6xf32, #tpu.memory_space<vmem>>, vector<4x1xf32>
    %c0_14 = arith.constant 0 : index
    %c2 = arith.constant 2 : index
    %7 = vector.load %arg3[%c0_14, %c2] : memref<4x6xf32, #tpu.memory_space<vmem>>, vector<4x1xf32>
    %c0_15 = arith.constant 0 : index
    %c3 = arith.constant 3 : index
    %8 = vector.load %arg3[%c0_15, %c3] : memref<4x6xf32, #tpu.memory_space<vmem>>, vector<4x1xf32>
    %c0_16 = arith.constant 0 : index
    %c4 = arith.constant 4 : index
    %9 = vector.load %arg3[%c0_16, %c4] : memref<4x6xf32, #tpu.memory_space<vmem>>, vector<4x1xf32>
    %c0_17 = arith.constant 0 : index
    %c5 = arith.constant 5 : index
    %10 = vector.load %arg3[%c0_17, %c5] : memref<4x6xf32, #tpu.memory_space<vmem>>, vector<4x1xf32>
    %cst = arith.constant 0.000000e+00 : f32
    %11 = vector.broadcast %cst : f32 to vector<4x512xf32>
    %c17_i32 = arith.constant 17 : i32
    %12 = tpu.dynamic_rotate %0 by %c17_i32 dim 1 : vector<4x512xf32>, i32 -> vector<4x512xf32>
    %13 = vector.extract_strided_slice %3 {offsets = [0, 0], sizes = [1, 512], strides = [1, 1]} : vector<9x512xf32> to vector<1x512xf32>
    %14 = vector.broadcast %13 : vector<1x512xf32> to vector<4x512xf32>
    %15 = arith.mulf %12, %14 : vector<4x512xf32>
    %16 = vector.extract_strided_slice %1 {offsets = [0, 0, 0], sizes = [1, 4, 4], strides = [1, 1, 1]} : vector<9x4x4xf32> to vector<1x4x4xf32>
    %17 = vector.shape_cast %16 : vector<1x4x4xf32> to vector<4x4xf32>
    %cst_18 = arith.constant dense<0.000000e+00> : vector<4x512xf32>
    %18 = tpu.matmul %17, %15, %cst_18 {dimension_numbers = #tpu.dot_dimension_numbers<[1], [0], [0], [1], [0, 0, 1, 1], [], []>} : vector<4x4xf32>, vector<4x512xf32>, vector<4x512xf32> -> vector<4x512xf32>
    %19 = arith.addf %11, %18 : vector<4x512xf32>
    %c16_i32 = arith.constant 16 : i32
    %20 = tpu.dynamic_rotate %0 by %c16_i32 dim 1 : vector<4x512xf32>, i32 -> vector<4x512xf32>
    %21 = vector.extract_strided_slice %3 {offsets = [1, 0], sizes = [1, 512], strides = [1, 1]} : vector<9x512xf32> to vector<1x512xf32>
    %22 = vector.broadcast %21 : vector<1x512xf32> to vector<4x512xf32>
    %23 = arith.mulf %20, %22 : vector<4x512xf32>
    %24 = vector.extract_strided_slice %1 {offsets = [1, 0, 0], sizes = [1, 4, 4], strides = [1, 1, 1]} : vector<9x4x4xf32> to vector<1x4x4xf32>
    %25 = vector.shape_cast %24 : vector<1x4x4xf32> to vector<4x4xf32>
    %cst_19 = arith.constant dense<0.000000e+00> : vector<4x512xf32>
    %26 = tpu.matmul %25, %23, %cst_19 {dimension_numbers = #tpu.dot_dimension_numbers<[1], [0], [0], [1], [0, 0, 1, 1], [], []>} : vector<4x4xf32>, vector<4x512xf32>, vector<4x512xf32> -> vector<4x512xf32>
    %27 = arith.addf %19, %26 : vector<4x512xf32>
    %c15_i32 = arith.constant 15 : i32
    %28 = tpu.dynamic_rotate %0 by %c15_i32 dim 1 : vector<4x512xf32>, i32 -> vector<4x512xf32>
    %29 = vector.extract_strided_slice %3 {offsets = [2, 0], sizes = [1, 512], strides = [1, 1]} : vector<9x512xf32> to vector<1x512xf32>
    %30 = vector.broadcast %29 : vector<1x512xf32> to vector<4x512xf32>
    %31 = arith.mulf %28, %30 : vector<4x512xf32>
    %32 = vector.extract_strided_slice %1 {offsets = [2, 0, 0], sizes = [1, 4, 4], strides = [1, 1, 1]} : vector<9x4x4xf32> to vector<1x4x4xf32>
    %33 = vector.shape_cast %32 : vector<1x4x4xf32> to vector<4x4xf32>
    %cst_20 = arith.constant dense<0.000000e+00> : vector<4x512xf32>
    %34 = tpu.matmul %33, %31, %cst_20 {dimension_numbers = #tpu.dot_dimension_numbers<[1], [0], [0], [1], [0, 0, 1, 1], [], []>} : vector<4x4xf32>, vector<4x512xf32>, vector<4x512xf32> -> vector<4x512xf32>
    %35 = arith.addf %27, %34 : vector<4x512xf32>
    %c1_i32 = arith.constant 1 : i32
    %36 = tpu.dynamic_rotate %0 by %c1_i32 dim 1 : vector<4x512xf32>, i32 -> vector<4x512xf32>
    %37 = vector.extract_strided_slice %3 {offsets = [3, 0], sizes = [1, 512], strides = [1, 1]} : vector<9x512xf32> to vector<1x512xf32>
    %38 = vector.broadcast %37 : vector<1x512xf32> to vector<4x512xf32>
    %39 = arith.mulf %36, %38 : vector<4x512xf32>
    %40 = vector.extract_strided_slice %1 {offsets = [3, 0, 0], sizes = [1, 4, 4], strides = [1, 1, 1]} : vector<9x4x4xf32> to vector<1x4x4xf32>
    %41 = vector.shape_cast %40 : vector<1x4x4xf32> to vector<4x4xf32>
    %cst_21 = arith.constant dense<0.000000e+00> : vector<4x512xf32>
    %42 = tpu.matmul %41, %39, %cst_21 {dimension_numbers = #tpu.dot_dimension_numbers<[1], [0], [0], [1], [0, 0, 1, 1], [], []>} : vector<4x4xf32>, vector<4x512xf32>, vector<4x512xf32> -> vector<4x512xf32>
    %43 = arith.addf %35, %42 : vector<4x512xf32>
    %44 = vector.extract_strided_slice %3 {offsets = [4, 0], sizes = [1, 512], strides = [1, 1]} : vector<9x512xf32> to vector<1x512xf32>
    %45 = vector.broadcast %44 : vector<1x512xf32> to vector<4x512xf32>
    %46 = arith.mulf %0, %45 : vector<4x512xf32>
    %47 = vector.extract_strided_slice %1 {offsets = [4, 0, 0], sizes = [1, 4, 4], strides = [1, 1, 1]} : vector<9x4x4xf32> to vector<1x4x4xf32>
    %48 = vector.shape_cast %47 : vector<1x4x4xf32> to vector<4x4xf32>
    %cst_22 = arith.constant dense<0.000000e+00> : vector<4x512xf32>
    %49 = tpu.matmul %48, %46, %cst_22 {dimension_numbers = #tpu.dot_dimension_numbers<[1], [0], [0], [1], [0, 0, 1, 1], [], []>} : vector<4x4xf32>, vector<4x512xf32>, vector<4x512xf32> -> vector<4x512xf32>
    %50 = arith.addf %43, %49 : vector<4x512xf32>
    %c511_i32 = arith.constant 511 : i32
    %51 = tpu.dynamic_rotate %0 by %c511_i32 dim 1 : vector<4x512xf32>, i32 -> vector<4x512xf32>
    %52 = vector.extract_strided_slice %3 {offsets = [5, 0], sizes = [1, 512], strides = [1, 1]} : vector<9x512xf32> to vector<1x512xf32>
    %53 = vector.broadcast %52 : vector<1x512xf32> to vector<4x512xf32>
    %54 = arith.mulf %51, %53 : vector<4x512xf32>
    %55 = vector.extract_strided_slice %1 {offsets = [5, 0, 0], sizes = [1, 4, 4], strides = [1, 1, 1]} : vector<9x4x4xf32> to vector<1x4x4xf32>
    %56 = vector.shape_cast %55 : vector<1x4x4xf32> to vector<4x4xf32>
    %cst_23 = arith.constant dense<0.000000e+00> : vector<4x512xf32>
    %57 = tpu.matmul %56, %54, %cst_23 {dimension_numbers = #tpu.dot_dimension_numbers<[1], [0], [0], [1], [0, 0, 1, 1], [], []>} : vector<4x4xf32>, vector<4x512xf32>, vector<4x512xf32> -> vector<4x512xf32>
    %58 = arith.addf %50, %57 : vector<4x512xf32>
    %c497_i32 = arith.constant 497 : i32
    %59 = tpu.dynamic_rotate %0 by %c497_i32 dim 1 : vector<4x512xf32>, i32 -> vector<4x512xf32>
    %60 = vector.extract_strided_slice %3 {offsets = [6, 0], sizes = [1, 512], strides = [1, 1]} : vector<9x512xf32> to vector<1x512xf32>
    %61 = vector.broadcast %60 : vector<1x512xf32> to vector<4x512xf32>
    %62 = arith.mulf %59, %61 : vector<4x512xf32>
    %63 = vector.extract_strided_slice %1 {offsets = [6, 0, 0], sizes = [1, 4, 4], strides = [1, 1, 1]} : vector<9x4x4xf32> to vector<1x4x4xf32>
    %64 = vector.shape_cast %63 : vector<1x4x4xf32> to vector<4x4xf32>
    %cst_24 = arith.constant dense<0.000000e+00> : vector<4x512xf32>
    %65 = tpu.matmul %64, %62, %cst_24 {dimension_numbers = #tpu.dot_dimension_numbers<[1], [0], [0], [1], [0, 0, 1, 1], [], []>} : vector<4x4xf32>, vector<4x512xf32>, vector<4x512xf32> -> vector<4x512xf32>
    %66 = arith.addf %58, %65 : vector<4x512xf32>
    %c496_i32 = arith.constant 496 : i32
    %67 = tpu.dynamic_rotate %0 by %c496_i32 dim 1 : vector<4x512xf32>, i32 -> vector<4x512xf32>
    %68 = vector.extract_strided_slice %3 {offsets = [7, 0], sizes = [1, 512], strides = [1, 1]} : vector<9x512xf32> to vector<1x512xf32>
    %69 = vector.broadcast %68 : vector<1x512xf32> to vector<4x512xf32>
    %70 = arith.mulf %67, %69 : vector<4x512xf32>
    %71 = vector.extract_strided_slice %1 {offsets = [7, 0, 0], sizes = [1, 4, 4], strides = [1, 1, 1]} : vector<9x4x4xf32> to vector<1x4x4xf32>
    %72 = vector.shape_cast %71 : vector<1x4x4xf32> to vector<4x4xf32>
    %cst_25 = arith.constant dense<0.000000e+00> : vector<4x512xf32>
    %73 = tpu.matmul %72, %70, %cst_25 {dimension_numbers = #tpu.dot_dimension_numbers<[1], [0], [0], [1], [0, 0, 1, 1], [], []>} : vector<4x4xf32>, vector<4x512xf32>, vector<4x512xf32> -> vector<4x512xf32>
    %74 = arith.addf %66, %73 : vector<4x512xf32>
    %c495_i32 = arith.constant 495 : i32
    %75 = tpu.dynamic_rotate %0 by %c495_i32 dim 1 : vector<4x512xf32>, i32 -> vector<4x512xf32>
    %76 = vector.extract_strided_slice %3 {offsets = [8, 0], sizes = [1, 512], strides = [1, 1]} : vector<9x512xf32> to vector<1x512xf32>
    %77 = vector.broadcast %76 : vector<1x512xf32> to vector<4x512xf32>
    %78 = arith.mulf %75, %77 : vector<4x512xf32>
    %79 = vector.extract_strided_slice %1 {offsets = [8, 0, 0], sizes = [1, 4, 4], strides = [1, 1, 1]} : vector<9x4x4xf32> to vector<1x4x4xf32>
    %80 = vector.shape_cast %79 : vector<1x4x4xf32> to vector<4x4xf32>
    %cst_26 = arith.constant dense<0.000000e+00> : vector<4x512xf32>
    %81 = tpu.matmul %80, %78, %cst_26 {dimension_numbers = #tpu.dot_dimension_numbers<[1], [0], [0], [1], [0, 0, 1, 1], [], []>} : vector<4x4xf32>, vector<4x512xf32>, vector<4x512xf32> -> vector<4x512xf32>
    %82 = arith.addf %74, %81 : vector<4x512xf32>
    %83 = vector.broadcast %5 : vector<4x1xf32> to vector<4x512xf32>
    %84 = arith.addf %82, %83 : vector<4x512xf32>
    %cst_27 = arith.constant 0.000000e+00 : f32
    %85 = vector.broadcast %cst_27 : f32 to vector<4x512xf32>
    %86 = arith.maximumf %84, %85 : vector<4x512xf32>
    %cst_28 = arith.constant dense<0.000000e+00> : vector<4xf32>
    %87 = vector.multi_reduction <add>, %86, %cst_28 [1] : vector<4x512xf32> to vector<4xf32>
    %88 = vector.shape_cast %87 : vector<4xf32> to vector<4x1xf32>
    %89 = arith.mulf %86, %86 : vector<4x512xf32>
    %cst_29 = arith.constant dense<0.000000e+00> : vector<4xf32>
    %90 = vector.multi_reduction <add>, %89, %cst_29 [1] : vector<4x512xf32> to vector<4xf32>
    %91 = vector.shape_cast %90 : vector<4xf32> to vector<4x1xf32>
    %cst_30 = arith.constant 0.001953125 : f32
    %92 = vector.broadcast %cst_30 : f32 to vector<4x1xf32>
    %93 = arith.mulf %88, %92 : vector<4x1xf32>
    %cst_31 = arith.constant 0.001953125 : f32
    %94 = vector.broadcast %cst_31 : f32 to vector<4x1xf32>
    %95 = arith.mulf %91, %94 : vector<4x1xf32>
    %96 = arith.mulf %93, %93 : vector<4x1xf32>
    %97 = arith.subf %95, %96 : vector<4x1xf32>
    %cst_32 = arith.constant 9.99999974E-6 : f32
    %98 = vector.broadcast %cst_32 : f32 to vector<4x1xf32>
    %99 = arith.addf %97, %98 : vector<4x1xf32>
    %100 = math.rsqrt %99 : vector<4x1xf32>
    %101 = arith.mulf %6, %100 : vector<4x1xf32>
    %102 = arith.mulf %93, %101 : vector<4x1xf32>
    %103 = arith.subf %7, %102 : vector<4x1xf32>
    %104 = vector.broadcast %101 : vector<4x1xf32> to vector<4x512xf32>
    %105 = arith.mulf %86, %104 : vector<4x512xf32>
    %106 = vector.broadcast %103 : vector<4x1xf32> to vector<4x512xf32>
    %107 = arith.addf %105, %106 : vector<4x512xf32>
    %cst_33 = arith.constant 0.000000e+00 : f32
    %108 = vector.broadcast %cst_33 : f32 to vector<4x512xf32>
    %c17_i32_34 = arith.constant 17 : i32
    %109 = tpu.dynamic_rotate %107 by %c17_i32_34 dim 1 : vector<4x512xf32>, i32 -> vector<4x512xf32>
    %110 = vector.extract_strided_slice %4 {offsets = [0, 0], sizes = [1, 512], strides = [1, 1]} : vector<9x512xf32> to vector<1x512xf32>
    %111 = vector.broadcast %110 : vector<1x512xf32> to vector<4x512xf32>
    %112 = arith.mulf %109, %111 : vector<4x512xf32>
    %113 = vector.extract_strided_slice %2 {offsets = [0, 0, 0], sizes = [1, 4, 4], strides = [1, 1, 1]} : vector<9x4x4xf32> to vector<1x4x4xf32>
    %114 = vector.shape_cast %113 : vector<1x4x4xf32> to vector<4x4xf32>
    %cst_35 = arith.constant dense<0.000000e+00> : vector<4x512xf32>
    %115 = tpu.matmul %114, %112, %cst_35 {dimension_numbers = #tpu.dot_dimension_numbers<[1], [0], [0], [1], [0, 0, 1, 1], [], []>} : vector<4x4xf32>, vector<4x512xf32>, vector<4x512xf32> -> vector<4x512xf32>
    %116 = arith.addf %108, %115 : vector<4x512xf32>
    %c16_i32_36 = arith.constant 16 : i32
    %117 = tpu.dynamic_rotate %107 by %c16_i32_36 dim 1 : vector<4x512xf32>, i32 -> vector<4x512xf32>
    %118 = vector.extract_strided_slice %4 {offsets = [1, 0], sizes = [1, 512], strides = [1, 1]} : vector<9x512xf32> to vector<1x512xf32>
    %119 = vector.broadcast %118 : vector<1x512xf32> to vector<4x512xf32>
    %120 = arith.mulf %117, %119 : vector<4x512xf32>
    %121 = vector.extract_strided_slice %2 {offsets = [1, 0, 0], sizes = [1, 4, 4], strides = [1, 1, 1]} : vector<9x4x4xf32> to vector<1x4x4xf32>
    %122 = vector.shape_cast %121 : vector<1x4x4xf32> to vector<4x4xf32>
    %cst_37 = arith.constant dense<0.000000e+00> : vector<4x512xf32>
    %123 = tpu.matmul %122, %120, %cst_37 {dimension_numbers = #tpu.dot_dimension_numbers<[1], [0], [0], [1], [0, 0, 1, 1], [], []>} : vector<4x4xf32>, vector<4x512xf32>, vector<4x512xf32> -> vector<4x512xf32>
    %124 = arith.addf %116, %123 : vector<4x512xf32>
    %c15_i32_38 = arith.constant 15 : i32
    %125 = tpu.dynamic_rotate %107 by %c15_i32_38 dim 1 : vector<4x512xf32>, i32 -> vector<4x512xf32>
    %126 = vector.extract_strided_slice %4 {offsets = [2, 0], sizes = [1, 512], strides = [1, 1]} : vector<9x512xf32> to vector<1x512xf32>
    %127 = vector.broadcast %126 : vector<1x512xf32> to vector<4x512xf32>
    %128 = arith.mulf %125, %127 : vector<4x512xf32>
    %129 = vector.extract_strided_slice %2 {offsets = [2, 0, 0], sizes = [1, 4, 4], strides = [1, 1, 1]} : vector<9x4x4xf32> to vector<1x4x4xf32>
    %130 = vector.shape_cast %129 : vector<1x4x4xf32> to vector<4x4xf32>
    %cst_39 = arith.constant dense<0.000000e+00> : vector<4x512xf32>
    %131 = tpu.matmul %130, %128, %cst_39 {dimension_numbers = #tpu.dot_dimension_numbers<[1], [0], [0], [1], [0, 0, 1, 1], [], []>} : vector<4x4xf32>, vector<4x512xf32>, vector<4x512xf32> -> vector<4x512xf32>
    %132 = arith.addf %124, %131 : vector<4x512xf32>
    %c1_i32_40 = arith.constant 1 : i32
    %133 = tpu.dynamic_rotate %107 by %c1_i32_40 dim 1 : vector<4x512xf32>, i32 -> vector<4x512xf32>
    %134 = vector.extract_strided_slice %4 {offsets = [3, 0], sizes = [1, 512], strides = [1, 1]} : vector<9x512xf32> to vector<1x512xf32>
    %135 = vector.broadcast %134 : vector<1x512xf32> to vector<4x512xf32>
    %136 = arith.mulf %133, %135 : vector<4x512xf32>
    %137 = vector.extract_strided_slice %2 {offsets = [3, 0, 0], sizes = [1, 4, 4], strides = [1, 1, 1]} : vector<9x4x4xf32> to vector<1x4x4xf32>
    %138 = vector.shape_cast %137 : vector<1x4x4xf32> to vector<4x4xf32>
    %cst_41 = arith.constant dense<0.000000e+00> : vector<4x512xf32>
    %139 = tpu.matmul %138, %136, %cst_41 {dimension_numbers = #tpu.dot_dimension_numbers<[1], [0], [0], [1], [0, 0, 1, 1], [], []>} : vector<4x4xf32>, vector<4x512xf32>, vector<4x512xf32> -> vector<4x512xf32>
    %140 = arith.addf %132, %139 : vector<4x512xf32>
    %141 = vector.extract_strided_slice %4 {offsets = [4, 0], sizes = [1, 512], strides = [1, 1]} : vector<9x512xf32> to vector<1x512xf32>
    %142 = vector.broadcast %141 : vector<1x512xf32> to vector<4x512xf32>
    %143 = arith.mulf %107, %142 : vector<4x512xf32>
    %144 = vector.extract_strided_slice %2 {offsets = [4, 0, 0], sizes = [1, 4, 4], strides = [1, 1, 1]} : vector<9x4x4xf32> to vector<1x4x4xf32>
    %145 = vector.shape_cast %144 : vector<1x4x4xf32> to vector<4x4xf32>
    %cst_42 = arith.constant dense<0.000000e+00> : vector<4x512xf32>
    %146 = tpu.matmul %145, %143, %cst_42 {dimension_numbers = #tpu.dot_dimension_numbers<[1], [0], [0], [1], [0, 0, 1, 1], [], []>} : vector<4x4xf32>, vector<4x512xf32>, vector<4x512xf32> -> vector<4x512xf32>
    %147 = arith.addf %140, %146 : vector<4x512xf32>
    %c511_i32_43 = arith.constant 511 : i32
    %148 = tpu.dynamic_rotate %107 by %c511_i32_43 dim 1 : vector<4x512xf32>, i32 -> vector<4x512xf32>
    %149 = vector.extract_strided_slice %4 {offsets = [5, 0], sizes = [1, 512], strides = [1, 1]} : vector<9x512xf32> to vector<1x512xf32>
    %150 = vector.broadcast %149 : vector<1x512xf32> to vector<4x512xf32>
    %151 = arith.mulf %148, %150 : vector<4x512xf32>
    %152 = vector.extract_strided_slice %2 {offsets = [5, 0, 0], sizes = [1, 4, 4], strides = [1, 1, 1]} : vector<9x4x4xf32> to vector<1x4x4xf32>
    %153 = vector.shape_cast %152 : vector<1x4x4xf32> to vector<4x4xf32>
    %cst_44 = arith.constant dense<0.000000e+00> : vector<4x512xf32>
    %154 = tpu.matmul %153, %151, %cst_44 {dimension_numbers = #tpu.dot_dimension_numbers<[1], [0], [0], [1], [0, 0, 1, 1], [], []>} : vector<4x4xf32>, vector<4x512xf32>, vector<4x512xf32> -> vector<4x512xf32>
    %155 = arith.addf %147, %154 : vector<4x512xf32>
    %c497_i32_45 = arith.constant 497 : i32
    %156 = tpu.dynamic_rotate %107 by %c497_i32_45 dim 1 : vector<4x512xf32>, i32 -> vector<4x512xf32>
    %157 = vector.extract_strided_slice %4 {offsets = [6, 0], sizes = [1, 512], strides = [1, 1]} : vector<9x512xf32> to vector<1x512xf32>
    %158 = vector.broadcast %157 : vector<1x512xf32> to vector<4x512xf32>
    %159 = arith.mulf %156, %158 : vector<4x512xf32>
    %160 = vector.extract_strided_slice %2 {offsets = [6, 0, 0], sizes = [1, 4, 4], strides = [1, 1, 1]} : vector<9x4x4xf32> to vector<1x4x4xf32>
    %161 = vector.shape_cast %160 : vector<1x4x4xf32> to vector<4x4xf32>
    %cst_46 = arith.constant dense<0.000000e+00> : vector<4x512xf32>
    %162 = tpu.matmul %161, %159, %cst_46 {dimension_numbers = #tpu.dot_dimension_numbers<[1], [0], [0], [1], [0, 0, 1, 1], [], []>} : vector<4x4xf32>, vector<4x512xf32>, vector<4x512xf32> -> vector<4x512xf32>
    %163 = arith.addf %155, %162 : vector<4x512xf32>
    %c496_i32_47 = arith.constant 496 : i32
    %164 = tpu.dynamic_rotate %107 by %c496_i32_47 dim 1 : vector<4x512xf32>, i32 -> vector<4x512xf32>
    %165 = vector.extract_strided_slice %4 {offsets = [7, 0], sizes = [1, 512], strides = [1, 1]} : vector<9x512xf32> to vector<1x512xf32>
    %166 = vector.broadcast %165 : vector<1x512xf32> to vector<4x512xf32>
    %167 = arith.mulf %164, %166 : vector<4x512xf32>
    %168 = vector.extract_strided_slice %2 {offsets = [7, 0, 0], sizes = [1, 4, 4], strides = [1, 1, 1]} : vector<9x4x4xf32> to vector<1x4x4xf32>
    %169 = vector.shape_cast %168 : vector<1x4x4xf32> to vector<4x4xf32>
    %cst_48 = arith.constant dense<0.000000e+00> : vector<4x512xf32>
    %170 = tpu.matmul %169, %167, %cst_48 {dimension_numbers = #tpu.dot_dimension_numbers<[1], [0], [0], [1], [0, 0, 1, 1], [], []>} : vector<4x4xf32>, vector<4x512xf32>, vector<4x512xf32> -> vector<4x512xf32>
    %171 = arith.addf %163, %170 : vector<4x512xf32>
    %c495_i32_49 = arith.constant 495 : i32
    %172 = tpu.dynamic_rotate %107 by %c495_i32_49 dim 1 : vector<4x512xf32>, i32 -> vector<4x512xf32>
    %173 = vector.extract_strided_slice %4 {offsets = [8, 0], sizes = [1, 512], strides = [1, 1]} : vector<9x512xf32> to vector<1x512xf32>
    %174 = vector.broadcast %173 : vector<1x512xf32> to vector<4x512xf32>
    %175 = arith.mulf %172, %174 : vector<4x512xf32>
    %176 = vector.extract_strided_slice %2 {offsets = [8, 0, 0], sizes = [1, 4, 4], strides = [1, 1, 1]} : vector<9x4x4xf32> to vector<1x4x4xf32>
    %177 = vector.shape_cast %176 : vector<1x4x4xf32> to vector<4x4xf32>
    %cst_50 = arith.constant dense<0.000000e+00> : vector<4x512xf32>
    %178 = tpu.matmul %177, %175, %cst_50 {dimension_numbers = #tpu.dot_dimension_numbers<[1], [0], [0], [1], [0, 0, 1, 1], [], []>} : vector<4x4xf32>, vector<4x512xf32>, vector<4x512xf32> -> vector<4x512xf32>
    %179 = arith.addf %171, %178 : vector<4x512xf32>
    %c0_51 = arith.constant 0 : index
    %c0_52 = arith.constant 0 : index
    %180 = vector.load %arg6[%c0_51, %c0_52] : memref<512x128xf32, #tpu.memory_space<vmem>>, vector<512x128xf32>
    %cst_53 = arith.constant dense<0.000000e+00> : vector<4x128xf32>
    %181 = tpu.matmul %179, %180, %cst_53 {dimension_numbers = #tpu.dot_dimension_numbers<[1], [0], [0], [1], [0, 0, 1, 1], [], []>} : vector<4x512xf32>, vector<512x128xf32>, vector<4x128xf32> -> vector<4x128xf32>
    %182 = vector.broadcast %8 : vector<4x1xf32> to vector<4x128xf32>
    %183 = arith.addf %181, %182 : vector<4x128xf32>
    %cst_54 = arith.constant 0.000000e+00 : f32
    %184 = vector.broadcast %cst_54 : f32 to vector<4x128xf32>
    %185 = arith.maximumf %183, %184 : vector<4x128xf32>
    %cst_55 = arith.constant dense<0.000000e+00> : vector<4xf32>
    %186 = vector.multi_reduction <add>, %185, %cst_55 [1] : vector<4x128xf32> to vector<4xf32>
    %187 = vector.shape_cast %186 : vector<4xf32> to vector<4x1xf32>
    %188 = arith.mulf %185, %185 : vector<4x128xf32>
    %cst_56 = arith.constant dense<0.000000e+00> : vector<4xf32>
    %189 = vector.multi_reduction <add>, %188, %cst_56 [1] : vector<4x128xf32> to vector<4xf32>
    %190 = vector.shape_cast %189 : vector<4xf32> to vector<4x1xf32>
    %cst_57 = arith.constant 7.812500e-03 : f32
    %191 = vector.broadcast %cst_57 : f32 to vector<4x1xf32>
    %192 = arith.mulf %187, %191 : vector<4x1xf32>
    %cst_58 = arith.constant 7.812500e-03 : f32
    %193 = vector.broadcast %cst_58 : f32 to vector<4x1xf32>
    %194 = arith.mulf %190, %193 : vector<4x1xf32>
    %195 = arith.mulf %192, %192 : vector<4x1xf32>
    %196 = arith.subf %194, %195 : vector<4x1xf32>
    %cst_59 = arith.constant 9.99999974E-6 : f32
    %197 = vector.broadcast %cst_59 : f32 to vector<4x1xf32>
    %198 = arith.addf %196, %197 : vector<4x1xf32>
    %199 = math.rsqrt %198 : vector<4x1xf32>
    %200 = arith.mulf %9, %199 : vector<4x1xf32>
    %201 = arith.mulf %192, %200 : vector<4x1xf32>
    %202 = arith.subf %10, %201 : vector<4x1xf32>
    %203 = vector.broadcast %200 : vector<4x1xf32> to vector<4x128xf32>
    %204 = arith.mulf %185, %203 : vector<4x128xf32>
    %205 = vector.broadcast %202 : vector<4x1xf32> to vector<4x128xf32>
    %206 = arith.addf %204, %205 : vector<4x128xf32>
    %c0_60 = arith.constant 0 : index
    %c0_61 = arith.constant 0 : index
    %207 = vector.load %arg7[%c0_60, %c0_61] : memref<4x128xf32, #tpu.memory_space<vmem>>, vector<4x128xf32>
    tpu.vector_store %arg7[%c0_60, %c0_61], %206 {strides = array<i32>} : memref<4x128xf32, #tpu.memory_space<vmem>>, vector<4x128xf32>,
    return
  }
}

</mosaic_0001>

<llo_original>
// kernel: convolution_block.1
$region0: #{convolution_block.1}
  #allocation0 [shape = 'u32[]', space=smem, size = 0x4, offset = 0x4, fixed_abs, tag = 'smem constant byte address 0x4 - core index']
  #allocation1 [shape = 'u32[144,128]{1,0:T(1,128)}', space=vmem, size = 0x12000, scoped, tag = 'internal scratch']
  %s0 = inlined_call_operand.vmem [shape: f32[4,512], index: 0, kind: input, shape index: {}]
  %s1 = inlined_call_operand.vmem [shape: f32[9,4,4], index: 1, kind: input, shape index: {}]
  %s2 = inlined_call_operand.vmem [shape: f32[9,4,4], index: 2, kind: input, shape index: {}]
  %s3 = inlined_call_operand.vmem [shape: f32[4,6], index: 3, kind: input, shape index: {}]
  %s4 = inlined_call_operand.vmem [shape: f32[9,512], index: 4, kind: input, shape index: {}]
  %s5 = inlined_call_operand.vmem [shape: f32[9,512], index: 5, kind: input, shape index: {}]
  %s6 = inlined_call_operand.vmem [shape: f32[512,128], index: 6, kind: input, shape index: {}]
  %s7 = inlined_call_operand.vmem [shape: f32[4,128], index: 7, kind: output, shape index: {}]
  %s8 = sld [smem:[#allocation0]]
  $region38: #{convolution_block.1} parent=0
    _
  %s10 = ssub.s32 1, %s8
  %s11 = scalar_select 0, %s10, %s8
  // Predicated region
  $region2: #{convolution_block.1} parent=0 // pred_check
    _
  $region3: #{convolution_block.1} parent=0 // pred_check_branch
    %13 = sbr.rel (0) target = $region5
  $region4: #{convolution_block.1} parent=0 // pred_region
    _
  $region5: #{convolution_block.1} parent=0 // pred_fallthru
    _
  // Predicated region
  $region6: #{convolution_block.1} parent=0 // pred_check
    _
  $region7: #{convolution_block.1} parent=0 // pred_check_branch
    %15 = sbr.rel (0) target = $region9
  $region8: #{convolution_block.1} parent=0 // pred_region
    _
  $region9: #{convolution_block.1} parent=0 // pred_fallthru
    _
  // Predicated region
  $region10: #{convolution_block.1} parent=0 // pred_check
    _
  $region11: #{convolution_block.1} parent=0 // pred_check_branch
    %17 = sbr.rel (0) target = $region13
  $region12: #{convolution_block.1} parent=0 // pred_region
    _
  $region13: #{convolution_block.1} parent=0 // pred_fallthru
    _
  // Predicated region
  $region14: #{convolution_block.1} parent=0 // pred_check
    _
  $region15: #{convolution_block.1} parent=0 // pred_check_branch
    %19 = sbr.rel (0) target = $region17
  $region16: #{convolution_block.1} parent=0 // pred_region
    _
  $region17: #{convolution_block.1} parent=0 // pred_fallthru
    _
  // Predicated region
  $region18: #{convolution_block.1} parent=0 // pred_check
    _
  $region19: #{convolution_block.1} parent=0 // pred_check_branch
    %21 = sbr.rel (0) target = $region21
  $region20: #{convolution_block.1} parent=0 // pred_region
    _
  $region21: #{convolution_block.1} parent=0 // pred_fallthru
    _
  // Predicated region
  $region22: #{convolution_block.1} parent=0 // pred_check
    _
  $region23: #{convolution_block.1} parent=0 // pred_check_branch
    %23 = sbr.rel (0) target = $region25
  $region24: #{convolution_block.1} parent=0 // pred_region
    _
  $region25: #{convolution_block.1} parent=0 // pred_fallthru
    _
  // Predicated region
  $region26: #{convolution_block.1} parent=0 // pred_check
    _
  $region27: #{convolution_block.1} parent=0 // pred_check_branch
    %25 = sbr.rel (0) target = $region29
  $region28: #{convolution_block.1} parent=0 // pred_region
    _
  $region29: #{convolution_block.1} parent=0 // pred_fallthru
    _
  %v26 = vld [vmem:[%s0] sm:$0xff]
  %v27 = vld [vmem:[%s0 + $0x8] sm:$0xff]
  %v28 = vld [vmem:[%s1] sm:$0xf]
  %v29 = vld [vmem:[%s1 + $0x4] sm:$0xf]
  %v30 = vld [vmem:[%s1 + $0x8] sm:$0xf]
  %v31 = vld [vmem:[%s1 + $0xc] sm:$0xf]
  %v32 = vld [vmem:[%s1 + $0x10] sm:$0xf]
  %v33 = vld [vmem:[%s1 + $0x14] sm:$0xf]
  %v34 = vld [vmem:[%s1 + $0x18] sm:$0xf]
  %v35 = vld [vmem:[%s1 + $0x1c] sm:$0xf]
  %v36 = vld [vmem:[%s1 + $0x20] sm:$0xf]
  %v37 = vld [vmem:[%s2] sm:$0xf]
  %v38 = vld [vmem:[%s2 + $0x4] sm:$0xf]
  %v39 = vld [vmem:[%s2 + $0x8] sm:$0xf]
  %v40 = vld [vmem:[%s2 + $0xc] sm:$0xf]
  %v41 = vld [vmem:[%s2 + $0x10] sm:$0xf]
  %v42 = vld [vmem:[%s2 + $0x14] sm:$0xf]
  %v43 = vld [vmem:[%s2 + $0x18] sm:$0xf]
  %v44 = vld [vmem:[%s2 + $0x1c] sm:$0xf]
  %v45 = vld [vmem:[%s2 + $0x20] sm:$0xf]
  %v46 = vld [vmem:[%s4] sm:$0xff]
  %v47 = vld [vmem:[%s4 + $0x8] sm:$0xff]
  %v48 = vld [vmem:[%s4 + $0x10] sm:$0xff]
  %v49 = vld [vmem:[%s4 + $0x18] sm:$0xff]
  %v50 = vld [vmem:[%s4 + $0x20] sm:$0x1]
  %v51 = vld [vmem:[%s4 + $0x28] sm:$0x1]
  %v52 = vld [vmem:[%s4 + $0x30] sm:$0x1]
  %v53 = vld [vmem:[%s4 + $0x38] sm:$0x1]
  %v54 = vld [vmem:[%s5] sm:$0xff]
  %v55 = vld [vmem:[%s5 + $0x8] sm:$0xff]
  %v56 = vld [vmem:[%s5 + $0x10] sm:$0xff]
  %v57 = vld [vmem:[%s5 + $0x18] sm:$0xff]
  %v58 = vld [vmem:[%s5 + $0x20] sm:$0x1]
  %v59 = vld [vmem:[%s5 + $0x28] sm:$0x1]
  %v60 = vld [vmem:[%s5 + $0x30] sm:$0x1]
  %v61 = vld [vmem:[%s5 + $0x38] sm:$0x1]
  %v62 = vld [vmem:[%s3] sm:$0xf]
  %v65 = vcombine.high %v26, %v26
  %v66 = vcombine.high %v27, %v27
  %69 = vrot.lane.b32.xlu0 %v26, 17
  %v70 = vpop.permute.xlu0 %69
  %71 = vrot.lane.b32.xlu0 %v65, 17
  %v72 = vpop.permute.xlu0 %71
  %73 = vrot.lane.b32.xlu0 %v27, 17
  %v74 = vpop.permute.xlu0 %73
  %75 = vrot.lane.b32.xlu0 %v66, 17
  %v76 = vpop.permute.xlu0 %75
  %v77 = vlaneseq
  %v78 = vand.u32 %v77, 127
  %vm79 = vcmp.lt.s32.totalorder %v78, 17
  %v80 = vsel %vm79, %v74, %v76
  %v81 = vsel %vm79, %v72, %v74
  %v82 = vsel %vm79, %v70, %v72
  %v83 = vsel %vm79, %v76, %v70
  %v84 = vlaneseq
  %v85 = vshrl.u32 %v84, 7
  %v86 = vsub.s32 0, %v85
  %v87 = vrot.slane %v46, %v86
  %v88 = vlaneseq
  %v89 = vshrl.u32 %v88, 7
  %v90 = vsub.s32 0, %v89
  %v91 = vrot.slane %v47, %v90
  %v92 = vlaneseq
  %v93 = vshrl.u32 %v92, 7
  %v94 = vsub.s32 0, %v93
  %v95 = vrot.slane %v48, %v94
  %v96 = vlaneseq
  %v97 = vshrl.u32 %v96, 7
  %v98 = vsub.s32 0, %v97
  %v99 = vrot.slane %v49, %v98
  %v100 = vmul.f32 %v83, %v87
  %v101 = vmul.f32 %v82, %v91
  %v102 = vmul.f32 %v81, %v95
  %v103 = vmul.f32 %v80, %v99
  %104 = vrot.lane.b32.xlu0 %v26, 16
  %v105 = vpop.permute.xlu0 %104
  %106 = vrot.lane.b32.xlu0 %v65, 16
  %v107 = vpop.permute.xlu0 %106
  %108 = vrot.lane.b32.xlu0 %v27, 16
  %v109 = vpop.permute.xlu0 %108
  %110 = vrot.lane.b32.xlu0 %v66, 16
  %v111 = vpop.permute.xlu0 %110
  %vm112 = vcmp.lt.s32.totalorder %v78, 16
  %v113 = vsel %vm112, %v109, %v111
  %v114 = vsel %vm112, %v107, %v109
  %v115 = vsel %vm112, %v105, %v107
  %v116 = vsel %vm112, %v111, %v105
  %v117 = vlaneseq
  %v118 = vshrl.u32 %v117, 7
  %v119 = vsub.s32 1, %v118
  %v120 = vrot.slane %v46, %v119
  %v121 = vlaneseq
  %v122 = vshrl.u32 %v121, 7
  %v123 = vsub.s32 1, %v122
  %v124 = vrot.slane %v47, %v123
  %v125 = vlaneseq
  %v126 = vshrl.u32 %v125, 7
  %v127 = vsub.s32 1, %v126
  %v128 = vrot.slane %v48, %v127
  %v129 = vlaneseq
  %v130 = vshrl.u32 %v129, 7
  %v131 = vsub.s32 1, %v130
  %v132 = vrot.slane %v49, %v131
  %v133 = vmul.f32 %v116, %v120
  %v134 = vmul.f32 %v115, %v124
  %v135 = vmul.f32 %v114, %v128
  %v136 = vmul.f32 %v113, %v132
  %vm137 = vcmask 31744
  %v139 = vsel %vm137, %v29, 0
  %vm141 = vcmask 1043456
  %v143 = vsel %vm141, %v133, 0
  %v146 = vsel %vm141, %v134, 0
  %v149 = vsel %vm141, %v135, 0
  %v152 = vsel %vm141, %v136, 0
  %154 = vmatprep.subr.mxu0 %v146
  %155 = vmatpush1.msra.mxu0 %v143
  %156 = vmatprep.subr.mxu0 0.0
  %157 = vmatpush1.msra.mxu0 0.0
  %158 = vmatprep.subr.mxu0 0.0
  %159 = vmatpush1.msra.mxu0 0.0
  %160 = vmatprep.subr.mxu0 0.0
  %161 = vmatpush1.msra.mxu0 0.0
  %162 = vmatprep.subr.mxu0 0.0
  %163 = vmatpush1.msra.mxu0 0.0
  %164 = vmatprep.subr.mxu0 0.0
  %165 = vmatpush1.msra.mxu0 0.0
  %166 = vmatprep.subr.mxu0 0.0
  %167 = vmatpush1.msra.mxu0 0.0
  %168 = vmatprep.subr.mxu0 0.0
  %169 = vmatpush1.msra.mxu0 0.0
  %170 = vmatprep.subr.mxu0 0.0
  %171 = vmatpush1.msra.mxu0 0.0
  %172 = vmatprep.subr.mxu0 0.0
  %173 = vmatpush1.msra.mxu0 0.0
  %174 = vmatprep.subr.mxu0 0.0
  %175 = vmatpush1.msra.mxu0 0.0
  %176 = vmatprep.subr.mxu0 0.0
  %177 = vmatpush1.msra.mxu0 0.0
  %178 = vmatprep.subr.mxu0 0.0
  %179 = vmatpush1.msra.mxu0 0.0
  %180 = vmatprep.subr.mxu0 0.0
  %181 = vmatpush1.msra.mxu0 0.0
  %182 = vmatprep.subr.mxu0 0.0
  %183 = vmatpush1.msra.mxu0 0.0
  %184 = vmatprep.subr.mxu0 0.0
  %185 = vmatpush1.msra.mxu0 0.0
  %186 = vmatprep.subr.mxu0 0.0
  %187 = vmatpush1.msra.mxu0 0.0
  %188 = vmatprep.subr.mxu0 0.0
  %189 = vmatpush1.msra.mxu0 0.0
  %190 = vmatprep.subr.mxu0 0.0
  %191 = vmatpush1.msra.mxu0 0.0
  %192 = vmatprep.subr.mxu0 0.0
  %193 = vmatpush1.msra.mxu0 0.0
  %194 = vmatprep.subr.mxu0 0.0
  %195 = vmatpush1.msra.mxu0 0.0
  %196 = vmatprep.subr.mxu0 0.0
  %197 = vmatpush1.msra.mxu0 0.0
  %198 = vmatprep.subr.mxu0 0.0
  %199 = vmatpush1.msra.mxu0 0.0
  %200 = vmatprep.subr.mxu0 0.0
  %201 = vmatpush1.msra.mxu0 0.0
  %202 = vmatprep.subr.mxu0 0.0
  %203 = vmatpush1.msra.mxu0 0.0
  %204 = vmatprep.subr.mxu0 0.0
  %205 = vmatpush1.msra.mxu0 0.0
  %206 = vmatprep.subr.mxu0 0.0
  %207 = vmatpush1.msra.mxu0 0.0
  %208 = vmatprep.subr.mxu0 0.0
  %209 = vmatpush1.msra.mxu0 0.0
  %210 = vmatprep.subr.mxu0 0.0
  %211 = vmatpush1.msra.mxu0 0.0
  %212 = vmatprep.subr.mxu0 0.0
  %213 = vmatpush1.msra.mxu0 0.0
  %214 = vmatprep.subr.mxu0 0.0
  %215 = vmatpush1.msra.mxu0 0.0
  %216 = vmatprep.subr.mxu0 0.0
  %217 = vmatpush1.msra.mxu0 0.0
  %218 = vmatprep.mubr.f32.mxu0 0.0
  %219 = vmatmul.mubr.f32.gmra.mrb[0].mxu0 %v139
  %v220 = vpop.f32.mrb[0].mxu0
  %v221 = vadd.f32 0.0, %v220
  %v222 = vpop.f32.mrb[0].mxu0
  %v223 = vadd.f32 0.0, %v222
  %224 = vdwg.mxu0
  %225 = vmatprep.subr.mxu0 %v152
  %226 = vmatpush1.msra.mxu0 %v149
  %227 = vmatprep.subr.mxu0 0.0
  %228 = vmatpush1.msra.mxu0 0.0
  %229 = vmatprep.subr.mxu0 0.0
  %230 = vmatpush1.msra.mxu0 0.0
  %231 = vmatprep.subr.mxu0 0.0
  %232 = vmatpush1.msra.mxu0 0.0
  %233 = vmatprep.subr.mxu0 0.0
  %234 = vmatpush1.msra.mxu0 0.0
  %235 = vmatprep.subr.mxu0 0.0
  %236 = vmatpush1.msra.mxu0 0.0
  %237 = vmatprep.subr.mxu0 0.0
  %238 = vmatpush1.msra.mxu0 0.0
  %239 = vmatprep.subr.mxu0 0.0
  %240 = vmatpush1.msra.mxu0 0.0
  %241 = vmatprep.subr.mxu0 0.0
  %242 = vmatpush1.msra.mxu0 0.0
  %243 = vmatprep.subr.mxu0 0.0
  %244 = vmatpush1.msra.mxu0 0.0
  %245 = vmatprep.subr.mxu0 0.0
  %246 = vmatpush1.msra.mxu0 0.0
  %247 = vmatprep.subr.mxu0 0.0
  %248 = vmatpush1.msra.mxu0 0.0
  %249 = vmatprep.subr.mxu0 0.0
  %250 = vmatpush1.msra.mxu0 0.0
  %251 = vmatprep.subr.mxu0 0.0
  %252 = vmatpush1.msra.mxu0 0.0
  %253 = vmatprep.subr.mxu0 0.0
  %254 = vmatpush1.msra.mxu0 0.0
  %255 = vmatprep.subr.mxu0 0.0
  %256 = vmatpush1.msra.mxu0 0.0
  %257 = vmatprep.subr.mxu0 0.0
  %258 = vmatpush1.msra.mxu0 0.0
  %259 = vmatprep.subr.mxu0 0.0
  %260 = vmatpush1.msra.mxu0 0.0
  %261 = vmatprep.subr.mxu0 0.0
  %262 = vmatpush1.msra.mxu0 0.0
  %263 = vmatprep.subr.mxu0 0.0
  %264 = vmatpush1.msra.mxu0 0.0
  %265 = vmatprep.subr.mxu0 0.0
  %266 = vmatpush1.msra.mxu0 0.0
  %267 = vmatprep.subr.mxu0 0.0
  %268 = vmatpush1.msra.mxu0 0.0
  %269 = vmatprep.subr.mxu0 0.0
  %270 = vmatpush1.msra.mxu0 0.0
  %271 = vmatprep.subr.mxu0 0.0
  %272 = vmatpush1.msra.mxu0 0.0
  %273 = vmatprep.subr.mxu0 0.0
  %274 = vmatpush1.msra.mxu0 0.0
  %275 = vmatprep.subr.mxu0 0.0
  %276 = vmatpush1.msra.mxu0 0.0
  %277 = vmatprep.subr.mxu0 0.0
  %278 = vmatpush1.msra.mxu0 0.0
  %279 = vmatprep.subr.mxu0 0.0
  %280 = vmatpush1.msra.mxu0 0.0
  %281 = vmatprep.subr.mxu0 0.0
  %282 = vmatpush1.msra.mxu0 0.0
  %283 = vmatprep.subr.mxu0 0.0
  %284 = vmatpush1.msra.mxu0 0.0
  %285 = vmatprep.subr.mxu0 0.0
  %286 = vmatpush1.msra.mxu0 0.0
  %287 = vmatprep.subr.mxu0 0.0
  %288 = vmatpush1.msra.mxu0 0.0
  %289 = vmatprep.mubr.f32.mxu0 0.0
  %290 = vmatmul.mubr.f32.gmra.mrb[0].mxu0 %v139
  %v291 = vpop.f32.mrb[0].mxu0
  %v292 = vadd.f32 0.0, %v291
  %v293 = vpop.f32.mrb[0].mxu0
  %v294 = vadd.f32 0.0, %v293
  %295 = vdwg.mxu0
  %v297 = vsel %vm137, %v28, 0
  %v300 = vsel %vm141, %v100, 0
  %v303 = vsel %vm141, %v101, 0
  %v306 = vsel %vm141, %v102, 0
  %v309 = vsel %vm141, %v103, 0
  %311 = vmatprep.subr.mxu0 %v303
  %312 = vmatpush1.msra.mxu0 %v300
  %313 = vmatprep.subr.mxu0 0.0
  %314 = vmatpush1.msra.mxu0 0.0
  %315 = vmatprep.subr.mxu0 0.0
  %316 = vmatpush1.msra.mxu0 0.0
  %317 = vmatprep.subr.mxu0 0.0
  %318 = vmatpush1.msra.mxu0 0.0
  %319 = vmatprep.subr.mxu0 0.0
  %320 = vmatpush1.msra.mxu0 0.0
  %321 = vmatprep.subr.mxu0 0.0
  %322 = vmatpush1.msra.mxu0 0.0
  %323 = vmatprep.subr.mxu0 0.0
  %324 = vmatpush1.msra.mxu0 0.0
  %325 = vmatprep.subr.mxu0 0.0
  %326 = vmatpush1.msra.mxu0 0.0
  %327 = vmatprep.subr.mxu0 0.0
  %328 = vmatpush1.msra.mxu0 0.0
  %329 = vmatprep.subr.mxu0 0.0
  %330 = vmatpush1.msra.mxu0 0.0
  %331 = vmatprep.subr.mxu0 0.0
  %332 = vmatpush1.msra.mxu0 0.0
  %333 = vmatprep.subr.mxu0 0.0
  %334 = vmatpush1.msra.mxu0 0.0
  %335 = vmatprep.subr.mxu0 0.0
  %336 = vmatpush1.msra.mxu0 0.0
  %337 = vmatprep.subr.mxu0 0.0
  %338 = vmatpush1.msra.mxu0 0.0
  %339 = vmatprep.subr.mxu0 0.0
  %340 = vmatpush1.msra.mxu0 0.0
  %341 = vmatprep.subr.mxu0 0.0
  %342 = vmatpush1.msra.mxu0 0.0
  %343 = vmatprep.subr.mxu0 0.0
  %344 = vmatpush1.msra.mxu0 0.0
  %345 = vmatprep.subr.mxu0 0.0
  %346 = vmatpush1.msra.mxu0 0.0
  %347 = vmatprep.subr.mxu0 0.0
  %348 = vmatpush1.msra.mxu0 0.0
  %349 = vmatprep.subr.mxu0 0.0
  %350 = vmatpush1.msra.mxu0 0.0
  %351 = vmatprep.subr.mxu0 0.0
  %352 = vmatpush1.msra.mxu0 0.0
  %353 = vmatprep.subr.mxu0 0.0
  %354 = vmatpush1.msra.mxu0 0.0
  %355 = vmatprep.subr.mxu0 0.0
  %356 = vmatpush1.msra.mxu0 0.0
  %357 = vmatprep.subr.mxu0 0.0
  %358 = vmatpush1.msra.mxu0 0.0
  %359 = vmatprep.subr.mxu0 0.0
  %360 = vmatpush1.msra.mxu0 0.0
  %361 = vmatprep.subr.mxu0 0.0
  %362 = vmatpush1.msra.mxu0 0.0
  %363 = vmatprep.subr.mxu0 0.0
  %364 = vmatpush1.msra.mxu0 0.0
  %365 = vmatprep.subr.mxu0 0.0
  %366 = vmatpush1.msra.mxu0 0.0
  %367 = vmatprep.subr.mxu0 0.0
  %368 = vmatpush1.msra.mxu0 0.0
  %369 = vmatprep.subr.mxu0 0.0
  %370 = vmatpush1.msra.mxu0 0.0
  %371 = vmatprep.subr.mxu0 0.0
  %372 = vmatpush1.msra.mxu0 0.0
  %373 = vmatprep.subr.mxu0 0.0
  %374 = vmatpush1.msra.mxu0 0.0
  %375 = vmatprep.mubr.f32.mxu0 0.0
  %376 = vmatmul.mubr.f32.gmra.mrb[0].mxu0 %v297
  %v377 = vpop.f32.mrb[0].mxu0
  %v378 = vadd.f32 %v221, %v377
  %v379 = vpop.f32.mrb[0].mxu0
  %v380 = vadd.f32 %v223, %v379
  %381 = vdwg.mxu0
  %382 = vmatprep.subr.mxu0 %v309
  %383 = vmatpush1.msra.mxu0 %v306
  %384 = vmatprep.subr.mxu0 0.0
  %385 = vmatpush1.msra.mxu0 0.0
  %386 = vmatprep.subr.mxu0 0.0
  %387 = vmatpush1.msra.mxu0 0.0
  %388 = vmatprep.subr.mxu0 0.0
  %389 = vmatpush1.msra.mxu0 0.0
  %390 = vmatprep.subr.mxu0 0.0
  %391 = vmatpush1.msra.mxu0 0.0
  %392 = vmatprep.subr.mxu0 0.0
  %393 = vmatpush1.msra.mxu0 0.0
  %394 = vmatprep.subr.mxu0 0.0
  %395 = vmatpush1.msra.mxu0 0.0
  %396 = vmatprep.subr.mxu0 0.0
  %397 = vmatpush1.msra.mxu0 0.0
  %398 = vmatprep.subr.mxu0 0.0
  %399 = vmatpush1.msra.mxu0 0.0
  %400 = vmatprep.subr.mxu0 0.0
  %401 = vmatpush1.msra.mxu0 0.0
  %402 = vmatprep.subr.mxu0 0.0
  %403 = vmatpush1.msra.mxu0 0.0
  %404 = vmatprep.subr.mxu0 0.0
  %405 = vmatpush1.msra.mxu0 0.0
  %406 = vmatprep.subr.mxu0 0.0
  %407 = vmatpush1.msra.mxu0 0.0
  %408 = vmatprep.subr.mxu0 0.0
  %409 = vmatpush1.msra.mxu0 0.0
  %410 = vmatprep.subr.mxu0 0.0
  %411 = vmatpush1.msra.mxu0 0.0
  %412 = vmatprep.subr.mxu0 0.0
  %413 = vmatpush1.msra.mxu0 0.0
  %414 = vmatprep.subr.mxu0 0.0
  %415 = vmatpush1.msra.mxu0 0.0
  %416 = vmatprep.subr.mxu0 0.0
  %417 = vmatpush1.msra.mxu0 0.0
  %418 = vmatprep.subr.mxu0 0.0
  %419 = vmatpush1.msra.mxu0 0.0
  %420 = vmatprep.subr.mxu0 0.0
  %421 = vmatpush1.msra.mxu0 0.0
  %422 = vmatprep.subr.mxu0 0.0
  %423 = vmatpush1.msra.mxu0 0.0
  %424 = vmatprep.subr.mxu0 0.0
  %425 = vmatpush1.msra.mxu0 0.0
  %426 = vmatprep.subr.mxu0 0.0
  %427 = vmatpush1.msra.mxu0 0.0
  %428 = vmatprep.subr.mxu0 0.0
  %429 = vmatpush1.msra.mxu0 0.0
  %430 = vmatprep.subr.mxu0 0.0
  %431 = vmatpush1.msra.mxu0 0.0
  %432 = vmatprep.subr.mxu0 0.0
  %433 = vmatpush1.msra.mxu0 0.0
  %434 = vmatprep.subr.mxu0 0.0
  %435 = vmatpush1.msra.mxu0 0.0
  %436 = vmatprep.subr.mxu0 0.0
  %437 = vmatpush1.msra.mxu0 0.0
  %438 = vmatprep.subr.mxu0 0.0
  %439 = vmatpush1.msra.mxu0 0.0
  %440 = vmatprep.subr.mxu0 0.0
  %441 = vmatpush1.msra.mxu0 0.0
  %442 = vmatprep.subr.mxu0 0.0
  %443 = vmatpush1.msra.mxu0 0.0
  %444 = vmatprep.subr.mxu0 0.0
  %445 = vmatpush1.msra.mxu0 0.0
  %446 = vmatprep.mubr.f32.mxu0 0.0
  %447 = vmatmul.mubr.f32.gmra.mrb[0].mxu0 %v297
  %v448 = vpop.f32.mrb[0].mxu0
  %v449 = vadd.f32 %v292, %v448
  %v450 = vpop.f32.mrb[0].mxu0
  %v451 = vadd.f32 %v294, %v450
  %452 = vdwg.mxu0
  %453 = vrot.lane.b32.xlu0 %v26, 15
  %v454 = vpop.permute.xlu0 %453
  %455 = vrot.lane.b32.xlu0 %v65, 15
  %v456 = vpop.permute.xlu0 %455
  %457 = vrot.lane.b32.xlu0 %v27, 15
  %v458 = vpop.permute.xlu0 %457
  %459 = vrot.lane.b32.xlu0 %v66, 15
  %v460 = vpop.permute.xlu0 %459
  %vm461 = vcmp.lt.s32.totalorder %v78, 15
  %v462 = vsel %vm461, %v458, %v460
  %v463 = vsel %vm461, %v456, %v458
  %v464 = vsel %vm461, %v454, %v456
  %v465 = vsel %vm461, %v460, %v454
  %v466 = vlaneseq
  %v467 = vshrl.u32 %v466, 7
  %v468 = vsub.s32 2, %v467
  %v469 = vrot.slane %v46, %v468
  %v470 = vlaneseq
  %v471 = vshrl.u32 %v470, 7
  %v472 = vsub.s32 2, %v471
  %v473 = vrot.slane %v47, %v472
  %v474 = vlaneseq
  %v475 = vshrl.u32 %v474, 7
  %v476 = vsub.s32 2, %v475
  %v477 = vrot.slane %v48, %v476
  %v478 = vlaneseq
  %v479 = vshrl.u32 %v478, 7
  %v480 = vsub.s32 2, %v479
  %v481 = vrot.slane %v49, %v480
  %v482 = vmul.f32 %v465, %v469
  %v483 = vmul.f32 %v464, %v473
  %v484 = vmul.f32 %v463, %v477
  %v485 = vmul.f32 %v462, %v481
  %v487 = vsel %vm137, %v30, 0
  %v490 = vsel %vm141, %v482, 0
  %v493 = vsel %vm141, %v483, 0
  %v496 = vsel %vm141, %v484, 0
  %v499 = vsel %vm141, %v485, 0
  %501 = vmatprep.subr.mxu0 %v493
  %502 = vmatpush1.msra.mxu0 %v490
  %503 = vmatprep.subr.mxu0 0.0
  %504 = vmatpush1.msra.mxu0 0.0
  %505 = vmatprep.subr.mxu0 0.0
  %506 = vmatpush1.msra.mxu0 0.0
  %507 = vmatprep.subr.mxu0 0.0
  %508 = vmatpush1.msra.mxu0 0.0
  %509 = vmatprep.subr.mxu0 0.0
  %510 = vmatpush1.msra.mxu0 0.0
  %511 = vmatprep.subr.mxu0 0.0
  %512 = vmatpush1.msra.mxu0 0.0
  %513 = vmatprep.subr.mxu0 0.0
  %514 = vmatpush1.msra.mxu0 0.0
  %515 = vmatprep.subr.mxu0 0.0
  %516 = vmatpush1.msra.mxu0 0.0
  %517 = vmatprep.subr.mxu0 0.0
  %518 = vmatpush1.msra.mxu0 0.0
  %519 = vmatprep.subr.mxu0 0.0
  %520 = vmatpush1.msra.mxu0 0.0
  %521 = vmatprep.subr.mxu0 0.0
  %522 = vmatpush1.msra.mxu0 0.0
  %523 = vmatprep.subr.mxu0 0.0
  %524 = vmatpush1.msra.mxu0 0.0
  %525 = vmatprep.subr.mxu0 0.0
  %526 = vmatpush1.msra.mxu0 0.0
  %527 = vmatprep.subr.mxu0 0.0
  %528 = vmatpush1.msra.mxu0 0.0
  %529 = vmatprep.subr.mxu0 0.0
  %530 = vmatpush1.msra.mxu0 0.0
  %531 = vmatprep.subr.mxu0 0.0
  %532 = vmatpush1.msra.mxu0 0.0
  %533 = vmatprep.subr.mxu0 0.0
  %534 = vmatpush1.msra.mxu0 0.0
  %535 = vmatprep.subr.mxu0 0.0
  %536 = vmatpush1.msra.mxu0 0.0
  %537 = vmatprep.subr.mxu0 0.0
  %538 = vmatpush1.msra.mxu0 0.0
  %539 = vmatprep.subr.mxu0 0.0
  %540 = vmatpush1.msra.mxu0 0.0
  %541 = vmatprep.subr.mxu0 0.0
  %542 = vmatpush1.msra.mxu0 0.0
  %543 = vmatprep.subr.mxu0 0.0
  %544 = vmatpush1.msra.mxu0 0.0
  %545 = vmatprep.subr.mxu0 0.0
  %546 = vmatpush1.msra.mxu0 0.0
  %547 = vmatprep.subr.mxu0 0.0
  %548 = vmatpush1.msra.mxu0 0.0
  %549 = vmatprep.subr.mxu0 0.0
  %550 = vmatpush1.msra.mxu0 0.0
  %551 = vmatprep.subr.mxu0 0.0
  %552 = vmatpush1.msra.mxu0 0.0
  %553 = vmatprep.subr.mxu0 0.0
  %554 = vmatpush1.msra.mxu0 0.0
  %555 = vmatprep.subr.mxu0 0.0
  %556 = vmatpush1.msra.mxu0 0.0
  %557 = vmatprep.subr.mxu0 0.0
  %558 = vmatpush1.msra.mxu0 0.0
  %559 = vmatprep.subr.mxu0 0.0
  %560 = vmatpush1.msra.mxu0 0.0
  %561 = vmatprep.subr.mxu0 0.0
  %562 = vmatpush1.msra.mxu0 0.0
  %563 = vmatprep.subr.mxu0 0.0
  %564 = vmatpush1.msra.mxu0 0.0
  %565 = vmatprep.mubr.f32.mxu0 0.0
  %566 = vmatmul.mubr.f32.gmra.mrb[0].mxu0 %v487
  %v567 = vpop.f32.mrb[0].mxu0
  %v568 = vadd.f32 0.0, %v567
  %v569 = vpop.f32.mrb[0].mxu0
  %v570 = vadd.f32 0.0, %v569
  %571 = vdwg.mxu0
  %572 = vmatprep.subr.mxu0 %v499
  %573 = vmatpush1.msra.mxu0 %v496
  %574 = vmatprep.subr.mxu0 0.0
  %575 = vmatpush1.msra.mxu0 0.0
  %576 = vmatprep.subr.mxu0 0.0
  %577 = vmatpush1.msra.mxu0 0.0
  %578 = vmatprep.subr.mxu0 0.0
  %579 = vmatpush1.msra.mxu0 0.0
  %580 = vmatprep.subr.mxu0 0.0
  %581 = vmatpush1.msra.mxu0 0.0
  %582 = vmatprep.subr.mxu0 0.0
  %583 = vmatpush1.msra.mxu0 0.0
  %584 = vmatprep.subr.mxu0 0.0
  %585 = vmatpush1.msra.mxu0 0.0
  %586 = vmatprep.subr.mxu0 0.0
  %587 = vmatpush1.msra.mxu0 0.0
  %588 = vmatprep.subr.mxu0 0.0
  %589 = vmatpush1.msra.mxu0 0.0
  %590 = vmatprep.subr.mxu0 0.0
  %591 = vmatpush1.msra.mxu0 0.0
  %592 = vmatprep.subr.mxu0 0.0
  %593 = vmatpush1.msra.mxu0 0.0
  %594 = vmatprep.subr.mxu0 0.0
  %595 = vmatpush1.msra.mxu0 0.0
  %596 = vmatprep.subr.mxu0 0.0
  %597 = vmatpush1.msra.mxu0 0.0
  %598 = vmatprep.subr.mxu0 0.0
  %599 = vmatpush1.msra.mxu0 0.0
  %600 = vmatprep.subr.mxu0 0.0
  %601 = vmatpush1.msra.mxu0 0.0
  %602 = vmatprep.subr.mxu0 0.0
  %603 = vmatpush1.msra.mxu0 0.0
  %604 = vmatprep.subr.mxu0 0.0
  %605 = vmatpush1.msra.mxu0 0.0
  %606 = vmatprep.subr.mxu0 0.0
  %607 = vmatpush1.msra.mxu0 0.0
  %608 = vmatprep.subr.mxu0 0.0
  %609 = vmatpush1.msra.mxu0 0.0
  %610 = vmatprep.subr.mxu0 0.0
  %611 = vmatpush1.msra.mxu0 0.0
  %612 = vmatprep.subr.mxu0 0.0
  %613 = vmatpush1.msra.mxu0 0.0
  %614 = vmatprep.subr.mxu0 0.0
  %615 = vmatpush1.msra.mxu0 0.0
  %616 = vmatprep.subr.mxu0 0.0
  %617 = vmatpush1.msra.mxu0 0.0
  %618 = vmatprep.subr.mxu0 0.0
  %619 = vmatpush1.msra.mxu0 0.0
  %620 = vmatprep.subr.mxu0 0.0
  %621 = vmatpush1.msra.mxu0 0.0
  %622 = vmatprep.subr.mxu0 0.0
  %623 = vmatpush1.msra.mxu0 0.0
  %624 = vmatprep.subr.mxu0 0.0
  %625 = vmatpush1.msra.mxu0 0.0
  %626 = vmatprep.subr.mxu0 0.0
  %627 = vmatpush1.msra.mxu0 0.0
  %628 = vmatprep.subr.mxu0 0.0
  %629 = vmatpush1.msra.mxu0 0.0
  %630 = vmatprep.subr.mxu0 0.0
  %631 = vmatpush1.msra.mxu0 0.0
  %632 = vmatprep.subr.mxu0 0.0
  %633 = vmatpush1.msra.mxu0 0.0
  %634 = vmatprep.subr.mxu0 0.0
  %635 = vmatpush1.msra.mxu0 0.0
  %636 = vmatprep.mubr.f32.mxu0 0.0
  %637 = vmatmul.mubr.f32.gmra.mrb[0].mxu0 %v487
  %v638 = vpop.f32.mrb[0].mxu0
  %v639 = vadd.f32 0.0, %v638
  %v640 = vpop.f32.mrb[0].mxu0
  %v641 = vadd.f32 0.0, %v640
  %642 = vdwg.mxu0
  %v643 = vadd.f32 %v378, %v568
  %v644 = vadd.f32 %v380, %v570
  %v645 = vadd.f32 %v449, %v639
  %v646 = vadd.f32 %v451, %v641
  %647 = vrot.lane.b32.xlu0 %v26, 1
  %v648 = vpop.permute.xlu0 %647
  %649 = vrot.lane.b32.xlu0 %v65, 1
  %v650 = vpop.permute.xlu0 %649
  %651 = vrot.lane.b32.xlu0 %v27, 1
  %v652 = vpop.permute.xlu0 %651
  %653 = vrot.lane.b32.xlu0 %v66, 1
  %v654 = vpop.permute.xlu0 %653
  %vm655 = vcmp.lt.s32.totalorder %v78, 1
  %v656 = vsel %vm655, %v652, %v654
  %v657 = vsel %vm655, %v650, %v652
  %v658 = vsel %vm655, %v648, %v650
  %v659 = vsel %vm655, %v654, %v648
  %v660 = vlaneseq
  %v661 = vshrl.u32 %v660, 7
  %v662 = vsub.s32 3, %v661
  %v663 = vrot.slane %v46, %v662
  %v664 = vlaneseq
  %v665 = vshrl.u32 %v664, 7
  %v666 = vsub.s32 3, %v665
  %v667 = vrot.slane %v47, %v666
  %v668 = vlaneseq
  %v669 = vshrl.u32 %v668, 7
  %v670 = vsub.s32 3, %v669
  %v671 = vrot.slane %v48, %v670
  %v672 = vlaneseq
  %v673 = vshrl.u32 %v672, 7
  %v674 = vsub.s32 3, %v673
  %v675 = vrot.slane %v49, %v674
  %v676 = vmul.f32 %v659, %v663
  %v677 = vmul.f32 %v658, %v667
  %v678 = vmul.f32 %v657, %v671
  %v679 = vmul.f32 %v656, %v675
  %v681 = vsel %vm137, %v31, 0
  %v684 = vsel %vm141, %v676, 0
  %v687 = vsel %vm141, %v677, 0
  %v690 = vsel %vm141, %v678, 0
  %v693 = vsel %vm141, %v679, 0
  %695 = vmatprep.subr.mxu0 %v687
  %696 = vmatpush1.msra.mxu0 %v684
  %697 = vmatprep.subr.mxu0 0.0
  %698 = vmatpush1.msra.mxu0 0.0
  %699 = vmatprep.subr.mxu0 0.0
  %700 = vmatpush1.msra.mxu0 0.0
  %701 = vmatprep.subr.mxu0 0.0
  %702 = vmatpush1.msra.mxu0 0.0
  %703 = vmatprep.subr.mxu0 0.0
  %704 = vmatpush1.msra.mxu0 0.0
  %705 = vmatprep.subr.mxu0 0.0
  %706 = vmatpush1.msra.mxu0 0.0
  %707 = vmatprep.subr.mxu0 0.0
  %708 = vmatpush1.msra.mxu0 0.0
  %709 = vmatprep.subr.mxu0 0.0
  %710 = vmatpush1.msra.mxu0 0.0
  %711 = vmatprep.subr.mxu0 0.0
  %712 = vmatpush1.msra.mxu0 0.0
  %713 = vmatprep.subr.mxu0 0.0
  %714 = vmatpush1.msra.mxu0 0.0
  %715 = vmatprep.subr.mxu0 0.0
  %716 = vmatpush1.msra.mxu0 0.0
  %717 = vmatprep.subr.mxu0 0.0
  %718 = vmatpush1.msra.mxu0 0.0
  %719 = vmatprep.subr.mxu0 0.0
  %720 = vmatpush1.msra.mxu0 0.0
  %721 = vmatprep.subr.mxu0 0.0
  %722 = vmatpush1.msra.mxu0 0.0
  %723 = vmatprep.subr.mxu0 0.0
  %724 = vmatpush1.msra.mxu0 0.0
  %725 = vmatprep.subr.mxu0 0.0
  %726 = vmatpush1.msra.mxu0 0.0
  %727 = vmatprep.subr.mxu0 0.0
  %728 = vmatpush1.msra.mxu0 0.0
  %729 = vmatprep.subr.mxu0 0.0
  %730 = vmatpush1.msra.mxu0 0.0
  %731 = vmatprep.subr.mxu0 0.0
  %732 = vmatpush1.msra.mxu0 0.0
  %733 = vmatprep.subr.mxu0 0.0
  %734 = vmatpush1.msra.mxu0 0.0
  %735 = vmatprep.subr.mxu0 0.0
  %736 = vmatpush1.msra.mxu0 0.0
  %737 = vmatprep.subr.mxu0 0.0
  %738 = vmatpush1.msra.mxu0 0.0
  %739 = vmatprep.subr.mxu0 0.0
  %740 = vmatpush1.msra.mxu0 0.0
  %741 = vmatprep.subr.mxu0 0.0
  %742 = vmatpush1.msra.mxu0 0.0
  %743 = vmatprep.subr.mxu0 0.0
  %744 = vmatpush1.msra.mxu0 0.0
  %745 = vmatprep.subr.mxu0 0.0
  %746 = vmatpush1.msra.mxu0 0.0
  %747 = vmatprep.subr.mxu0 0.0
  %748 = vmatpush1.msra.mxu0 0.0
  %749 = vmatprep.subr.mxu0 0.0
  %750 = vmatpush1.msra.mxu0 0.0
  %751 = vmatprep.subr.mxu0 0.0
  %752 = vmatpush1.msra.mxu0 0.0
  %753 = vmatprep.subr.mxu0 0.0
  %754 = vmatpush1.msra.mxu0 0.0
  %755 = vmatprep.subr.mxu0 0.0
  %756 = vmatpush1.msra.mxu0 0.0
  %757 = vmatprep.subr.mxu0 0.0
  %758 = vmatpush1.msra.mxu0 0.0
  %759 = vmatprep.mubr.f32.mxu0 0.0
  %760 = vmatmul.mubr.f32.gmra.mrb[0].mxu0 %v681
  %v761 = vpop.f32.mrb[0].mxu0
  %v762 = vadd.f32 0.0, %v761
  %v763 = vpop.f32.mrb[0].mxu0
  %v764 = vadd.f32 0.0, %v763
  %765 = vdwg.mxu0
  %766 = vmatprep.subr.mxu0 %v693
  %767 = vmatpush1.msra.mxu0 %v690
  %768 = vmatprep.subr.mxu0 0.0
  %769 = vmatpush1.msra.mxu0 0.0
  %770 = vmatprep.subr.mxu0 0.0
  %771 = vmatpush1.msra.mxu0 0.0
  %772 = vmatprep.subr.mxu0 0.0
  %773 = vmatpush1.msra.mxu0 0.0
  %774 = vmatprep.subr.mxu0 0.0
  %775 = vmatpush1.msra.mxu0 0.0
  %776 = vmatprep.subr.mxu0 0.0
  %777 = vmatpush1.msra.mxu0 0.0
  %778 = vmatprep.subr.mxu0 0.0
  %779 = vmatpush1.msra.mxu0 0.0
  %780 = vmatprep.subr.mxu0 0.0
  %781 = vmatpush1.msra.mxu0 0.0
  %782 = vmatprep.subr.mxu0 0.0
  %783 = vmatpush1.msra.mxu0 0.0
  %784 = vmatprep.subr.mxu0 0.0
  %785 = vmatpush1.msra.mxu0 0.0
  %786 = vmatprep.subr.mxu0 0.0
  %787 = vmatpush1.msra.mxu0 0.0
  %788 = vmatprep.subr.mxu0 0.0
  %789 = vmatpush1.msra.mxu0 0.0
  %790 = vmatprep.subr.mxu0 0.0
  %791 = vmatpush1.msra.mxu0 0.0
  %792 = vmatprep.subr.mxu0 0.0
  %793 = vmatpush1.msra.mxu0 0.0
  %794 = vmatprep.subr.mxu0 0.0
  %795 = vmatpush1.msra.mxu0 0.0
  %796 = vmatprep.subr.mxu0 0.0
  %797 = vmatpush1.msra.mxu0 0.0
  %798 = vmatprep.subr.mxu0 0.0
  %799 = vmatpush1.msra.mxu0 0.0
  %800 = vmatprep.subr.mxu0 0.0
  %801 = vmatpush1.msra.mxu0 0.0
  %802 = vmatprep.subr.mxu0 0.0
  %803 = vmatpush1.msra.mxu0 0.0
  %804 = vmatprep.subr.mxu0 0.0
  %805 = vmatpush1.msra.mxu0 0.0
  %806 = vmatprep.subr.mxu0 0.0
  %807 = vmatpush1.msra.mxu0 0.0
  %808 = vmatprep.subr.mxu0 0.0
  %809 = vmatpush1.msra.mxu0 0.0
  %810 = vmatprep.subr.mxu0 0.0
  %811 = vmatpush1.msra.mxu0 0.0
  %812 = vmatprep.subr.mxu0 0.0
  %813 = vmatpush1.msra.mxu0 0.0
  %814 = vmatprep.subr.mxu0 0.0
  %815 = vmatpush1.msra.mxu0 0.0
  %816 = vmatprep.subr.mxu0 0.0
  %817 = vmatpush1.msra.mxu0 0.0
  %818 = vmatprep.subr.mxu0 0.0
  %819 = vmatpush1.msra.mxu0 0.0
  %820 = vmatprep.subr.mxu0 0.0
  %821 = vmatpush1.msra.mxu0 0.0
  %822 = vmatprep.subr.mxu0 0.0
  %823 = vmatpush1.msra.mxu0 0.0
  %824 = vmatprep.subr.mxu0 0.0
  %825 = vmatpush1.msra.mxu0 0.0
  %826 = vmatprep.subr.mxu0 0.0
  %827 = vmatpush1.msra.mxu0 0.0
  %828 = vmatprep.subr.mxu0 0.0
  %829 = vmatpush1.msra.mxu0 0.0
  %830 = vmatprep.mubr.f32.mxu0 0.0
  %831 = vmatmul.mubr.f32.gmra.mrb[0].mxu0 %v681
  %v832 = vpop.f32.mrb[0].mxu0
  %v833 = vadd.f32 0.0, %v832
  %v834 = vpop.f32.mrb[0].mxu0
  %v835 = vadd.f32 0.0, %v834
  %836 = vdwg.mxu0
  %v837 = vadd.f32 %v643, %v762
  %v838 = vadd.f32 %v644, %v764
  %v839 = vadd.f32 %v645, %v833
  %v840 = vadd.f32 %v646, %v835
  %v841 = vlaneseq
  %v842 = vshrl.u32 %v841, 7
  %v843 = vsub.s32 4, %v842
  %v844 = vrot.slane %v46, %v843
  %v845 = vlaneseq
  %v846 = vshrl.u32 %v845, 7
  %v847 = vsub.s32 4, %v846
  %v848 = vrot.slane %v47, %v847
  %v849 = vlaneseq
  %v850 = vshrl.u32 %v849, 7
  %v851 = vsub.s32 4, %v850
  %v852 = vrot.slane %v48, %v851
  %v853 = vlaneseq
  %v854 = vshrl.u32 %v853, 7
  %v855 = vsub.s32 4, %v854
  %v856 = vrot.slane %v49, %v855
  %v861 = vcombine.low %v844, %v848
  %v862 = vcombine.low %v852, %v856
  %v865 = vmul.f32 %v26, %v861
  %v866 = vmul.f32 %v27, %v862
  %v869 = vcombine.high %v865, %v865
  %v870 = vcombine.high %v866, %v866
  %v872 = vsel %vm137, %v32, 0
  %v874 = vsel %vm141, %v865, 0
  %v876 = vsel %vm141, %v869, 0
  %v878 = vsel %vm141, %v866, 0
  %v880 = vsel %vm141, %v870, 0
  %882 = vmatprep.subr.mxu0 %v876
  %883 = vmatpush1.msra.mxu0 %v874
  %884 = vmatprep.subr.mxu0 0.0
  %885 = vmatpush1.msra.mxu0 0.0
  %886 = vmatprep.subr.mxu0 0.0
  %887 = vmatpush1.msra.mxu0 0.0
  %888 = vmatprep.subr.mxu0 0.0
  %889 = vmatpush1.msra.mxu0 0.0
  %890 = vmatprep.subr.mxu0 0.0
  %891 = vmatpush1.msra.mxu0 0.0
  %892 = vmatprep.subr.mxu0 0.0
  %893 = vmatpush1.msra.mxu0 0.0
  %894 = vmatprep.subr.mxu0 0.0
  %895 = vmatpush1.msra.mxu0 0.0
  %896 = vmatprep.subr.mxu0 0.0
  %897 = vmatpush1.msra.mxu0 0.0
  %898 = vmatprep.subr.mxu0 0.0
  %899 = vmatpush1.msra.mxu0 0.0
  %900 = vmatprep.subr.mxu0 0.0
  %901 = vmatpush1.msra.mxu0 0.0
  %902 = vmatprep.subr.mxu0 0.0
  %903 = vmatpush1.msra.mxu0 0.0
  %904 = vmatprep.subr.mxu0 0.0
  %905 = vmatpush1.msra.mxu0 0.0
  %906 = vmatprep.subr.mxu0 0.0
  %907 = vmatpush1.msra.mxu0 0.0
  %908 = vmatprep.subr.mxu0 0.0
  %909 = vmatpush1.msra.mxu0 0.0
  %910 = vmatprep.subr.mxu0 0.0
  %911 = vmatpush1.msra.mxu0 0.0
  %912 = vmatprep.subr.mxu0 0.0
  %913 = vmatpush1.msra.mxu0 0.0
  %914 = vmatprep.subr.mxu0 0.0
  %915 = vmatpush1.msra.mxu0 0.0
  %916 = vmatprep.subr.mxu0 0.0
  %917 = vmatpush1.msra.mxu0 0.0
  %918 = vmatprep.subr.mxu0 0.0
  %919 = vmatpush1.msra.mxu0 0.0
  %920 = vmatprep.subr.mxu0 0.0
  %921 = vmatpush1.msra.mxu0 0.0
  %922 = vmatprep.subr.mxu0 0.0
  %923 = vmatpush1.msra.mxu0 0.0
  %924 = vmatprep.subr.mxu0 0.0
  %925 = vmatpush1.msra.mxu0 0.0
  %926 = vmatprep.subr.mxu0 0.0
  %927 = vmatpush1.msra.mxu0 0.0
  %928 = vmatprep.subr.mxu0 0.0
  %929 = vmatpush1.msra.mxu0 0.0
  %930 = vmatprep.subr.mxu0 0.0
  %931 = vmatpush1.msra.mxu0 0.0
  %932 = vmatprep.subr.mxu0 0.0
  %933 = vmatpush1.msra.mxu0 0.0
  %934 = vmatprep.subr.mxu0 0.0
  %935 = vmatpush1.msra.mxu0 0.0
  %936 = vmatprep.subr.mxu0 0.0
  %937 = vmatpush1.msra.mxu0 0.0
  %938 = vmatprep.subr.mxu0 0.0
  %939 = vmatpush1.msra.mxu0 0.0
  %940 = vmatprep.subr.mxu0 0.0
  %941 = vmatpush1.msra.mxu0 0.0
  %942 = vmatprep.subr.mxu0 0.0
  %943 = vmatpush1.msra.mxu0 0.0
  %944 = vmatprep.subr.mxu0 0.0
  %945 = vmatpush1.msra.mxu0 0.0
  %946 = vmatprep.mubr.f32.mxu0 0.0
  %947 = vmatmul.mubr.f32.gmra.mrb[0].mxu0 %v872
  %v948 = vpop.f32.mrb[0].mxu0
  %v949 = vadd.f32 0.0, %v948
  %v950 = vpop.f32.mrb[0].mxu0
  %v951 = vadd.f32 0.0, %v950
  %952 = vdwg.mxu0
  %953 = vmatprep.subr.mxu0 %v880
  %954 = vmatpush1.msra.mxu0 %v878
  %955 = vmatprep.subr.mxu0 0.0
  %956 = vmatpush1.msra.mxu0 0.0
  %957 = vmatprep.subr.mxu0 0.0
  %958 = vmatpush1.msra.mxu0 0.0
  %959 = vmatprep.subr.mxu0 0.0
  %960 = vmatpush1.msra.mxu0 0.0
  %961 = vmatprep.subr.mxu0 0.0
  %962 = vmatpush1.msra.mxu0 0.0
  %963 = vmatprep.subr.mxu0 0.0
  %964 = vmatpush1.msra.mxu0 0.0
  %965 = vmatprep.subr.mxu0 0.0
  %966 = vmatpush1.msra.mxu0 0.0
  %967 = vmatprep.subr.mxu0 0.0
  %968 = vmatpush1.msra.mxu0 0.0
  %969 = vmatprep.subr.mxu0 0.0
  %970 = vmatpush1.msra.mxu0 0.0
  %971 = vmatprep.subr.mxu0 0.0
  %972 = vmatpush1.msra.mxu0 0.0
  %973 = vmatprep.subr.mxu0 0.0
  %974 = vmatpush1.msra.mxu0 0.0
  %975 = vmatprep.subr.mxu0 0.0
  %976 = vmatpush1.msra.mxu0 0.0
  %977 = vmatprep.subr.mxu0 0.0
  %978 = vmatpush1.msra.mxu0 0.0
  %979 = vmatprep.subr.mxu0 0.0
  %980 = vmatpush1.msra.mxu0 0.0
  %981 = vmatprep.subr.mxu0 0.0
  %982 = vmatpush1.msra.mxu0 0.0
  %983 = vmatprep.subr.mxu0 0.0
  %984 = vmatpush1.msra.mxu0 0.0
  %985 = vmatprep.subr.mxu0 0.0
  %986 = vmatpush1.msra.mxu0 0.0
  %987 = vmatprep.subr.mxu0 0.0
  %988 = vmatpush1.msra.mxu0 0.0
  %989 = vmatprep.subr.mxu0 0.0
  %990 = vmatpush1.msra.mxu0 0.0
  %991 = vmatprep.subr.mxu0 0.0
  %992 = vmatpush1.msra.mxu0 0.0
  %993 = vmatprep.subr.mxu0 0.0
  %994 = vmatpush1.msra.mxu0 0.0
  %995 = vmatprep.subr.mxu0 0.0
  %996 = vmatpush1.msra.mxu0 0.0
  %997 = vmatprep.subr.mxu0 0.0
  %998 = vmatpush1.msra.mxu0 0.0
  %999 = vmatprep.subr.mxu0 0.0
  %1000 = vmatpush1.msra.mxu0 0.0
  %1001 = vmatprep.subr.mxu0 0.0
  %1002 = vmatpush1.msra.mxu0 0.0
  %1003 = vmatprep.subr.mxu0 0.0
  %1004 = vmatpush1.msra.mxu0 0.0
  %1005 = vmatprep.subr.mxu0 0.0
  %1006 = vmatpush1.msra.mxu0 0.0
  %1007 = vmatprep.subr.mxu0 0.0
  %1008 = vmatpush1.msra.mxu0 0.0
  %1009 = vmatprep.subr.mxu0 0.0
  %1010 = vmatpush1.msra.mxu0 0.0
  %1011 = vmatprep.subr.mxu0 0.0
  %1012 = vmatpush1.msra.mxu0 0.0
  %1013 = vmatprep.subr.mxu0 0.0
  %1014 = vmatpush1.msra.mxu0 0.0
  %1015 = vmatprep.subr.mxu0 0.0
  %1016 = vmatpush1.msra.mxu0 0.0
  %1017 = vmatprep.mubr.f32.mxu0 0.0
  %1018 = vmatmul.mubr.f32.gmra.mrb[0].mxu0 %v872
  %v1019 = vpop.f32.mrb[0].mxu0
  %v1020 = vadd.f32 0.0, %v1019
  %v1021 = vpop.f32.mrb[0].mxu0
  %v1022 = vadd.f32 0.0, %v1021
  %1023 = vdwg.mxu0
  %v1024 = vadd.f32 %v837, %v949
  %v1025 = vadd.f32 %v838, %v951
  %v1026 = vadd.f32 %v839, %v1020
  %v1027 = vadd.f32 %v840, %v1022
  %1028 = vrot.lane.b32.xlu0 %v26, 127
  %v1029 = vpop.permute.xlu0 %1028
  %1030 = vrot.lane.b32.xlu0 %v65, 127
  %v1031 = vpop.permute.xlu0 %1030
  %1032 = vrot.lane.b32.xlu0 %v27, 127
  %v1033 = vpop.permute.xlu0 %1032
  %1034 = vrot.lane.b32.xlu0 %v66, 127
  %v1035 = vpop.permute.xlu0 %1034
  %vm1036 = vcmp.lt.s32.totalorder %v78, 127
  %v1037 = vsel %vm1036, %v1033, %v1035
  %v1038 = vsel %vm1036, %v1031, %v1033
  %v1039 = vsel %vm1036, %v1029, %v1031
  %v1040 = vsel %vm1036, %v1035, %v1029
  %v1041 = vlaneseq
  %v1042 = vshrl.u32 %v1041, 7
  %v1043 = vsub.s32 5, %v1042
  %v1044 = vrot.slane %v46, %v1043
  %v1045 = vlaneseq
  %v1046 = vshrl.u32 %v1045, 7
  %v1047 = vsub.s32 5, %v1046
  %v1048 = vrot.slane %v47, %v1047
  %v1049 = vlaneseq
  %v1050 = vshrl.u32 %v1049, 7
  %v1051 = vsub.s32 5, %v1050
  %v1052 = vrot.slane %v48, %v1051
  %v1053 = vlaneseq
  %v1054 = vshrl.u32 %v1053, 7
  %v1055 = vsub.s32 5, %v1054
  %v1056 = vrot.slane %v49, %v1055
  %v1057 = vmul.f32 %v1039, %v1044
  %v1058 = vmul.f32 %v1038, %v1048
  %v1059 = vmul.f32 %v1037, %v1052
  %v1060 = vmul.f32 %v1040, %v1056
  %v1062 = vsel %vm137, %v33, 0
  %v1065 = vsel %vm141, %v1057, 0
  %v1068 = vsel %vm141, %v1058, 0
  %v1071 = vsel %vm141, %v1059, 0
  %v1074 = vsel %vm141, %v1060, 0
  %1076 = vmatprep.subr.mxu0 %v1068
  %1077 = vmatpush1.msra.mxu0 %v1065
  %1078 = vmatprep.subr.mxu0 0.0
  %1079 = vmatpush1.msra.mxu0 0.0
  %1080 = vmatprep.subr.mxu0 0.0
  %1081 = vmatpush1.msra.mxu0 0.0
  %1082 = vmatprep.subr.mxu0 0.0
  %1083 = vmatpush1.msra.mxu0 0.0
  %1084 = vmatprep.subr.mxu0 0.0
  %1085 = vmatpush1.msra.mxu0 0.0
  %1086 = vmatprep.subr.mxu0 0.0
  %1087 = vmatpush1.msra.mxu0 0.0
  %1088 = vmatprep.subr.mxu0 0.0
  %1089 = vmatpush1.msra.mxu0 0.0
  %1090 = vmatprep.subr.mxu0 0.0
  %1091 = vmatpush1.msra.mxu0 0.0
  %1092 = vmatprep.subr.mxu0 0.0
  %1093 = vmatpush1.msra.mxu0 0.0
  %1094 = vmatprep.subr.mxu0 0.0
  %1095 = vmatpush1.msra.mxu0 0.0
  %1096 = vmatprep.subr.mxu0 0.0
  %1097 = vmatpush1.msra.mxu0 0.0
  %1098 = vmatprep.subr.mxu0 0.0
  %1099 = vmatpush1.msra.mxu0 0.0
  %1100 = vmatprep.subr.mxu0 0.0
  %1101 = vmatpush1.msra.mxu0 0.0
  %1102 = vmatprep.subr.mxu0 0.0
  %1103 = vmatpush1.msra.mxu0 0.0
  %1104 = vmatprep.subr.mxu0 0.0
  %1105 = vmatpush1.msra.mxu0 0.0
  %1106 = vmatprep.subr.mxu0 0.0
  %1107 = vmatpush1.msra.mxu0 0.0
  %1108 = vmatprep.subr.mxu0 0.0
  %1109 = vmatpush1.msra.mxu0 0.0
  %1110 = vmatprep.subr.mxu0 0.0
  %1111 = vmatpush1.msra.mxu0 0.0
  %1112 = vmatprep.subr.mxu0 0.0
  %1113 = vmatpush1.msra.mxu0 0.0
  %1114 = vmatprep.subr.mxu0 0.0
  %1115 = vmatpush1.msra.mxu0 0.0
  %1116 = vmatprep.subr.mxu0 0.0
  %1117 = vmatpush1.msra.mxu0 0.0
  %1118 = vmatprep.subr.mxu0 0.0
  %1119 = vmatpush1.msra.mxu0 0.0
  %1120 = vmatprep.subr.mxu0 0.0
  %1121 = vmatpush1.msra.mxu0 0.0
  %1122 = vmatprep.subr.mxu0 0.0
  %1123 = vmatpush1.msra.mxu0 0.0
  %1124 = vmatprep.subr.mxu0 0.0
  %1125 = vmatpush1.msra.mxu0 0.0
  %1126 = vmatprep.subr.mxu0 0.0
  %1127 = vmatpush1.msra.mxu0 0.0
  %1128 = vmatprep.subr.mxu0 0.0
  %1129 = vmatpush1.msra.mxu0 0.0
  %1130 = vmatprep.subr.mxu0 0.0
  %1131 = vmatpush1.msra.mxu0 0.0
  %1132 = vmatprep.subr.mxu0 0.0
  %1133 = vmatpush1.msra.mxu0 0.0
  %1134 = vmatprep.subr.mxu0 0.0
  %1135 = vmatpush1.msra.mxu0 0.0
  %1136 = vmatprep.subr.mxu0 0.0
  %1137 = vmatpush1.msra.mxu0 0.0
  %1138 = vmatprep.subr.mxu0 0.0
  %1139 = vmatpush1.msra.mxu0 0.0
  %1140 = vmatprep.mubr.f32.mxu0 0.0
  %1141 = vmatmul.mubr.f32.gmra.mrb[0].mxu0 %v1062
  %v1142 = vpop.f32.mrb[0].mxu0
  %v1143 = vadd.f32 0.0, %v1142
  %v1144 = vpop.f32.mrb[0].mxu0
  %v1145 = vadd.f32 0.0, %v1144
  %1146 = vdwg.mxu0
  %1147 = vmatprep.subr.mxu0 %v1074
  %1148 = vmatpush1.msra.mxu0 %v1071
  %1149 = vmatprep.subr.mxu0 0.0
  %1150 = vmatpush1.msra.mxu0 0.0
  %1151 = vmatprep.subr.mxu0 0.0
  %1152 = vmatpush1.msra.mxu0 0.0
  %1153 = vmatprep.subr.mxu0 0.0
  %1154 = vmatpush1.msra.mxu0 0.0
  %1155 = vmatprep.subr.mxu0 0.0
  %1156 = vmatpush1.msra.mxu0 0.0
  %1157 = vmatprep.subr.mxu0 0.0
  %1158 = vmatpush1.msra.mxu0 0.0
  %1159 = vmatprep.subr.mxu0 0.0
  %1160 = vmatpush1.msra.mxu0 0.0
  %1161 = vmatprep.subr.mxu0 0.0
  %1162 = vmatpush1.msra.mxu0 0.0
  %1163 = vmatprep.subr.mxu0 0.0
  %1164 = vmatpush1.msra.mxu0 0.0
  %1165 = vmatprep.subr.mxu0 0.0
  %1166 = vmatpush1.msra.mxu0 0.0
  %1167 = vmatprep.subr.mxu0 0.0
  %1168 = vmatpush1.msra.mxu0 0.0
  %1169 = vmatprep.subr.mxu0 0.0
  %1170 = vmatpush1.msra.mxu0 0.0
  %1171 = vmatprep.subr.mxu0 0.0
  %1172 = vmatpush1.msra.mxu0 0.0
  %1173 = vmatprep.subr.mxu0 0.0
  %1174 = vmatpush1.msra.mxu0 0.0
  %1175 = vmatprep.subr.mxu0 0.0
  %1176 = vmatpush1.msra.mxu0 0.0
  %1177 = vmatprep.subr.mxu0 0.0
  %1178 = vmatpush1.msra.mxu0 0.0
  %1179 = vmatprep.subr.mxu0 0.0
  %1180 = vmatpush1.msra.mxu0 0.0
  %1181 = vmatprep.subr.mxu0 0.0
  %1182 = vmatpush1.msra.mxu0 0.0
  %1183 = vmatprep.subr.mxu0 0.0
  %1184 = vmatpush1.msra.mxu0 0.0
  %1185 = vmatprep.subr.mxu0 0.0
  %1186 = vmatpush1.msra.mxu0 0.0
  %1187 = vmatprep.subr.mxu0 0.0
  %1188 = vmatpush1.msra.mxu0 0.0
  %1189 = vmatprep.subr.mxu0 0.0
  %1190 = vmatpush1.msra.mxu0 0.0
  %1191 = vmatprep.subr.mxu0 0.0
  %1192 = vmatpush1.msra.mxu0 0.0
  %1193 = vmatprep.subr.mxu0 0.0
  %1194 = vmatpush1.msra.mxu0 0.0
  %1195 = vmatprep.subr.mxu0 0.0
  %1196 = vmatpush1.msra.mxu0 0.0
  %1197 = vmatprep.subr.mxu0 0.0
  %1198 = vmatpush1.msra.mxu0 0.0
  %1199 = vmatprep.subr.mxu0 0.0
  %1200 = vmatpush1.msra.mxu0 0.0
  %1201 = vmatprep.subr.mxu0 0.0
  %1202 = vmatpush1.msra.mxu0 0.0
  %1203 = vmatprep.subr.mxu0 0.0
  %1204 = vmatpush1.msra.mxu0 0.0
  %1205 = vmatprep.subr.mxu0 0.0
  %1206 = vmatpush1.msra.mxu0 0.0
  %1207 = vmatprep.subr.mxu0 0.0
  %1208 = vmatpush1.msra.mxu0 0.0
  %1209 = vmatprep.subr.mxu0 0.0
  %1210 = vmatpush1.msra.mxu0 0.0
  %1211 = vmatprep.mubr.f32.mxu0 0.0
  %1212 = vmatmul.mubr.f32.gmra.mrb[0].mxu0 %v1062
  %v1213 = vpop.f32.mrb[0].mxu0
  %v1214 = vadd.f32 0.0, %v1213
  %v1215 = vpop.f32.mrb[0].mxu0
  %v1216 = vadd.f32 0.0, %v1215
  %1217 = vdwg.mxu0
  %v1218 = vadd.f32 %v1024, %v1143
  %v1219 = vadd.f32 %v1025, %v1145
  %v1220 = vadd.f32 %v1026, %v1214
  %v1221 = vadd.f32 %v1027, %v1216
  %1222 = vrot.lane.b32.xlu0 %v26, 113
  %v1223 = vpop.permute.xlu0 %1222
  %1224 = vrot.lane.b32.xlu0 %v65, 113
  %v1225 = vpop.permute.xlu0 %1224
  %1226 = vrot.lane.b32.xlu0 %v27, 113
  %v1227 = vpop.permute.xlu0 %1226
  %1228 = vrot.lane.b32.xlu0 %v66, 113
  %v1229 = vpop.permute.xlu0 %1228
  %vm1230 = vcmp.lt.s32.totalorder %v78, 113
  %v1231 = vsel %vm1230, %v1227, %v1229
  %v1232 = vsel %vm1230, %v1225, %v1227
  %v1233 = vsel %vm1230, %v1223, %v1225
  %v1234 = vsel %vm1230, %v1229, %v1223
  %v1235 = vlaneseq
  %v1236 = vshrl.u32 %v1235, 7
  %v1237 = vsub.s32 6, %v1236
  %v1238 = vrot.slane %v46, %v1237
  %v1239 = vlaneseq
  %v1240 = vshrl.u32 %v1239, 7
  %v1241 = vsub.s32 6, %v1240
  %v1242 = vrot.slane %v47, %v1241
  %v1243 = vlaneseq
  %v1244 = vshrl.u32 %v1243, 7
  %v1245 = vsub.s32 6, %v1244
  %v1246 = vrot.slane %v48, %v1245
  %v1247 = vlaneseq
  %v1248 = vshrl.u32 %v1247, 7
  %v1249 = vsub.s32 6, %v1248
  %v1250 = vrot.slane %v49, %v1249
  %v1251 = vmul.f32 %v1233, %v1238
  %v1252 = vmul.f32 %v1232, %v1242
  %v1253 = vmul.f32 %v1231, %v1246
  %v1254 = vmul.f32 %v1234, %v1250
  %v1256 = vsel %vm137, %v34, 0
  %v1259 = vsel %vm141, %v1251, 0
  %v1262 = vsel %vm141, %v1252, 0
  %v1265 = vsel %vm141, %v1253, 0
  %v1268 = vsel %vm141, %v1254, 0
  %1270 = vmatprep.subr.mxu0 %v1262
  %1271 = vmatpush1.msra.mxu0 %v1259
  %1272 = vmatprep.subr.mxu0 0.0
  %1273 = vmatpush1.msra.mxu0 0.0
  %1274 = vmatprep.subr.mxu0 0.0
  %1275 = vmatpush1.msra.mxu0 0.0
  %1276 = vmatprep.subr.mxu0 0.0
  %1277 = vmatpush1.msra.mxu0 0.0
  %1278 = vmatprep.subr.mxu0 0.0
  %1279 = vmatpush1.msra.mxu0 0.0
  %1280 = vmatprep.subr.mxu0 0.0
  %1281 = vmatpush1.msra.mxu0 0.0
  %1282 = vmatprep.subr.mxu0 0.0
  %1283 = vmatpush1.msra.mxu0 0.0
  %1284 = vmatprep.subr.mxu0 0.0
  %1285 = vmatpush1.msra.mxu0 0.0
  %1286 = vmatprep.subr.mxu0 0.0
  %1287 = vmatpush1.msra.mxu0 0.0
  %1288 = vmatprep.subr.mxu0 0.0
  %1289 = vmatpush1.msra.mxu0 0.0
  %1290 = vmatprep.subr.mxu0 0.0
  %1291 = vmatpush1.msra.mxu0 0.0
  %1292 = vmatprep.subr.mxu0 0.0
  %1293 = vmatpush1.msra.mxu0 0.0
  %1294 = vmatprep.subr.mxu0 0.0
  %1295 = vmatpush1.msra.mxu0 0.0
  %1296 = vmatprep.subr.mxu0 0.0
  %1297 = vmatpush1.msra.mxu0 0.0
  %1298 = vmatprep.subr.mxu0 0.0
  %1299 = vmatpush1.msra.mxu0 0.0
  %1300 = vmatprep.subr.mxu0 0.0
  %1301 = vmatpush1.msra.mxu0 0.0
  %1302 = vmatprep.subr.mxu0 0.0
  %1303 = vmatpush1.msra.mxu0 0.0
  %1304 = vmatprep.subr.mxu0 0.0
  %1305 = vmatpush1.msra.mxu0 0.0
  %1306 = vmatprep.subr.mxu0 0.0
  %1307 = vmatpush1.msra.mxu0 0.0
  %1308 = vmatprep.subr.mxu0 0.0
  %1309 = vmatpush1.msra.mxu0 0.0
  %1310 = vmatprep.subr.mxu0 0.0
  %1311 = vmatpush1.msra.mxu0 0.0
  %1312 = vmatprep.subr.mxu0 0.0
  %1313 = vmatpush1.msra.mxu0 0.0
  %1314 = vmatprep.subr.mxu0 0.0
  %1315 = vmatpush1.msra.mxu0 0.0
  %1316 = vmatprep.subr.mxu0 0.0
  %1317 = vmatpush1.msra.mxu0 0.0
  %1318 = vmatprep.subr.mxu0 0.0
  %1319 = vmatpush1.msra.mxu0 0.0
  %1320 = vmatprep.subr.mxu0 0.0
  %1321 = vmatpush1.msra.mxu0 0.0
  %1322 = vmatprep.subr.mxu0 0.0
  %1323 = vmatpush1.msra.mxu0 0.0
  %1324 = vmatprep.subr.mxu0 0.0
  %1325 = vmatpush1.msra.mxu0 0.0
  %1326 = vmatprep.subr.mxu0 0.0
  %1327 = vmatpush1.msra.mxu0 0.0
  %1328 = vmatprep.subr.mxu0 0.0
  %1329 = vmatpush1.msra.mxu0 0.0
  %1330 = vmatprep.subr.mxu0 0.0
  %1331 = vmatpush1.msra.mxu0 0.0
  %1332 = vmatprep.subr.mxu0 0.0
  %1333 = vmatpush1.msra.mxu0 0.0
  %1334 = vmatprep.mubr.f32.mxu0 0.0
  %1335 = vmatmul.mubr.f32.gmra.mrb[0].mxu0 %v1256
  %v1336 = vpop.f32.mrb[0].mxu0
  %v1337 = vadd.f32 0.0, %v1336
  %v1338 = vpop.f32.mrb[0].mxu0
  %v1339 = vadd.f32 0.0, %v1338
  %1340 = vdwg.mxu0
  %1341 = vmatprep.subr.mxu0 %v1268
  %1342 = vmatpush1.msra.mxu0 %v1265
  %1343 = vmatprep.subr.mxu0 0.0
  %1344 = vmatpush1.msra.mxu0 0.0
  %1345 = vmatprep.subr.mxu0 0.0
  %1346 = vmatpush1.msra.mxu0 0.0
  %1347 = vmatprep.subr.mxu0 0.0
  %1348 = vmatpush1.msra.mxu0 0.0
  %1349 = vmatprep.subr.mxu0 0.0
  %1350 = vmatpush1.msra.mxu0 0.0
  %1351 = vmatprep.subr.mxu0 0.0
  %1352 = vmatpush1.msra.mxu0 0.0
  %1353 = vmatprep.subr.mxu0 0.0
  %1354 = vmatpush1.msra.mxu0 0.0
  %1355 = vmatprep.subr.mxu0 0.0
  %1356 = vmatpush1.msra.mxu0 0.0
  %1357 = vmatprep.subr.mxu0 0.0
  %1358 = vmatpush1.msra.mxu0 0.0
  %1359 = vmatprep.subr.mxu0 0.0
  %1360 = vmatpush1.msra.mxu0 0.0
  %1361 = vmatprep.subr.mxu0 0.0
  %1362 = vmatpush1.msra.mxu0 0.0
  %1363 = vmatprep.subr.mxu0 0.0
  %1364 = vmatpush1.msra.mxu0 0.0
  %1365 = vmatprep.subr.mxu0 0.0
  %1366 = vmatpush1.msra.mxu0 0.0
  %1367 = vmatprep.subr.mxu0 0.0
  %1368 = vmatpush1.msra.mxu0 0.0
  %1369 = vmatprep.subr.mxu0 0.0
  %1370 = vmatpush1.msra.mxu0 0.0
  %1371 = vmatprep.subr.mxu0 0.0
  %1372 = vmatpush1.msra.mxu0 0.0
  %1373 = vmatprep.subr.mxu0 0.0
  %1374 = vmatpush1.msra.mxu0 0.0
  %1375 = vmatprep.subr.mxu0 0.0
  %1376 = vmatpush1.msra.mxu0 0.0
  %1377 = vmatprep.subr.mxu0 0.0
  %1378 = vmatpush1.msra.mxu0 0.0
  %1379 = vmatprep.subr.mxu0 0.0
  %1380 = vmatpush1.msra.mxu0 0.0
  %1381 = vmatprep.subr.mxu0 0.0
  %1382 = vmatpush1.msra.mxu0 0.0
  %1383 = vmatprep.subr.mxu0 0.0
  %1384 = vmatpush1.msra.mxu0 0.0
  %1385 = vmatprep.subr.mxu0 0.0
  %1386 = vmatpush1.msra.mxu0 0.0
  %1387 = vmatprep.subr.mxu0 0.0
  %1388 = vmatpush1.msra.mxu0 0.0
  %1389 = vmatprep.subr.mxu0 0.0
  %1390 = vmatpush1.msra.mxu0 0.0
  %1391 = vmatprep.subr.mxu0 0.0
  %1392 = vmatpush1.msra.mxu0 0.0
  %1393 = vmatprep.subr.mxu0 0.0
  %1394 = vmatpush1.msra.mxu0 0.0
  %1395 = vmatprep.subr.mxu0 0.0
  %1396 = vmatpush1.msra.mxu0 0.0
  %1397 = vmatprep.subr.mxu0 0.0
  %1398 = vmatpush1.msra.mxu0 0.0
  %1399 = vmatprep.subr.mxu0 0.0
  %1400 = vmatpush1.msra.mxu0 0.0
  %1401 = vmatprep.subr.mxu0 0.0
  %1402 = vmatpush1.msra.mxu0 0.0
  %1403 = vmatprep.subr.mxu0 0.0
  %1404 = vmatpush1.msra.mxu0 0.0
  %1405 = vmatprep.mubr.f32.mxu0 0.0
  %1406 = vmatmul.mubr.f32.gmra.mrb[0].mxu0 %v1256
  %v1407 = vpop.f32.mrb[0].mxu0
  %v1408 = vadd.f32 0.0, %v1407
  %v1409 = vpop.f32.mrb[0].mxu0
  %v1410 = vadd.f32 0.0, %v1409
  %1411 = vdwg.mxu0
  %v1412 = vadd.f32 %v1218, %v1337
  %v1413 = vadd.f32 %v1219, %v1339
  %v1414 = vadd.f32 %v1220, %v1408
  %v1415 = vadd.f32 %v1221, %v1410
  %1416 = vrot.lane.b32.xlu0 %v26, 112
  %v1417 = vpop.permute.xlu0 %1416
  %1418 = vrot.lane.b32.xlu0 %v65, 112
  %v1419 = vpop.permute.xlu0 %1418
  %1420 = vrot.lane.b32.xlu0 %v27, 112
  %v1421 = vpop.permute.xlu0 %1420
  %1422 = vrot.lane.b32.xlu0 %v66, 112
  %v1423 = vpop.permute.xlu0 %1422
  %vm1424 = vcmp.lt.s32.totalorder %v78, 112
  %v1425 = vsel %vm1424, %v1421, %v1423
  %v1426 = vsel %vm1424, %v1419, %v1421
  %v1427 = vsel %vm1424, %v1417, %v1419
  %v1428 = vsel %vm1424, %v1423, %v1417
  %v1429 = vlaneseq
  %v1430 = vshrl.u32 %v1429, 7
  %v1431 = vsub.s32 7, %v1430
  %v1432 = vrot.slane %v46, %v1431
  %v1433 = vlaneseq
  %v1434 = vshrl.u32 %v1433, 7
  %v1435 = vsub.s32 7, %v1434
  %v1436 = vrot.slane %v47, %v1435
  %v1437 = vlaneseq
  %v1438 = vshrl.u32 %v1437, 7
  %v1439 = vsub.s32 7, %v1438
  %v1440 = vrot.slane %v48, %v1439
  %v1441 = vlaneseq
  %v1442 = vshrl.u32 %v1441, 7
  %v1443 = vsub.s32 7, %v1442
  %v1444 = vrot.slane %v49, %v1443
  %v1445 = vmul.f32 %v1427, %v1432
  %v1446 = vmul.f32 %v1426, %v1436
  %v1447 = vmul.f32 %v1425, %v1440
  %v1448 = vmul.f32 %v1428, %v1444
  %v1450 = vsel %vm137, %v35, 0
  %v1453 = vsel %vm141, %v1445, 0
  %v1456 = vsel %vm141, %v1446, 0
  %v1459 = vsel %vm141, %v1447, 0
  %v1462 = vsel %vm141, %v1448, 0
  %1464 = vmatprep.subr.mxu0 %v1456
  %1465 = vmatpush1.msra.mxu0 %v1453
  %1466 = vmatprep.subr.mxu0 0.0
  %1467 = vmatpush1.msra.mxu0 0.0
  %1468 = vmatprep.subr.mxu0 0.0
  %1469 = vmatpush1.msra.mxu0 0.0
  %1470 = vmatprep.subr.mxu0 0.0
  %1471 = vmatpush1.msra.mxu0 0.0
  %1472 = vmatprep.subr.mxu0 0.0
  %1473 = vmatpush1.msra.mxu0 0.0
  %1474 = vmatprep.subr.mxu0 0.0
  %1475 = vmatpush1.msra.mxu0 0.0
  %1476 = vmatprep.subr.mxu0 0.0
  %1477 = vmatpush1.msra.mxu0 0.0
  %1478 = vmatprep.subr.mxu0 0.0
  %1479 = vmatpush1.msra.mxu0 0.0
  %1480 = vmatprep.subr.mxu0 0.0
  %1481 = vmatpush1.msra.mxu0 0.0
  %1482 = vmatprep.subr.mxu0 0.0
  %1483 = vmatpush1.msra.mxu0 0.0
  %1484 = vmatprep.subr.mxu0 0.0
  %1485 = vmatpush1.msra.mxu0 0.0
  %1486 = vmatprep.subr.mxu0 0.0
  %1487 = vmatpush1.msra.mxu0 0.0
  %1488 = vmatprep.subr.mxu0 0.0
  %1489 = vmatpush1.msra.mxu0 0.0
  %1490 = vmatprep.subr.mxu0 0.0
  %1491 = vmatpush1.msra.mxu0 0.0
  %1492 = vmatprep.subr.mxu0 0.0
  %1493 = vmatpush1.msra.mxu0 0.0
  %1494 = vmatprep.subr.mxu0 0.0
  %1495 = vmatpush1.msra.mxu0 0.0
  %1496 = vmatprep.subr.mxu0 0.0
  %1497 = vmatpush1.msra.mxu0 0.0
  %1498 = vmatprep.subr.mxu0 0.0
  %1499 = vmatpush1.msra.mxu0 0.0
  %1500 = vmatprep.subr.mxu0 0.0
  %1501 = vmatpush1.msra.mxu0 0.0
  %1502 = vmatprep.subr.mxu0 0.0
  %1503 = vmatpush1.msra.mxu0 0.0
  %1504 = vmatprep.subr.mxu0 0.0
  %1505 = vmatpush1.msra.mxu0 0.0
  %1506 = vmatprep.subr.mxu0 0.0
  %1507 = vmatpush1.msra.mxu0 0.0
  %1508 = vmatprep.subr.mxu0 0.0
  %1509 = vmatpush1.msra.mxu0 0.0
  %1510 = vmatprep.subr.mxu0 0.0
  %1511 = vmatpush1.msra.mxu0 0.0
  %1512 = vmatprep.subr.mxu0 0.0
  %1513 = vmatpush1.msra.mxu0 0.0
  %1514 = vmatprep.subr.mxu0 0.0
  %1515 = vmatpush1.msra.mxu0 0.0
  %1516 = vmatprep.subr.mxu0 0.0
  %1517 = vmatpush1.msra.mxu0 0.0
  %1518 = vmatprep.subr.mxu0 0.0
  %1519 = vmatpush1.msra.mxu0 0.0
  %1520 = vmatprep.subr.mxu0 0.0
  %1521 = vmatpush1.msra.mxu0 0.0
  %1522 = vmatprep.subr.mxu0 0.0
  %1523 = vmatpush1.msra.mxu0 0.0
  %1524 = vmatprep.subr.mxu0 0.0
  %1525 = vmatpush1.msra.mxu0 0.0
  %1526 = vmatprep.subr.mxu0 0.0
  %1527 = vmatpush1.msra.mxu0 0.0
  %1528 = vmatprep.mubr.f32.mxu0 0.0
  %1529 = vmatmul.mubr.f32.gmra.mrb[0].mxu0 %v1450
  %v1530 = vpop.f32.mrb[0].mxu0
  %v1531 = vadd.f32 0.0, %v1530
  %v1532 = vpop.f32.mrb[0].mxu0
  %v1533 = vadd.f32 0.0, %v1532
  %1534 = vdwg.mxu0
  %1535 = vmatprep.subr.mxu0 %v1462
  %1536 = vmatpush1.msra.mxu0 %v1459
  %1537 = vmatprep.subr.mxu0 0.0
  %1538 = vmatpush1.msra.mxu0 0.0
  %1539 = vmatprep.subr.mxu0 0.0
  %1540 = vmatpush1.msra.mxu0 0.0
  %1541 = vmatprep.subr.mxu0 0.0
  %1542 = vmatpush1.msra.mxu0 0.0
  %1543 = vmatprep.subr.mxu0 0.0
  %1544 = vmatpush1.msra.mxu0 0.0
  %1545 = vmatprep.subr.mxu0 0.0
  %1546 = vmatpush1.msra.mxu0 0.0
  %1547 = vmatprep.subr.mxu0 0.0
  %1548 = vmatpush1.msra.mxu0 0.0
  %1549 = vmatprep.subr.mxu0 0.0
  %1550 = vmatpush1.msra.mxu0 0.0
  %1551 = vmatprep.subr.mxu0 0.0
  %1552 = vmatpush1.msra.mxu0 0.0
  %1553 = vmatprep.subr.mxu0 0.0
  %1554 = vmatpush1.msra.mxu0 0.0
  %1555 = vmatprep.subr.mxu0 0.0
  %1556 = vmatpush1.msra.mxu0 0.0
  %1557 = vmatprep.subr.mxu0 0.0
  %1558 = vmatpush1.msra.mxu0 0.0
  %1559 = vmatprep.subr.mxu0 0.0
  %1560 = vmatpush1.msra.mxu0 0.0
  %1561 = vmatprep.subr.mxu0 0.0
  %1562 = vmatpush1.msra.mxu0 0.0
  %1563 = vmatprep.subr.mxu0 0.0
  %1564 = vmatpush1.msra.mxu0 0.0
  %1565 = vmatprep.subr.mxu0 0.0
  %1566 = vmatpush1.msra.mxu0 0.0
  %1567 = vmatprep.subr.mxu0 0.0
  %1568 = vmatpush1.msra.mxu0 0.0
  %1569 = vmatprep.subr.mxu0 0.0
  %1570 = vmatpush1.msra.mxu0 0.0
  %1571 = vmatprep.subr.mxu0 0.0
  %1572 = vmatpush1.msra.mxu0 0.0
  %1573 = vmatprep.subr.mxu0 0.0
  %1574 = vmatpush1.msra.mxu0 0.0
  %1575 = vmatprep.subr.mxu0 0.0
  %1576 = vmatpush1.msra.mxu0 0.0
  %1577 = vmatprep.subr.mxu0 0.0
  %1578 = vmatpush1.msra.mxu0 0.0
  %1579 = vmatprep.subr.mxu0 0.0
  %1580 = vmatpush1.msra.mxu0 0.0
  %1581 = vmatprep.subr.mxu0 0.0
  %1582 = vmatpush1.msra.mxu0 0.0
  %1583 = vmatprep.subr.mxu0 0.0
  %1584 = vmatpush1.msra.mxu0 0.0
  %1585 = vmatprep.subr.mxu0 0.0
  %1586 = vmatpush1.msra.mxu0 0.0
  %1587 = vmatprep.subr.mxu0 0.0
  %1588 = vmatpush1.msra.mxu0 0.0
  %1589 = vmatprep.subr.mxu0 0.0
  %1590 = vmatpush1.msra.mxu0 0.0
  %1591 = vmatprep.subr.mxu0 0.0
  %1592 = vmatpush1.msra.mxu0 0.0
  %1593 = vmatprep.subr.mxu0 0.0
  %1594 = vmatpush1.msra.mxu0 0.0
  %1595 = vmatprep.subr.mxu0 0.0
  %1596 = vmatpush1.msra.mxu0 0.0
  %1597 = vmatprep.subr.mxu0 0.0
  %1598 = vmatpush1.msra.mxu0 0.0
  %1599 = vmatprep.mubr.f32.mxu0 0.0
  %1600 = vmatmul.mubr.f32.gmra.mrb[0].mxu0 %v1450
  %v1601 = vpop.f32.mrb[0].mxu0
  %v1602 = vadd.f32 0.0, %v1601
  %v1603 = vpop.f32.mrb[0].mxu0
  %v1604 = vadd.f32 0.0, %v1603
  %1605 = vdwg.mxu0
  %v1606 = vadd.f32 %v1412, %v1531
  %v1607 = vadd.f32 %v1413, %v1533
  %v1608 = vadd.f32 %v1414, %v1602
  %v1609 = vadd.f32 %v1415, %v1604
  %1610 = vrot.lane.b32.xlu0 %v26, 111
  %v1611 = vpop.permute.xlu0 %1610
  %1612 = vrot.lane.b32.xlu0 %v65, 111
  %v1613 = vpop.permute.xlu0 %1612
  %1614 = vrot.lane.b32.xlu0 %v27, 111
  %v1615 = vpop.permute.xlu0 %1614
  %1616 = vrot.lane.b32.xlu0 %v66, 111
  %v1617 = vpop.permute.xlu0 %1616
  %vm1618 = vcmp.lt.s32.totalorder %v78, 111
  %v1619 = vsel %vm1618, %v1615, %v1617
  %v1620 = vsel %vm1618, %v1613, %v1615
  %v1621 = vsel %vm1618, %v1611, %v1613
  %v1622 = vsel %vm1618, %v1617, %v1611
  %v1623 = vlaneseq
  %v1624 = vshrl.u32 %v1623, 7
  %v1625 = vsub.s32 0, %v1624
  %v1626 = vrot.slane %v50, %v1625
  %v1627 = vlaneseq
  %v1628 = vshrl.u32 %v1627, 7
  %v1629 = vsub.s32 0, %v1628
  %v1630 = vrot.slane %v51, %v1629
  %v1631 = vlaneseq
  %v1632 = vshrl.u32 %v1631, 7
  %v1633 = vsub.s32 0, %v1632
  %v1634 = vrot.slane %v52, %v1633
  %v1635 = vlaneseq
  %v1636 = vshrl.u32 %v1635, 7
  %v1637 = vsub.s32 0, %v1636
  %v1638 = vrot.slane %v53, %v1637
  %v1639 = vmul.f32 %v1621, %v1626
  %v1640 = vmul.f32 %v1620, %v1630
  %v1641 = vmul.f32 %v1619, %v1634
  %v1642 = vmul.f32 %v1622, %v1638
  %v1644 = vsel %vm137, %v36, 0
  %v1647 = vsel %vm141, %v1639, 0
  %v1650 = vsel %vm141, %v1640, 0
  %v1653 = vsel %vm141, %v1641, 0
  %v1656 = vsel %vm141, %v1642, 0
  %1658 = vmatprep.subr.mxu0 %v1650
  %1659 = vmatpush1.msra.mxu0 %v1647
  %1660 = vmatprep.subr.mxu0 0.0
  %1661 = vmatpush1.msra.mxu0 0.0
  %1662 = vmatprep.subr.mxu0 0.0
  %1663 = vmatpush1.msra.mxu0 0.0
  %1664 = vmatprep.subr.mxu0 0.0
  %1665 = vmatpush1.msra.mxu0 0.0
  %1666 = vmatprep.subr.mxu0 0.0
  %1667 = vmatpush1.msra.mxu0 0.0
  %1668 = vmatprep.subr.mxu0 0.0
  %1669 = vmatpush1.msra.mxu0 0.0
  %1670 = vmatprep.subr.mxu0 0.0
  %1671 = vmatpush1.msra.mxu0 0.0
  %1672 = vmatprep.subr.mxu0 0.0
  %1673 = vmatpush1.msra.mxu0 0.0
  %1674 = vmatprep.subr.mxu0 0.0
  %1675 = vmatpush1.msra.mxu0 0.0
  %1676 = vmatprep.subr.mxu0 0.0
  %1677 = vmatpush1.msra.mxu0 0.0
  %1678 = vmatprep.subr.mxu0 0.0
  %1679 = vmatpush1.msra.mxu0 0.0
  %1680 = vmatprep.subr.mxu0 0.0
  %1681 = vmatpush1.msra.mxu0 0.0
  %1682 = vmatprep.subr.mxu0 0.0
  %1683 = vmatpush1.msra.mxu0 0.0
  %1684 = vmatprep.subr.mxu0 0.0
  %1685 = vmatpush1.msra.mxu0 0.0
  %1686 = vmatprep.subr.mxu0 0.0
  %1687 = vmatpush1.msra.mxu0 0.0
  %1688 = vmatprep.subr.mxu0 0.0
  %1689 = vmatpush1.msra.mxu0 0.0
  %1690 = vmatprep.subr.mxu0 0.0
  %1691 = vmatpush1.msra.mxu0 0.0
  %1692 = vmatprep.subr.mxu0 0.0
  %1693 = vmatpush1.msra.mxu0 0.0
  %1694 = vmatprep.subr.mxu0 0.0
  %1695 = vmatpush1.msra.mxu0 0.0
  %1696 = vmatprep.subr.mxu0 0.0
  %1697 = vmatpush1.msra.mxu0 0.0
  %1698 = vmatprep.subr.mxu0 0.0
  %1699 = vmatpush1.msra.mxu0 0.0
  %1700 = vmatprep.subr.mxu0 0.0
  %1701 = vmatpush1.msra.mxu0 0.0
  %1702 = vmatprep.subr.mxu0 0.0
  %1703 = vmatpush1.msra.mxu0 0.0
  %1704 = vmatprep.subr.mxu0 0.0
  %1705 = vmatpush1.msra.mxu0 0.0
  %1706 = vmatprep.subr.mxu0 0.0
  %1707 = vmatpush1.msra.mxu0 0.0
  %1708 = vmatprep.subr.mxu0 0.0
  %1709 = vmatpush1.msra.mxu0 0.0
  %1710 = vmatprep.subr.mxu0 0.0
  %1711 = vmatpush1.msra.mxu0 0.0
  %1712 = vmatprep.subr.mxu0 0.0
  %1713 = vmatpush1.msra.mxu0 0.0
  %1714 = vmatprep.subr.mxu0 0.0
  %1715 = vmatpush1.msra.mxu0 0.0
  %1716 = vmatprep.subr.mxu0 0.0
  %1717 = vmatpush1.msra.mxu0 0.0
  %1718 = vmatprep.subr.mxu0 0.0
  %1719 = vmatpush1.msra.mxu0 0.0
  %1720 = vmatprep.subr.mxu0 0.0
  %1721 = vmatpush1.msra.mxu0 0.0
  %1722 = vmatprep.mubr.f32.mxu0 0.0
  %1723 = vmatmul.mubr.f32.gmra.mrb[0].mxu0 %v1644
  %v1724 = vpop.f32.mrb[0].mxu0
  %v1725 = vadd.f32 0.0, %v1724
  %v1726 = vpop.f32.mrb[0].mxu0
  %v1727 = vadd.f32 0.0, %v1726
  %1728 = vdwg.mxu0
  %1729 = vmatprep.subr.mxu0 %v1656
  %1730 = vmatpush1.msra.mxu0 %v1653
  %1731 = vmatprep.subr.mxu0 0.0
  %1732 = vmatpush1.msra.mxu0 0.0
  %1733 = vmatprep.subr.mxu0 0.0
  %1734 = vmatpush1.msra.mxu0 0.0
  %1735 = vmatprep.subr.mxu0 0.0
  %1736 = vmatpush1.msra.mxu0 0.0
  %1737 = vmatprep.subr.mxu0 0.0
  %1738 = vmatpush1.msra.mxu0 0.0
  %1739 = vmatprep.subr.mxu0 0.0
  %1740 = vmatpush1.msra.mxu0 0.0
  %1741 = vmatprep.subr.mxu0 0.0
  %1742 = vmatpush1.msra.mxu0 0.0
  %1743 = vmatprep.subr.mxu0 0.0
  %1744 = vmatpush1.msra.mxu0 0.0
  %1745 = vmatprep.subr.mxu0 0.0
  %1746 = vmatpush1.msra.mxu0 0.0
  %1747 = vmatprep.subr.mxu0 0.0
  %1748 = vmatpush1.msra.mxu0 0.0
  %1749 = vmatprep.subr.mxu0 0.0
  %1750 = vmatpush1.msra.mxu0 0.0
  %1751 = vmatprep.subr.mxu0 0.0
  %1752 = vmatpush1.msra.mxu0 0.0
  %1753 = vmatprep.subr.mxu0 0.0
  %1754 = vmatpush1.msra.mxu0 0.0
  %1755 = vmatprep.subr.mxu0 0.0
  %1756 = vmatpush1.msra.mxu0 0.0
  %1757 = vmatprep.subr.mxu0 0.0
  %1758 = vmatpush1.msra.mxu0 0.0
  %1759 = vmatprep.subr.mxu0 0.0
  %1760 = vmatpush1.msra.mxu0 0.0
  %1761 = vmatprep.subr.mxu0 0.0
  %1762 = vmatpush1.msra.mxu0 0.0
  %1763 = vmatprep.subr.mxu0 0.0
  %1764 = vmatpush1.msra.mxu0 0.0
  %1765 = vmatprep.subr.mxu0 0.0
  %1766 = vmatpush1.msra.mxu0 0.0
  %1767 = vmatprep.subr.mxu0 0.0
  %1768 = vmatpush1.msra.mxu0 0.0
  %1769 = vmatprep.subr.mxu0 0.0
  %1770 = vmatpush1.msra.mxu0 0.0
  %1771 = vmatprep.subr.mxu0 0.0
  %1772 = vmatpush1.msra.mxu0 0.0
  %1773 = vmatprep.subr.mxu0 0.0
  %1774 = vmatpush1.msra.mxu0 0.0
  %1775 = vmatprep.subr.mxu0 0.0
  %1776 = vmatpush1.msra.mxu0 0.0
  %1777 = vmatprep.subr.mxu0 0.0
  %1778 = vmatpush1.msra.mxu0 0.0
  %1779 = vmatprep.subr.mxu0 0.0
  %1780 = vmatpush1.msra.mxu0 0.0
  %1781 = vmatprep.subr.mxu0 0.0
  %1782 = vmatpush1.msra.mxu0 0.0
  %1783 = vmatprep.subr.mxu0 0.0
  %1784 = vmatpush1.msra.mxu0 0.0
  %1785 = vmatprep.subr.mxu0 0.0
  %1786 = vmatpush1.msra.mxu0 0.0
  %1787 = vmatprep.subr.mxu0 0.0
  %1788 = vmatpush1.msra.mxu0 0.0
  %1789 = vmatprep.subr.mxu0 0.0
  %1790 = vmatpush1.msra.mxu0 0.0
  %1791 = vmatprep.subr.mxu0 0.0
  %1792 = vmatpush1.msra.mxu0 0.0
  %1793 = vmatprep.mubr.f32.mxu0 0.0
  %1794 = vmatmul.mubr.f32.gmra.mrb[0].mxu0 %v1644
  %v1795 = vpop.f32.mrb[0].mxu0
  %v1796 = vadd.f32 0.0, %v1795
  %v1797 = vpop.f32.mrb[0].mxu0
  %v1798 = vadd.f32 0.0, %v1797
  %1799 = vdwg.mxu0
  %v1800 = vadd.f32 %v1606, %v1725
  %v1801 = vadd.f32 %v1607, %v1727
  %v1802 = vadd.f32 %v1608, %v1796
  %v1803 = vadd.f32 %v1609, %v1798
  %1805 = vset.pattern.permute.xlu0 0
  %1806 = vperm.xlu0 %1805, %v62
  %v1807 = vpop.permute.xlu0 %1806
  %v1809 = vadd.f32 %v1800, %v1807
  %v1810 = vadd.f32 %v1801, %v1807
  %v1811 = vadd.f32 %v1802, %v1807
  %v1812 = vadd.f32 %v1803, %v1807
  %v1813 = vmax.f32 %v1809, 0.0
  %v1814 = vmax.f32 %v1810, 0.0
  %v1815 = vmax.f32 %v1811, 0.0
  %v1816 = vmax.f32 %v1812, 0.0
  %v1817 = vsel %vm141, %v1813, 0.0
  %v1818 = vsel %vm141, %v1814, 0.0
  %v1819 = vadd.f32 %v1817, %v1818
  %v1820 = vsel %vm141, %v1815, 0.0
  %v1821 = vadd.f32 %v1819, %v1820
  %v1822 = vsel %vm141, %v1816, 0.0
  %v1823 = vadd.f32 %v1821, %v1822
  %1824 = vadd.xlane.f32.xlu0 %v1823
  %v1825 = vpop.xlane.xlu0 %1824
  %v1826 = vmul.f32 %v1813, %v1813
  %v1827 = vmul.f32 %v1814, %v1814
  %v1828 = vmul.f32 %v1815, %v1815
  %v1829 = vmul.f32 %v1816, %v1816
  %v1830 = vsel %vm141, %v1826, 0.0
  %v1831 = vsel %vm141, %v1827, 0.0
  %v1832 = vadd.f32 %v1830, %v1831
  %v1833 = vsel %vm141, %v1828, 0.0
  %v1834 = vadd.f32 %v1832, %v1833
  %v1835 = vsel %vm141, %v1829, 0.0
  %v1836 = vadd.f32 %v1834, %v1835
  %1837 = vadd.xlane.f32.xlu0 %v1836
  %v1838 = vpop.xlane.xlu0 %1837
  %v1839 = vmul.f32 %v1825, 0.001953125
  %v1840 = vmul.f32 %v1838, 0.001953125
  %v1841 = vmul.f32 %v1839, %v1839
  %v1842 = vsub.f32 %v1840, %v1841
  %v1843 = vadd.f32 %v1842, 1e-05
  %v1844 = vrsqrt.pop %v1843
  %v1845 = vmul.f32 %v62, %v1844
  %v1846 = vmul.f32 %v1839, %v1845
  %1848 = vrot.lane.b32.xlu0 %v1846, 1
  %v1849 = vpop.permute.xlu0 %1848
  %v1851 = vsub.f32 %v62, %v1849
  %1853 = vset.pattern.permute.xlu0 1
  %1854 = vperm.xlu0 %1853, %v1845
  %v1855 = vpop.permute.xlu0 %1854
  %v1857 = vmul.f32 %v1813, %v1855
  %v1858 = vmul.f32 %v1814, %v1855
  %v1859 = vmul.f32 %v1815, %v1855
  %v1860 = vmul.f32 %v1816, %v1855
  %1862 = vset.pattern.permute.xlu0 2
  %1863 = vperm.xlu0 %1862, %v1851
  %v1864 = vpop.permute.xlu0 %1863
  %v1866 = vadd.f32 %v1857, %v1864
  %v1867 = vadd.f32 %v1858, %v1864
  %v1868 = vadd.f32 %v1859, %v1864
  %v1869 = vadd.f32 %v1860, %v1864
  %1870 = vrot.lane.b32.xlu0 %v1866, 17
  %v1871 = vpop.permute.xlu0 %1870
  %1872 = vrot.lane.b32.xlu0 %v1867, 17
  %v1873 = vpop.permute.xlu0 %1872
  %1874 = vrot.lane.b32.xlu0 %v1868, 17
  %v1875 = vpop.permute.xlu0 %1874
  %1876 = vrot.lane.b32.xlu0 %v1869, 17
  %v1877 = vpop.permute.xlu0 %1876
  %v1878 = vsel %vm79, %v1875, %v1877
  %v1879 = vsel %vm79, %v1873, %v1875
  %v1880 = vsel %vm79, %v1871, %v1873
  %v1881 = vsel %vm79, %v1877, %v1871
  %v1882 = vlaneseq
  %v1883 = vshrl.u32 %v1882, 7
  %v1884 = vsub.s32 0, %v1883
  %v1885 = vrot.slane %v54, %v1884
  %v1886 = vlaneseq
  %v1887 = vshrl.u32 %v1886, 7
  %v1888 = vsub.s32 0, %v1887
  %v1889 = vrot.slane %v55, %v1888
  %v1890 = vlaneseq
  %v1891 = vshrl.u32 %v1890, 7
  %v1892 = vsub.s32 0, %v1891
  %v1893 = vrot.slane %v56, %v1892
  %v1894 = vlaneseq
  %v1895 = vshrl.u32 %v1894, 7
  %v1896 = vsub.s32 0, %v1895
  %v1897 = vrot.slane %v57, %v1896
  %v1898 = vmul.f32 %v1881, %v1885
  %v1899 = vmul.f32 %v1880, %v1889
  %v1900 = vmul.f32 %v1879, %v1893
  %v1901 = vmul.f32 %v1878, %v1897
  %1902 = vrot.lane.b32.xlu0 %v1866, 16
  %v1903 = vpop.permute.xlu0 %1902
  %1904 = vrot.lane.b32.xlu0 %v1867, 16
  %v1905 = vpop.permute.xlu0 %1904
  %1906 = vrot.lane.b32.xlu0 %v1868, 16
  %v1907 = vpop.permute.xlu0 %1906
  %1908 = vrot.lane.b32.xlu0 %v1869, 16
  %v1909 = vpop.permute.xlu0 %1908
  %v1910 = vsel %vm112, %v1907, %v1909
  %v1911 = vsel %vm112, %v1905, %v1907
  %v1912 = vsel %vm112, %v1903, %v1905
  %v1913 = vsel %vm112, %v1909, %v1903
  %v1914 = vlaneseq
  %v1915 = vshrl.u32 %v1914, 7
  %v1916 = vsub.s32 1, %v1915
  %v1917 = vrot.slane %v54, %v1916
  %v1918 = vlaneseq
  %v1919 = vshrl.u32 %v1918, 7
  %v1920 = vsub.s32 1, %v1919
  %v1921 = vrot.slane %v55, %v1920
  %v1922 = vlaneseq
  %v1923 = vshrl.u32 %v1922, 7
  %v1924 = vsub.s32 1, %v1923
  %v1925 = vrot.slane %v56, %v1924
  %v1926 = vlaneseq
  %v1927 = vshrl.u32 %v1926, 7
  %v1928 = vsub.s32 1, %v1927
  %v1929 = vrot.slane %v57, %v1928
  %v1930 = vmul.f32 %v1913, %v1917
  %v1931 = vmul.f32 %v1912, %v1921
  %v1932 = vmul.f32 %v1911, %v1925
  %v1933 = vmul.f32 %v1910, %v1929
  %v1935 = vsel %vm137, %v38, 0
  %v1938 = vsel %vm141, %v1930, 0
  %v1941 = vsel %vm141, %v1931, 0
  %v1944 = vsel %vm141, %v1932, 0
  %v1947 = vsel %vm141, %v1933, 0
  %1949 = vmatprep.subr.mxu0 %v1941
  %1950 = vmatpush1.msra.mxu0 %v1938
  %1951 = vmatprep.subr.mxu0 0.0
  %1952 = vmatpush1.msra.mxu0 0.0
  %1953 = vmatprep.subr.mxu0 0.0
  %1954 = vmatpush1.msra.mxu0 0.0
  %1955 = vmatprep.subr.mxu0 0.0
  %1956 = vmatpush1.msra.mxu0 0.0
  %1957 = vmatprep.subr.mxu0 0.0
  %1958 = vmatpush1.msra.mxu0 0.0
  %1959 = vmatprep.subr.mxu0 0.0
  %1960 = vmatpush1.msra.mxu0 0.0
  %1961 = vmatprep.subr.mxu0 0.0
  %1962 = vmatpush1.msra.mxu0 0.0
  %1963 = vmatprep.subr.mxu0 0.0
  %1964 = vmatpush1.msra.mxu0 0.0
  %1965 = vmatprep.subr.mxu0 0.0
  %1966 = vmatpush1.msra.mxu0 0.0
  %1967 = vmatprep.subr.mxu0 0.0
  %1968 = vmatpush1.msra.mxu0 0.0
  %1969 = vmatprep.subr.mxu0 0.0
  %1970 = vmatpush1.msra.mxu0 0.0
  %1971 = vmatprep.subr.mxu0 0.0
  %1972 = vmatpush1.msra.mxu0 0.0
  %1973 = vmatprep.subr.mxu0 0.0
  %1974 = vmatpush1.msra.mxu0 0.0
  %1975 = vmatprep.subr.mxu0 0.0
  %1976 = vmatpush1.msra.mxu0 0.0
  %1977 = vmatprep.subr.mxu0 0.0
  %1978 = vmatpush1.msra.mxu0 0.0
  %1979 = vmatprep.subr.mxu0 0.0
  %1980 = vmatpush1.msra.mxu0 0.0
  %1981 = vmatprep.subr.mxu0 0.0
  %1982 = vmatpush1.msra.mxu0 0.0
  %1983 = vmatprep.subr.mxu0 0.0
  %1984 = vmatpush1.msra.mxu0 0.0
  %1985 = vmatprep.subr.mxu0 0.0
  %1986 = vmatpush1.msra.mxu0 0.0
  %1987 = vmatprep.subr.mxu0 0.0
  %1988 = vmatpush1.msra.mxu0 0.0
  %1989 = vmatprep.subr.mxu0 0.0
  %1990 = vmatpush1.msra.mxu0 0.0
  %1991 = vmatprep.subr.mxu0 0.0
  %1992 = vmatpush1.msra.mxu0 0.0
  %1993 = vmatprep.subr.mxu0 0.0
  %1994 = vmatpush1.msra.mxu0 0.0
  %1995 = vmatprep.subr.mxu0 0.0
  %1996 = vmatpush1.msra.mxu0 0.0
  %1997 = vmatprep.subr.mxu0 0.0
  %1998 = vmatpush1.msra.mxu0 0.0
  %1999 = vmatprep.subr.mxu0 0.0
  %2000 = vmatpush1.msra.mxu0 0.0
  %2001 = vmatprep.subr.mxu0 0.0
  %2002 = vmatpush1.msra.mxu0 0.0
  %2003 = vmatprep.subr.mxu0 0.0
  %2004 = vmatpush1.msra.mxu0 0.0
  %2005 = vmatprep.subr.mxu0 0.0
  %2006 = vmatpush1.msra.mxu0 0.0
  %2007 = vmatprep.subr.mxu0 0.0
  %2008 = vmatpush1.msra.mxu0 0.0
  %2009 = vmatprep.subr.mxu0 0.0
  %2010 = vmatpush1.msra.mxu0 0.0
  %2011 = vmatprep.subr.mxu0 0.0
  %2012 = vmatpush1.msra.mxu0 0.0
  %2013 = vmatprep.mubr.f32.mxu0 0.0
  %2014 = vmatmul.mubr.f32.gmra.mrb[0].mxu0 %v1935
  %v2015 = vpop.f32.mrb[0].mxu0
  %v2016 = vadd.f32 0.0, %v2015
  %v2017 = vpop.f32.mrb[0].mxu0
  %v2018 = vadd.f32 0.0, %v2017
  %2019 = vdwg.mxu0
  %2020 = vmatprep.subr.mxu0 %v1947
  %2021 = vmatpush1.msra.mxu0 %v1944
  %2022 = vmatprep.subr.mxu0 0.0
  %2023 = vmatpush1.msra.mxu0 0.0
  %2024 = vmatprep.subr.mxu0 0.0
  %2025 = vmatpush1.msra.mxu0 0.0
  %2026 = vmatprep.subr.mxu0 0.0
  %2027 = vmatpush1.msra.mxu0 0.0
  %2028 = vmatprep.subr.mxu0 0.0
  %2029 = vmatpush1.msra.mxu0 0.0
  %2030 = vmatprep.subr.mxu0 0.0
  %2031 = vmatpush1.msra.mxu0 0.0
  %2032 = vmatprep.subr.mxu0 0.0
  %2033 = vmatpush1.msra.mxu0 0.0
  %2034 = vmatprep.subr.mxu0 0.0
  %2035 = vmatpush1.msra.mxu0 0.0
  %2036 = vmatprep.subr.mxu0 0.0
  %2037 = vmatpush1.msra.mxu0 0.0
  %2038 = vmatprep.subr.mxu0 0.0
  %2039 = vmatpush1.msra.mxu0 0.0
  %2040 = vmatprep.subr.mxu0 0.0
  %2041 = vmatpush1.msra.mxu0 0.0
  %2042 = vmatprep.subr.mxu0 0.0
  %2043 = vmatpush1.msra.mxu0 0.0
  %2044 = vmatprep.subr.mxu0 0.0
  %2045 = vmatpush1.msra.mxu0 0.0
  %2046 = vmatprep.subr.mxu0 0.0
  %2047 = vmatpush1.msra.mxu0 0.0
  %2048 = vmatprep.subr.mxu0 0.0
  %2049 = vmatpush1.msra.mxu0 0.0
  %2050 = vmatprep.subr.mxu0 0.0
  %2051 = vmatpush1.msra.mxu0 0.0
  %2052 = vmatprep.subr.mxu0 0.0
  %2053 = vmatpush1.msra.mxu0 0.0
  %2054 = vmatprep.subr.mxu0 0.0
  %2055 = vmatpush1.msra.mxu0 0.0
  %2056 = vmatprep.subr.mxu0 0.0
  %2057 = vmatpush1.msra.mxu0 0.0
  %2058 = vmatprep.subr.mxu0 0.0
  %2059 = vmatpush1.msra.mxu0 0.0
  %2060 = vmatprep.subr.mxu0 0.0
  %2061 = vmatpush1.msra.mxu0 0.0
  %2062 = vmatprep.subr.mxu0 0.0
  %2063 = vmatpush1.msra.mxu0 0.0
  %2064 = vmatprep.subr.mxu0 0.0
  %2065 = vmatpush1.msra.mxu0 0.0
  %2066 = vmatprep.subr.mxu0 0.0
  %2067 = vmatpush1.msra.mxu0 0.0
  %2068 = vmatprep.subr.mxu0 0.0
  %2069 = vmatpush1.msra.mxu0 0.0
  %2070 = vmatprep.subr.mxu0 0.0
  %2071 = vmatpush1.msra.mxu0 0.0
  %2072 = vmatprep.subr.mxu0 0.0
  %2073 = vmatpush1.msra.mxu0 0.0
  %2074 = vmatprep.subr.mxu0 0.0
  %2075 = vmatpush1.msra.mxu0 0.0
  %2076 = vmatprep.subr.mxu0 0.0
  %2077 = vmatpush1.msra.mxu0 0.0
  %2078 = vmatprep.subr.mxu0 0.0
  %2079 = vmatpush1.msra.mxu0 0.0
  %2080 = vmatprep.subr.mxu0 0.0
  %2081 = vmatpush1.msra.mxu0 0.0
  %2082 = vmatprep.subr.mxu0 0.0
  %2083 = vmatpush1.msra.mxu0 0.0
  %2084 = vmatprep.mubr.f32.mxu0 0.0
  %2085 = vmatmul.mubr.f32.gmra.mrb[0].mxu0 %v1935
  %v2086 = vpop.f32.mrb[0].mxu0
  %v2087 = vadd.f32 0.0, %v2086
  %v2088 = vpop.f32.mrb[0].mxu0
  %v2089 = vadd.f32 0.0, %v2088
  %2090 = vdwg.mxu0
  %v2092 = vsel %vm137, %v37, 0
  %v2095 = vsel %vm141, %v1898, 0
  %v2098 = vsel %vm141, %v1899, 0
  %v2101 = vsel %vm141, %v1900, 0
  %v2104 = vsel %vm141, %v1901, 0
  %2106 = vmatprep.subr.mxu0 %v2098
  %2107 = vmatpush1.msra.mxu0 %v2095
  %2108 = vmatprep.subr.mxu0 0.0
  %2109 = vmatpush1.msra.mxu0 0.0
  %2110 = vmatprep.subr.mxu0 0.0
  %2111 = vmatpush1.msra.mxu0 0.0
  %2112 = vmatprep.subr.mxu0 0.0
  %2113 = vmatpush1.msra.mxu0 0.0
  %2114 = vmatprep.subr.mxu0 0.0
  %2115 = vmatpush1.msra.mxu0 0.0
  %2116 = vmatprep.subr.mxu0 0.0
  %2117 = vmatpush1.msra.mxu0 0.0
  %2118 = vmatprep.subr.mxu0 0.0
  %2119 = vmatpush1.msra.mxu0 0.0
  %2120 = vmatprep.subr.mxu0 0.0
  %2121 = vmatpush1.msra.mxu0 0.0
  %2122 = vmatprep.subr.mxu0 0.0
  %2123 = vmatpush1.msra.mxu0 0.0
  %2124 = vmatprep.subr.mxu0 0.0
  %2125 = vmatpush1.msra.mxu0 0.0
  %2126 = vmatprep.subr.mxu0 0.0
  %2127 = vmatpush1.msra.mxu0 0.0
  %2128 = vmatprep.subr.mxu0 0.0
  %2129 = vmatpush1.msra.mxu0 0.0
  %2130 = vmatprep.subr.mxu0 0.0
  %2131 = vmatpush1.msra.mxu0 0.0
  %2132 = vmatprep.subr.mxu0 0.0
  %2133 = vmatpush1.msra.mxu0 0.0
  %2134 = vmatprep.subr.mxu0 0.0
  %2135 = vmatpush1.msra.mxu0 0.0
  %2136 = vmatprep.subr.mxu0 0.0
  %2137 = vmatpush1.msra.mxu0 0.0
  %2138 = vmatprep.subr.mxu0 0.0
  %2139 = vmatpush1.msra.mxu0 0.0
  %2140 = vmatprep.subr.mxu0 0.0
  %2141 = vmatpush1.msra.mxu0 0.0
  %2142 = vmatprep.subr.mxu0 0.0
  %2143 = vmatpush1.msra.mxu0 0.0
  %2144 = vmatprep.subr.mxu0 0.0
  %2145 = vmatpush1.msra.mxu0 0.0
  %2146 = vmatprep.subr.mxu0 0.0
  %2147 = vmatpush1.msra.mxu0 0.0
  %2148 = vmatprep.subr.mxu0 0.0
  %2149 = vmatpush1.msra.mxu0 0.0
  %2150 = vmatprep.subr.mxu0 0.0
  %2151 = vmatpush1.msra.mxu0 0.0
  %2152 = vmatprep.subr.mxu0 0.0
  %2153 = vmatpush1.msra.mxu0 0.0
  %2154 = vmatprep.subr.mxu0 0.0
  %2155 = vmatpush1.msra.mxu0 0.0
  %2156 = vmatprep.subr.mxu0 0.0
  %2157 = vmatpush1.msra.mxu0 0.0
  %2158 = vmatprep.subr.mxu0 0.0
  %2159 = vmatpush1.msra.mxu0 0.0
  %2160 = vmatprep.subr.mxu0 0.0
  %2161 = vmatpush1.msra.mxu0 0.0
  %2162 = vmatprep.subr.mxu0 0.0
  %2163 = vmatpush1.msra.mxu0 0.0
  %2164 = vmatprep.subr.mxu0 0.0
  %2165 = vmatpush1.msra.mxu0 0.0
  %2166 = vmatprep.subr.mxu0 0.0
  %2167 = vmatpush1.msra.mxu0 0.0
  %2168 = vmatprep.subr.mxu0 0.0
  %2169 = vmatpush1.msra.mxu0 0.0
  %2170 = vmatprep.mubr.f32.mxu0 0.0
  %2171 = vmatmul.mubr.f32.gmra.mrb[0].mxu0 %v2092
  %v2172 = vpop.f32.mrb[0].mxu0
  %v2173 = vadd.f32 %v2016, %v2172
  %v2174 = vpop.f32.mrb[0].mxu0
  %v2175 = vadd.f32 %v2018, %v2174
  %2176 = vdwg.mxu0
  %2177 = vmatprep.subr.mxu0 %v2104
  %2178 = vmatpush1.msra.mxu0 %v2101
  %2179 = vmatprep.subr.mxu0 0.0
  %2180 = vmatpush1.msra.mxu0 0.0
  %2181 = vmatprep.subr.mxu0 0.0
  %2182 = vmatpush1.msra.mxu0 0.0
  %2183 = vmatprep.subr.mxu0 0.0
  %2184 = vmatpush1.msra.mxu0 0.0
  %2185 = vmatprep.subr.mxu0 0.0
  %2186 = vmatpush1.msra.mxu0 0.0
  %2187 = vmatprep.subr.mxu0 0.0
  %2188 = vmatpush1.msra.mxu0 0.0
  %2189 = vmatprep.subr.mxu0 0.0
  %2190 = vmatpush1.msra.mxu0 0.0
  %2191 = vmatprep.subr.mxu0 0.0
  %2192 = vmatpush1.msra.mxu0 0.0
  %2193 = vmatprep.subr.mxu0 0.0
  %2194 = vmatpush1.msra.mxu0 0.0
  %2195 = vmatprep.subr.mxu0 0.0
  %2196 = vmatpush1.msra.mxu0 0.0
  %2197 = vmatprep.subr.mxu0 0.0
  %2198 = vmatpush1.msra.mxu0 0.0
  %2199 = vmatprep.subr.mxu0 0.0
  %2200 = vmatpush1.msra.mxu0 0.0
  %2201 = vmatprep.subr.mxu0 0.0
  %2202 = vmatpush1.msra.mxu0 0.0
  %2203 = vmatprep.subr.mxu0 0.0
  %2204 = vmatpush1.msra.mxu0 0.0
  %2205 = vmatprep.subr.mxu0 0.0
  %2206 = vmatpush1.msra.mxu0 0.0
  %2207 = vmatprep.subr.mxu0 0.0
  %2208 = vmatpush1.msra.mxu0 0.0
  %2209 = vmatprep.subr.mxu0 0.0
  %2210 = vmatpush1.msra.mxu0 0.0
  %2211 = vmatprep.subr.mxu0 0.0
  %2212 = vmatpush1.msra.mxu0 0.0
  %2213 = vmatprep.subr.mxu0 0.0
  %2214 = vmatpush1.msra.mxu0 0.0
  %2215 = vmatprep.subr.mxu0 0.0
  %2216 = vmatpush1.msra.mxu0 0.0
  %2217 = vmatprep.subr.mxu0 0.0
  %2218 = vmatpush1.msra.mxu0 0.0
  %2219 = vmatprep.subr.mxu0 0.0
  %2220 = vmatpush1.msra.mxu0 0.0
  %2221 = vmatprep.subr.mxu0 0.0
  %2222 = vmatpush1.msra.mxu0 0.0
  %2223 = vmatprep.subr.mxu0 0.0
  %2224 = vmatpush1.msra.mxu0 0.0
  %2225 = vmatprep.subr.mxu0 0.0
  %2226 = vmatpush1.msra.mxu0 0.0
  %2227 = vmatprep.subr.mxu0 0.0
  %2228 = vmatpush1.msra.mxu0 0.0
  %2229 = vmatprep.subr.mxu0 0.0
  %2230 = vmatpush1.msra.mxu0 0.0
  %2231 = vmatprep.subr.mxu0 0.0
  %2232 = vmatpush1.msra.mxu0 0.0
  %2233 = vmatprep.subr.mxu0 0.0
  %2234 = vmatpush1.msra.mxu0 0.0
  %2235 = vmatprep.subr.mxu0 0.0
  %2236 = vmatpush1.msra.mxu0 0.0
  %2237 = vmatprep.subr.mxu0 0.0
  %2238 = vmatpush1.msra.mxu0 0.0
  %2239 = vmatprep.subr.mxu0 0.0
  %2240 = vmatpush1.msra.mxu0 0.0
  %2241 = vmatprep.mubr.f32.mxu0 0.0
  %2242 = vmatmul.mubr.f32.gmra.mrb[0].mxu0 %v2092
  %v2243 = vpop.f32.mrb[0].mxu0
  %v2244 = vadd.f32 %v2087, %v2243
  %v2245 = vpop.f32.mrb[0].mxu0
  %v2246 = vadd.f32 %v2089, %v2245
  %2247 = vdwg.mxu0
  %2248 = vrot.lane.b32.xlu0 %v1866, 15
  %v2249 = vpop.permute.xlu0 %2248
  %2250 = vrot.lane.b32.xlu0 %v1867, 15
  %v2251 = vpop.permute.xlu0 %2250
  %2252 = vrot.lane.b32.xlu0 %v1868, 15
  %v2253 = vpop.permute.xlu0 %2252
  %2254 = vrot.lane.b32.xlu0 %v1869, 15
  %v2255 = vpop.permute.xlu0 %2254
  %v2256 = vsel %vm461, %v2253, %v2255
  %v2257 = vsel %vm461, %v2251, %v2253
  %v2258 = vsel %vm461, %v2249, %v2251
  %v2259 = vsel %vm461, %v2255, %v2249
  %v2260 = vlaneseq
  %v2261 = vshrl.u32 %v2260, 7
  %v2262 = vsub.s32 2, %v2261
  %v2263 = vrot.slane %v54, %v2262
  %v2264 = vlaneseq
  %v2265 = vshrl.u32 %v2264, 7
  %v2266 = vsub.s32 2, %v2265
  %v2267 = vrot.slane %v55, %v2266
  %v2268 = vlaneseq
  %v2269 = vshrl.u32 %v2268, 7
  %v2270 = vsub.s32 2, %v2269
  %v2271 = vrot.slane %v56, %v2270
  %v2272 = vlaneseq
  %v2273 = vshrl.u32 %v2272, 7
  %v2274 = vsub.s32 2, %v2273
  %v2275 = vrot.slane %v57, %v2274
  %v2276 = vmul.f32 %v2259, %v2263
  %v2277 = vmul.f32 %v2258, %v2267
  %v2278 = vmul.f32 %v2257, %v2271
  %v2279 = vmul.f32 %v2256, %v2275
  %v2281 = vsel %vm137, %v39, 0
  %v2284 = vsel %vm141, %v2276, 0
  %v2287 = vsel %vm141, %v2277, 0
  %v2290 = vsel %vm141, %v2278, 0
  %v2293 = vsel %vm141, %v2279, 0
  %2295 = vmatprep.subr.mxu0 %v2287
  %2296 = vmatpush1.msra.mxu0 %v2284
  %2297 = vmatprep.subr.mxu0 0.0
  %2298 = vmatpush1.msra.mxu0 0.0
  %2299 = vmatprep.subr.mxu0 0.0
  %2300 = vmatpush1.msra.mxu0 0.0
  %2301 = vmatprep.subr.mxu0 0.0
  %2302 = vmatpush1.msra.mxu0 0.0
  %2303 = vmatprep.subr.mxu0 0.0
  %2304 = vmatpush1.msra.mxu0 0.0
  %2305 = vmatprep.subr.mxu0 0.0
  %2306 = vmatpush1.msra.mxu0 0.0
  %2307 = vmatprep.subr.mxu0 0.0
  %2308 = vmatpush1.msra.mxu0 0.0
  %2309 = vmatprep.subr.mxu0 0.0
  %2310 = vmatpush1.msra.mxu0 0.0
  %2311 = vmatprep.subr.mxu0 0.0
  %2312 = vmatpush1.msra.mxu0 0.0
  %2313 = vmatprep.subr.mxu0 0.0
  %2314 = vmatpush1.msra.mxu0 0.0
  %2315 = vmatprep.subr.mxu0 0.0
  %2316 = vmatpush1.msra.mxu0 0.0
  %2317 = vmatprep.subr.mxu0 0.0
  %2318 = vmatpush1.msra.mxu0 0.0
  %2319 = vmatprep.subr.mxu0 0.0
  %2320 = vmatpush1.msra.mxu0 0.0
  %2321 = vmatprep.subr.mxu0 0.0
  %2322 = vmatpush1.msra.mxu0 0.0
  %2323 = vmatprep.subr.mxu0 0.0
  %2324 = vmatpush1.msra.mxu0 0.0
  %2325 = vmatprep.subr.mxu0 0.0
  %2326 = vmatpush1.msra.mxu0 0.0
  %2327 = vmatprep.subr.mxu0 0.0
  %2328 = vmatpush1.msra.mxu0 0.0
  %2329 = vmatprep.subr.mxu0 0.0
  %2330 = vmatpush1.msra.mxu0 0.0
  %2331 = vmatprep.subr.mxu0 0.0
  %2332 = vmatpush1.msra.mxu0 0.0
  %2333 = vmatprep.subr.mxu0 0.0
  %2334 = vmatpush1.msra.mxu0 0.0
  %2335 = vmatprep.subr.mxu0 0.0
  %2336 = vmatpush1.msra.mxu0 0.0
  %2337 = vmatprep.subr.mxu0 0.0
  %2338 = vmatpush1.msra.mxu0 0.0
  %2339 = vmatprep.subr.mxu0 0.0
  %2340 = vmatpush1.msra.mxu0 0.0
  %2341 = vmatprep.subr.mxu0 0.0
  %2342 = vmatpush1.msra.mxu0 0.0
  %2343 = vmatprep.subr.mxu0 0.0
  %2344 = vmatpush1.msra.mxu0 0.0
  %2345 = vmatprep.subr.mxu0 0.0
  %2346 = vmatpush1.msra.mxu0 0.0
  %2347 = vmatprep.subr.mxu0 0.0
  %2348 = vmatpush1.msra.mxu0 0.0
  %2349 = vmatprep.subr.mxu0 0.0
  %2350 = vmatpush1.msra.mxu0 0.0
  %2351 = vmatprep.subr.mxu0 0.0
  %2352 = vmatpush1.msra.mxu0 0.0
  %2353 = vmatprep.subr.mxu0 0.0
  %2354 = vmatpush1.msra.mxu0 0.0
  %2355 = vmatprep.subr.mxu0 0.0
  %2356 = vmatpush1.msra.mxu0 0.0
  %2357 = vmatprep.subr.mxu0 0.0
  %2358 = vmatpush1.msra.mxu0 0.0
  %2359 = vmatprep.mubr.f32.mxu0 0.0
  %2360 = vmatmul.mubr.f32.gmra.mrb[0].mxu0 %v2281
  %v2361 = vpop.f32.mrb[0].mxu0
  %v2362 = vadd.f32 0.0, %v2361
  %v2363 = vpop.f32.mrb[0].mxu0
  %v2364 = vadd.f32 0.0, %v2363
  %2365 = vdwg.mxu0
  %2366 = vmatprep.subr.mxu0 %v2293
  %2367 = vmatpush1.msra.mxu0 %v2290
  %2368 = vmatprep.subr.mxu0 0.0
  %2369 = vmatpush1.msra.mxu0 0.0
  %2370 = vmatprep.subr.mxu0 0.0
  %2371 = vmatpush1.msra.mxu0 0.0
  %2372 = vmatprep.subr.mxu0 0.0
  %2373 = vmatpush1.msra.mxu0 0.0
  %2374 = vmatprep.subr.mxu0 0.0
  %2375 = vmatpush1.msra.mxu0 0.0
  %2376 = vmatprep.subr.mxu0 0.0
  %2377 = vmatpush1.msra.mxu0 0.0
  %2378 = vmatprep.subr.mxu0 0.0
  %2379 = vmatpush1.msra.mxu0 0.0
  %2380 = vmatprep.subr.mxu0 0.0
  %2381 = vmatpush1.msra.mxu0 0.0
  %2382 = vmatprep.subr.mxu0 0.0
  %2383 = vmatpush1.msra.mxu0 0.0
  %2384 = vmatprep.subr.mxu0 0.0
  %2385 = vmatpush1.msra.mxu0 0.0
  %2386 = vmatprep.subr.mxu0 0.0
  %2387 = vmatpush1.msra.mxu0 0.0
  %2388 = vmatprep.subr.mxu0 0.0
  %2389 = vmatpush1.msra.mxu0 0.0
  %2390 = vmatprep.subr.mxu0 0.0
  %2391 = vmatpush1.msra.mxu0 0.0
  %2392 = vmatprep.subr.mxu0 0.0
  %2393 = vmatpush1.msra.mxu0 0.0
  %2394 = vmatprep.subr.mxu0 0.0
  %2395 = vmatpush1.msra.mxu0 0.0
  %2396 = vmatprep.subr.mxu0 0.0
  %2397 = vmatpush1.msra.mxu0 0.0
  %2398 = vmatprep.subr.mxu0 0.0
  %2399 = vmatpush1.msra.mxu0 0.0
  %2400 = vmatprep.subr.mxu0 0.0
  %2401 = vmatpush1.msra.mxu0 0.0
  %2402 = vmatprep.subr.mxu0 0.0
  %2403 = vmatpush1.msra.mxu0 0.0
  %2404 = vmatprep.subr.mxu0 0.0
  %2405 = vmatpush1.msra.mxu0 0.0
  %2406 = vmatprep.subr.mxu0 0.0
  %2407 = vmatpush1.msra.mxu0 0.0
  %2408 = vmatprep.subr.mxu0 0.0
  %2409 = vmatpush1.msra.mxu0 0.0
  %2410 = vmatprep.subr.mxu0 0.0
  %2411 = vmatpush1.msra.mxu0 0.0
  %2412 = vmatprep.subr.mxu0 0.0
  %2413 = vmatpush1.msra.mxu0 0.0
  %2414 = vmatprep.subr.mxu0 0.0
  %2415 = vmatpush1.msra.mxu0 0.0
  %2416 = vmatprep.subr.mxu0 0.0
  %2417 = vmatpush1.msra.mxu0 0.0
  %2418 = vmatprep.subr.mxu0 0.0
  %2419 = vmatpush1.msra.mxu0 0.0
  %2420 = vmatprep.subr.mxu0 0.0
  %2421 = vmatpush1.msra.mxu0 0.0
  %2422 = vmatprep.subr.mxu0 0.0
  %2423 = vmatpush1.msra.mxu0 0.0
  %2424 = vmatprep.subr.mxu0 0.0
  %2425 = vmatpush1.msra.mxu0 0.0
  %2426 = vmatprep.subr.mxu0 0.0
  %2427 = vmatpush1.msra.mxu0 0.0
  %2428 = vmatprep.subr.mxu0 0.0
  %2429 = vmatpush1.msra.mxu0 0.0
  %2430 = vmatprep.mubr.f32.mxu0 0.0
  %2431 = vmatmul.mubr.f32.gmra.mrb[0].mxu0 %v2281
  %v2432 = vpop.f32.mrb[0].mxu0
  %v2433 = vadd.f32 0.0, %v2432
  %v2434 = vpop.f32.mrb[0].mxu0
  %v2435 = vadd.f32 0.0, %v2434
  %2436 = vdwg.mxu0
  %v2437 = vadd.f32 %v2173, %v2362
  %v2438 = vadd.f32 %v2175, %v2364
  %v2439 = vadd.f32 %v2244, %v2433
  %v2440 = vadd.f32 %v2246, %v2435
  %2441 = vrot.lane.b32.xlu0 %v1866, 1
  %v2442 = vpop.permute.xlu0 %2441
  %2443 = vrot.lane.b32.xlu0 %v1867, 1
  %v2444 = vpop.permute.xlu0 %2443
  %2445 = vrot.lane.b32.xlu0 %v1868, 1
  %v2446 = vpop.permute.xlu0 %2445
  %2447 = vrot.lane.b32.xlu0 %v1869, 1
  %v2448 = vpop.permute.xlu0 %2447
  %v2449 = vsel %vm655, %v2446, %v2448
  %v2450 = vsel %vm655, %v2444, %v2446
  %v2451 = vsel %vm655, %v2442, %v2444
  %v2452 = vsel %vm655, %v2448, %v2442
  %v2453 = vlaneseq
  %v2454 = vshrl.u32 %v2453, 7
  %v2455 = vsub.s32 3, %v2454
  %v2456 = vrot.slane %v54, %v2455
  %v2457 = vlaneseq
  %v2458 = vshrl.u32 %v2457, 7
  %v2459 = vsub.s32 3, %v2458
  %v2460 = vrot.slane %v55, %v2459
  %v2461 = vlaneseq
  %v2462 = vshrl.u32 %v2461, 7
  %v2463 = vsub.s32 3, %v2462
  %v2464 = vrot.slane %v56, %v2463
  %v2465 = vlaneseq
  %v2466 = vshrl.u32 %v2465, 7
  %v2467 = vsub.s32 3, %v2466
  %v2468 = vrot.slane %v57, %v2467
  %v2469 = vmul.f32 %v2452, %v2456
  %v2470 = vmul.f32 %v2451, %v2460
  %v2471 = vmul.f32 %v2450, %v2464
  %v2472 = vmul.f32 %v2449, %v2468
  %v2474 = vsel %vm137, %v40, 0
  %v2477 = vsel %vm141, %v2469, 0
  %v2480 = vsel %vm141, %v2470, 0
  %v2483 = vsel %vm141, %v2471, 0
  %v2486 = vsel %vm141, %v2472, 0
  %2488 = vmatprep.subr.mxu0 %v2480
  %2489 = vmatpush1.msra.mxu0 %v2477
  %2490 = vmatprep.subr.mxu0 0.0
  %2491 = vmatpush1.msra.mxu0 0.0
  %2492 = vmatprep.subr.mxu0 0.0
  %2493 = vmatpush1.msra.mxu0 0.0
  %2494 = vmatprep.subr.mxu0 0.0
  %2495 = vmatpush1.msra.mxu0 0.0
  %2496 = vmatprep.subr.mxu0 0.0
  %2497 = vmatpush1.msra.mxu0 0.0
  %2498 = vmatprep.subr.mxu0 0.0
  %2499 = vmatpush1.msra.mxu0 0.0
  %2500 = vmatprep.subr.mxu0 0.0
  %2501 = vmatpush1.msra.mxu0 0.0
  %2502 = vmatprep.subr.mxu0 0.0
  %2503 = vmatpush1.msra.mxu0 0.0
  %2504 = vmatprep.subr.mxu0 0.0
  %2505 = vmatpush1.msra.mxu0 0.0
  %2506 = vmatprep.subr.mxu0 0.0
  %2507 = vmatpush1.msra.mxu0 0.0
  %2508 = vmatprep.subr.mxu0 0.0
  %2509 = vmatpush1.msra.mxu0 0.0
  %2510 = vmatprep.subr.mxu0 0.0
  %2511 = vmatpush1.msra.mxu0 0.0
  %2512 = vmatprep.subr.mxu0 0.0
  %2513 = vmatpush1.msra.mxu0 0.0
  %2514 = vmatprep.subr.mxu0 0.0
  %2515 = vmatpush1.msra.mxu0 0.0
  %2516 = vmatprep.subr.mxu0 0.0
  %2517 = vmatpush1.msra.mxu0 0.0
  %2518 = vmatprep.subr.mxu0 0.0
  %2519 = vmatpush1.msra.mxu0 0.0
  %2520 = vmatprep.subr.mxu0 0.0
  %2521 = vmatpush1.msra.mxu0 0.0
  %2522 = vmatprep.subr.mxu0 0.0
  %2523 = vmatpush1.msra.mxu0 0.0
  %2524 = vmatprep.subr.mxu0 0.0
  %2525 = vmatpush1.msra.mxu0 0.0
  %2526 = vmatprep.subr.mxu0 0.0
  %2527 = vmatpush1.msra.mxu0 0.0
  %2528 = vmatprep.subr.mxu0 0.0
  %2529 = vmatpush1.msra.mxu0 0.0
  %2530 = vmatprep.subr.mxu0 0.0
  %2531 = vmatpush1.msra.mxu0 0.0
  %2532 = vmatprep.subr.mxu0 0.0
  %2533 = vmatpush1.msra.mxu0 0.0
  %2534 = vmatprep.subr.mxu0 0.0
  %2535 = vmatpush1.msra.mxu0 0.0
  %2536 = vmatprep.subr.mxu0 0.0
  %2537 = vmatpush1.msra.mxu0 0.0
  %2538 = vmatprep.subr.mxu0 0.0
  %2539 = vmatpush1.msra.mxu0 0.0
  %2540 = vmatprep.subr.mxu0 0.0
  %2541 = vmatpush1.msra.mxu0 0.0
  %2542 = vmatprep.subr.mxu0 0.0
  %2543 = vmatpush1.msra.mxu0 0.0
  %2544 = vmatprep.subr.mxu0 0.0
  %2545 = vmatpush1.msra.mxu0 0.0
  %2546 = vmatprep.subr.mxu0 0.0
  %2547 = vmatpush1.msra.mxu0 0.0
  %2548 = vmatprep.subr.mxu0 0.0
  %2549 = vmatpush1.msra.mxu0 0.0
  %2550 = vmatprep.subr.mxu0 0.0
  %2551 = vmatpush1.msra.mxu0 0.0
  %2552 = vmatprep.mubr.f32.mxu0 0.0
  %2553 = vmatmul.mubr.f32.gmra.mrb[0].mxu0 %v2474
  %v2554 = vpop.f32.mrb[0].mxu0
  %v2555 = vadd.f32 0.0, %v2554
  %v2556 = vpop.f32.mrb[0].mxu0
  %v2557 = vadd.f32 0.0, %v2556
  %2558 = vdwg.mxu0
  %2559 = vmatprep.subr.mxu0 %v2486
  %2560 = vmatpush1.msra.mxu0 %v2483
  %2561 = vmatprep.subr.mxu0 0.0
  %2562 = vmatpush1.msra.mxu0 0.0
  %2563 = vmatprep.subr.mxu0 0.0
  %2564 = vmatpush1.msra.mxu0 0.0
  %2565 = vmatprep.subr.mxu0 0.0
  %2566 = vmatpush1.msra.mxu0 0.0
  %2567 = vmatprep.subr.mxu0 0.0
  %2568 = vmatpush1.msra.mxu0 0.0
  %2569 = vmatprep.subr.mxu0 0.0
  %2570 = vmatpush1.msra.mxu0 0.0
  %2571 = vmatprep.subr.mxu0 0.0
  %2572 = vmatpush1.msra.mxu0 0.0
  %2573 = vmatprep.subr.mxu0 0.0
  %2574 = vmatpush1.msra.mxu0 0.0
  %2575 = vmatprep.subr.mxu0 0.0
  %2576 = vmatpush1.msra.mxu0 0.0
  %2577 = vmatprep.subr.mxu0 0.0
  %2578 = vmatpush1.msra.mxu0 0.0
  %2579 = vmatprep.subr.mxu0 0.0
  %2580 = vmatpush1.msra.mxu0 0.0
  %2581 = vmatprep.subr.mxu0 0.0
  %2582 = vmatpush1.msra.mxu0 0.0
  %2583 = vmatprep.subr.mxu0 0.0
  %2584 = vmatpush1.msra.mxu0 0.0
  %2585 = vmatprep.subr.mxu0 0.0
  %2586 = vmatpush1.msra.mxu0 0.0
  %2587 = vmatprep.subr.mxu0 0.0
  %2588 = vmatpush1.msra.mxu0 0.0
  %2589 = vmatprep.subr.mxu0 0.0
  %2590 = vmatpush1.msra.mxu0 0.0
  %2591 = vmatprep.subr.mxu0 0.0
  %2592 = vmatpush1.msra.mxu0 0.0
  %2593 = vmatprep.subr.mxu0 0.0
  %2594 = vmatpush1.msra.mxu0 0.0
  %2595 = vmatprep.subr.mxu0 0.0
  %2596 = vmatpush1.msra.mxu0 0.0
  %2597 = vmatprep.subr.mxu0 0.0
  %2598 = vmatpush1.msra.mxu0 0.0
  %2599 = vmatprep.subr.mxu0 0.0
  %2600 = vmatpush1.msra.mxu0 0.0
  %2601 = vmatprep.subr.mxu0 0.0
  %2602 = vmatpush1.msra.mxu0 0.0
  %2603 = vmatprep.subr.mxu0 0.0
  %2604 = vmatpush1.msra.mxu0 0.0
  %2605 = vmatprep.subr.mxu0 0.0
  %2606 = vmatpush1.msra.mxu0 0.0
  %2607 = vmatprep.subr.mxu0 0.0
  %2608 = vmatpush1.msra.mxu0 0.0
  %2609 = vmatprep.subr.mxu0 0.0
  %2610 = vmatpush1.msra.mxu0 0.0
  %2611 = vmatprep.subr.mxu0 0.0
  %2612 = vmatpush1.msra.mxu0 0.0
  %2613 = vmatprep.subr.mxu0 0.0
  %2614 = vmatpush1.msra.mxu0 0.0
  %2615 = vmatprep.subr.mxu0 0.0
  %2616 = vmatpush1.msra.mxu0 0.0
  %2617 = vmatprep.subr.mxu0 0.0
  %2618 = vmatpush1.msra.mxu0 0.0
  %2619 = vmatprep.subr.mxu0 0.0
  %2620 = vmatpush1.msra.mxu0 0.0
  %2621 = vmatprep.subr.mxu0 0.0
  %2622 = vmatpush1.msra.mxu0 0.0
  %2623 = vmatprep.mubr.f32.mxu0 0.0
  %2624 = vmatmul.mubr.f32.gmra.mrb[0].mxu0 %v2474
  %v2625 = vpop.f32.mrb[0].mxu0
  %v2626 = vadd.f32 0.0, %v2625
  %v2627 = vpop.f32.mrb[0].mxu0
  %v2628 = vadd.f32 0.0, %v2627
  %2629 = vdwg.mxu0
  %v2630 = vadd.f32 %v2437, %v2555
  %v2631 = vadd.f32 %v2438, %v2557
  %v2632 = vadd.f32 %v2439, %v2626
  %v2633 = vadd.f32 %v2440, %v2628
  %v2634 = vlaneseq
  %v2635 = vshrl.u32 %v2634, 7
  %v2636 = vsub.s32 4, %v2635
  %v2637 = vrot.slane %v54, %v2636
  %v2638 = vlaneseq
  %v2639 = vshrl.u32 %v2638, 7
  %v2640 = vsub.s32 4, %v2639
  %v2641 = vrot.slane %v55, %v2640
  %v2642 = vlaneseq
  %v2643 = vshrl.u32 %v2642, 7
  %v2644 = vsub.s32 4, %v2643
  %v2645 = vrot.slane %v56, %v2644
  %v2646 = vlaneseq
  %v2647 = vshrl.u32 %v2646, 7
  %v2648 = vsub.s32 4, %v2647
  %v2649 = vrot.slane %v57, %v2648
  %v2650 = vmul.f32 %v1866, %v2637
  %v2651 = vmul.f32 %v1867, %v2641
  %v2652 = vmul.f32 %v1868, %v2645
  %v2653 = vmul.f32 %v1869, %v2649
  %v2655 = vsel %vm137, %v41, 0
  %v2658 = vsel %vm141, %v2650, 0
  %v2661 = vsel %vm141, %v2651, 0
  %v2664 = vsel %vm141, %v2652, 0
  %v2667 = vsel %vm141, %v2653, 0
  %2669 = vmatprep.subr.mxu0 %v2661
  %2670 = vmatpush1.msra.mxu0 %v2658
  %2671 = vmatprep.subr.mxu0 0.0
  %2672 = vmatpush1.msra.mxu0 0.0
  %2673 = vmatprep.subr.mxu0 0.0
  %2674 = vmatpush1.msra.mxu0 0.0
  %2675 = vmatprep.subr.mxu0 0.0
  %2676 = vmatpush1.msra.mxu0 0.0
  %2677 = vmatprep.subr.mxu0 0.0
  %2678 = vmatpush1.msra.mxu0 0.0
  %2679 = vmatprep.subr.mxu0 0.0
  %2680 = vmatpush1.msra.mxu0 0.0
  %2681 = vmatprep.subr.mxu0 0.0
  %2682 = vmatpush1.msra.mxu0 0.0
  %2683 = vmatprep.subr.mxu0 0.0
  %2684 = vmatpush1.msra.mxu0 0.0
  %2685 = vmatprep.subr.mxu0 0.0
  %2686 = vmatpush1.msra.mxu0 0.0
  %2687 = vmatprep.subr.mxu0 0.0
  %2688 = vmatpush1.msra.mxu0 0.0
  %2689 = vmatprep.subr.mxu0 0.0
  %2690 = vmatpush1.msra.mxu0 0.0
  %2691 = vmatprep.subr.mxu0 0.0
  %2692 = vmatpush1.msra.mxu0 0.0
  %2693 = vmatprep.subr.mxu0 0.0
  %2694 = vmatpush1.msra.mxu0 0.0
  %2695 = vmatprep.subr.mxu0 0.0
  %2696 = vmatpush1.msra.mxu0 0.0
  %2697 = vmatprep.subr.mxu0 0.0
  %2698 = vmatpush1.msra.mxu0 0.0
  %2699 = vmatprep.subr.mxu0 0.0
  %2700 = vmatpush1.msra.mxu0 0.0
  %2701 = vmatprep.subr.mxu0 0.0
  %2702 = vmatpush1.msra.mxu0 0.0
  %2703 = vmatprep.subr.mxu0 0.0
  %2704 = vmatpush1.msra.mxu0 0.0
  %2705 = vmatprep.subr.mxu0 0.0
  %2706 = vmatpush1.msra.mxu0 0.0
  %2707 = vmatprep.subr.mxu0 0.0
  %2708 = vmatpush1.msra.mxu0 0.0
  %2709 = vmatprep.subr.mxu0 0.0
  %2710 = vmatpush1.msra.mxu0 0.0
  %2711 = vmatprep.subr.mxu0 0.0
  %2712 = vmatpush1.msra.mxu0 0.0
  %2713 = vmatprep.subr.mxu0 0.0
  %2714 = vmatpush1.msra.mxu0 0.0
  %2715 = vmatprep.subr.mxu0 0.0
  %2716 = vmatpush1.msra.mxu0 0.0
  %2717 = vmatprep.subr.mxu0 0.0
  %2718 = vmatpush1.msra.mxu0 0.0
  %2719 = vmatprep.subr.mxu0 0.0
  %2720 = vmatpush1.msra.mxu0 0.0
  %2721 = vmatprep.subr.mxu0 0.0
  %2722 = vmatpush1.msra.mxu0 0.0
  %2723 = vmatprep.subr.mxu0 0.0
  %2724 = vmatpush1.msra.mxu0 0.0
  %2725 = vmatprep.subr.mxu0 0.0
  %2726 = vmatpush1.msra.mxu0 0.0
  %2727 = vmatprep.subr.mxu0 0.0
  %2728 = vmatpush1.msra.mxu0 0.0
  %2729 = vmatprep.subr.mxu0 0.0
  %2730 = vmatpush1.msra.mxu0 0.0
  %2731 = vmatprep.subr.mxu0 0.0
  %2732 = vmatpush1.msra.mxu0 0.0
  %2733 = vmatprep.mubr.f32.mxu0 0.0
  %2734 = vmatmul.mubr.f32.gmra.mrb[0].mxu0 %v2655
  %v2735 = vpop.f32.mrb[0].mxu0
  %v2736 = vadd.f32 0.0, %v2735
  %v2737 = vpop.f32.mrb[0].mxu0
  %v2738 = vadd.f32 0.0, %v2737
  %2739 = vdwg.mxu0
  %2740 = vmatprep.subr.mxu0 %v2667
  %2741 = vmatpush1.msra.mxu0 %v2664
  %2742 = vmatprep.subr.mxu0 0.0
  %2743 = vmatpush1.msra.mxu0 0.0
  %2744 = vmatprep.subr.mxu0 0.0
  %2745 = vmatpush1.msra.mxu0 0.0
  %2746 = vmatprep.subr.mxu0 0.0
  %2747 = vmatpush1.msra.mxu0 0.0
  %2748 = vmatprep.subr.mxu0 0.0
  %2749 = vmatpush1.msra.mxu0 0.0
  %2750 = vmatprep.subr.mxu0 0.0
  %2751 = vmatpush1.msra.mxu0 0.0
  %2752 = vmatprep.subr.mxu0 0.0
  %2753 = vmatpush1.msra.mxu0 0.0
  %2754 = vmatprep.subr.mxu0 0.0
  %2755 = vmatpush1.msra.mxu0 0.0
  %2756 = vmatprep.subr.mxu0 0.0
  %2757 = vmatpush1.msra.mxu0 0.0
  %2758 = vmatprep.subr.mxu0 0.0
  %2759 = vmatpush1.msra.mxu0 0.0
  %2760 = vmatprep.subr.mxu0 0.0
  %2761 = vmatpush1.msra.mxu0 0.0
  %2762 = vmatprep.subr.mxu0 0.0
  %2763 = vmatpush1.msra.mxu0 0.0
  %2764 = vmatprep.subr.mxu0 0.0
  %2765 = vmatpush1.msra.mxu0 0.0
  %2766 = vmatprep.subr.mxu0 0.0
  %2767 = vmatpush1.msra.mxu0 0.0
  %2768 = vmatprep.subr.mxu0 0.0
  %2769 = vmatpush1.msra.mxu0 0.0
  %2770 = vmatprep.subr.mxu0 0.0
  %2771 = vmatpush1.msra.mxu0 0.0
  %2772 = vmatprep.subr.mxu0 0.0
  %2773 = vmatpush1.msra.mxu0 0.0
  %2774 = vmatprep.subr.mxu0 0.0
  %2775 = vmatpush1.msra.mxu0 0.0
  %2776 = vmatprep.subr.mxu0 0.0
  %2777 = vmatpush1.msra.mxu0 0.0
  %2778 = vmatprep.subr.mxu0 0.0
  %2779 = vmatpush1.msra.mxu0 0.0
  %2780 = vmatprep.subr.mxu0 0.0
  %2781 = vmatpush1.msra.mxu0 0.0
  %2782 = vmatprep.subr.mxu0 0.0
  %2783 = vmatpush1.msra.mxu0 0.0
  %2784 = vmatprep.subr.mxu0 0.0
  %2785 = vmatpush1.msra.mxu0 0.0
  %2786 = vmatprep.subr.mxu0 0.0
  %2787 = vmatpush1.msra.mxu0 0.0
  %2788 = vmatprep.subr.mxu0 0.0
  %2789 = vmatpush1.msra.mxu0 0.0
  %2790 = vmatprep.subr.mxu0 0.0
  %2791 = vmatpush1.msra.mxu0 0.0
  %2792 = vmatprep.subr.mxu0 0.0
  %2793 = vmatpush1.msra.mxu0 0.0
  %2794 = vmatprep.subr.mxu0 0.0
  %2795 = vmatpush1.msra.mxu0 0.0
  %2796 = vmatprep.subr.mxu0 0.0
  %2797 = vmatpush1.msra.mxu0 0.0
  %2798 = vmatprep.subr.mxu0 0.0
  %2799 = vmatpush1.msra.mxu0 0.0
  %2800 = vmatprep.subr.mxu0 0.0
  %2801 = vmatpush1.msra.mxu0 0.0
  %2802 = vmatprep.subr.mxu0 0.0
  %2803 = vmatpush1.msra.mxu0 0.0
  %2804 = vmatprep.mubr.f32.mxu0 0.0
  %2805 = vmatmul.mubr.f32.gmra.mrb[0].mxu0 %v2655
  %v2806 = vpop.f32.mrb[0].mxu0
  %v2807 = vadd.f32 0.0, %v2806
  %v2808 = vpop.f32.mrb[0].mxu0
  %v2809 = vadd.f32 0.0, %v2808
  %2810 = vdwg.mxu0
  %v2811 = vadd.f32 %v2630, %v2736
  %v2812 = vadd.f32 %v2631, %v2738
  %v2813 = vadd.f32 %v2632, %v2807
  %v2814 = vadd.f32 %v2633, %v2809
  %2815 = vrot.lane.b32.xlu0 %v1866, 127
  %v2816 = vpop.permute.xlu0 %2815
  %2817 = vrot.lane.b32.xlu0 %v1867, 127
  %v2818 = vpop.permute.xlu0 %2817
  %2819 = vrot.lane.b32.xlu0 %v1868, 127
  %v2820 = vpop.permute.xlu0 %2819
  %2821 = vrot.lane.b32.xlu0 %v1869, 127
  %v2822 = vpop.permute.xlu0 %2821
  %v2823 = vsel %vm1036, %v2820, %v2822
  %v2824 = vsel %vm1036, %v2818, %v2820
  %v2825 = vsel %vm1036, %v2816, %v2818
  %v2826 = vsel %vm1036, %v2822, %v2816
  %v2827 = vlaneseq
  %v2828 = vshrl.u32 %v2827, 7
  %v2829 = vsub.s32 5, %v2828
  %v2830 = vrot.slane %v54, %v2829
  %v2831 = vlaneseq
  %v2832 = vshrl.u32 %v2831, 7
  %v2833 = vsub.s32 5, %v2832
  %v2834 = vrot.slane %v55, %v2833
  %v2835 = vlaneseq
  %v2836 = vshrl.u32 %v2835, 7
  %v2837 = vsub.s32 5, %v2836
  %v2838 = vrot.slane %v56, %v2837
  %v2839 = vlaneseq
  %v2840 = vshrl.u32 %v2839, 7
  %v2841 = vsub.s32 5, %v2840
  %v2842 = vrot.slane %v57, %v2841
  %v2843 = vmul.f32 %v2825, %v2830
  %v2844 = vmul.f32 %v2824, %v2834
  %v2845 = vmul.f32 %v2823, %v2838
  %v2846 = vmul.f32 %v2826, %v2842
  %v2848 = vsel %vm137, %v42, 0
  %v2851 = vsel %vm141, %v2843, 0
  %v2854 = vsel %vm141, %v2844, 0
  %v2857 = vsel %vm141, %v2845, 0
  %v2860 = vsel %vm141, %v2846, 0
  %2862 = vmatprep.subr.mxu0 %v2854
  %2863 = vmatpush1.msra.mxu0 %v2851
  %2864 = vmatprep.subr.mxu0 0.0
  %2865 = vmatpush1.msra.mxu0 0.0
  %2866 = vmatprep.subr.mxu0 0.0
  %2867 = vmatpush1.msra.mxu0 0.0
  %2868 = vmatprep.subr.mxu0 0.0
  %2869 = vmatpush1.msra.mxu0 0.0
  %2870 = vmatprep.subr.mxu0 0.0
  %2871 = vmatpush1.msra.mxu0 0.0
  %2872 = vmatprep.subr.mxu0 0.0
  %2873 = vmatpush1.msra.mxu0 0.0
  %2874 = vmatprep.subr.mxu0 0.0
  %2875 = vmatpush1.msra.mxu0 0.0
  %2876 = vmatprep.subr.mxu0 0.0
  %2877 = vmatpush1.msra.mxu0 0.0
  %2878 = vmatprep.subr.mxu0 0.0
  %2879 = vmatpush1.msra.mxu0 0.0
  %2880 = vmatprep.subr.mxu0 0.0
  %2881 = vmatpush1.msra.mxu0 0.0
  %2882 = vmatprep.subr.mxu0 0.0
  %2883 = vmatpush1.msra.mxu0 0.0
  %2884 = vmatprep.subr.mxu0 0.0
  %2885 = vmatpush1.msra.mxu0 0.0
  %2886 = vmatprep.subr.mxu0 0.0
  %2887 = vmatpush1.msra.mxu0 0.0
  %2888 = vmatprep.subr.mxu0 0.0
  %2889 = vmatpush1.msra.mxu0 0.0
  %2890 = vmatprep.subr.mxu0 0.0
  %2891 = vmatpush1.msra.mxu0 0.0
  %2892 = vmatprep.subr.mxu0 0.0
  %2893 = vmatpush1.msra.mxu0 0.0
  %2894 = vmatprep.subr.mxu0 0.0
  %2895 = vmatpush1.msra.mxu0 0.0
  %2896 = vmatprep.subr.mxu0 0.0
  %2897 = vmatpush1.msra.mxu0 0.0
  %2898 = vmatprep.subr.mxu0 0.0
  %2899 = vmatpush1.msra.mxu0 0.0
  %2900 = vmatprep.subr.mxu0 0.0
  %2901 = vmatpush1.msra.mxu0 0.0
  %2902 = vmatprep.subr.mxu0 0.0
  %2903 = vmatpush1.msra.mxu0 0.0
  %2904 = vmatprep.subr.mxu0 0.0
  %2905 = vmatpush1.msra.mxu0 0.0
  %2906 = vmatprep.subr.mxu0 0.0
  %2907 = vmatpush1.msra.mxu0 0.0
  %2908 = vmatprep.subr.mxu0 0.0
  %2909 = vmatpush1.msra.mxu0 0.0
  %2910 = vmatprep.subr.mxu0 0.0
  %2911 = vmatpush1.msra.mxu0 0.0
  %2912 = vmatprep.subr.mxu0 0.0
  %2913 = vmatpush1.msra.mxu0 0.0
  %2914 = vmatprep.subr.mxu0 0.0
  %2915 = vmatpush1.msra.mxu0 0.0
  %2916 = vmatprep.subr.mxu0 0.0
  %2917 = vmatpush1.msra.mxu0 0.0
  %2918 = vmatprep.subr.mxu0 0.0
  %2919 = vmatpush1.msra.mxu0 0.0
  %2920 = vmatprep.subr.mxu0 0.0
  %2921 = vmatpush1.msra.mxu0 0.0
  %2922 = vmatprep.subr.mxu0 0.0
  %2923 = vmatpush1.msra.mxu0 0.0
  %2924 = vmatprep.subr.mxu0 0.0
  %2925 = vmatpush1.msra.mxu0 0.0
  %2926 = vmatprep.mubr.f32.mxu0 0.0
  %2927 = vmatmul.mubr.f32.gmra.mrb[0].mxu0 %v2848
  %v2928 = vpop.f32.mrb[0].mxu0
  %v2929 = vadd.f32 0.0, %v2928
  %v2930 = vpop.f32.mrb[0].mxu0
  %v2931 = vadd.f32 0.0, %v2930
  %2932 = vdwg.mxu0
  %2933 = vmatprep.subr.mxu0 %v2860
  %2934 = vmatpush1.msra.mxu0 %v2857
  %2935 = vmatprep.subr.mxu0 0.0
  %2936 = vmatpush1.msra.mxu0 0.0
  %2937 = vmatprep.subr.mxu0 0.0
  %2938 = vmatpush1.msra.mxu0 0.0
  %2939 = vmatprep.subr.mxu0 0.0
  %2940 = vmatpush1.msra.mxu0 0.0
  %2941 = vmatprep.subr.mxu0 0.0
  %2942 = vmatpush1.msra.mxu0 0.0
  %2943 = vmatprep.subr.mxu0 0.0
  %2944 = vmatpush1.msra.mxu0 0.0
  %2945 = vmatprep.subr.mxu0 0.0
  %2946 = vmatpush1.msra.mxu0 0.0
  %2947 = vmatprep.subr.mxu0 0.0
  %2948 = vmatpush1.msra.mxu0 0.0
  %2949 = vmatprep.subr.mxu0 0.0
  %2950 = vmatpush1.msra.mxu0 0.0
  %2951 = vmatprep.subr.mxu0 0.0
  %2952 = vmatpush1.msra.mxu0 0.0
  %2953 = vmatprep.subr.mxu0 0.0
  %2954 = vmatpush1.msra.mxu0 0.0
  %2955 = vmatprep.subr.mxu0 0.0
  %2956 = vmatpush1.msra.mxu0 0.0
  %2957 = vmatprep.subr.mxu0 0.0
  %2958 = vmatpush1.msra.mxu0 0.0
  %2959 = vmatprep.subr.mxu0 0.0
  %2960 = vmatpush1.msra.mxu0 0.0
  %2961 = vmatprep.subr.mxu0 0.0
  %2962 = vmatpush1.msra.mxu0 0.0
  %2963 = vmatprep.subr.mxu0 0.0
  %2964 = vmatpush1.msra.mxu0 0.0
  %2965 = vmatprep.subr.mxu0 0.0
  %2966 = vmatpush1.msra.mxu0 0.0
  %2967 = vmatprep.subr.mxu0 0.0
  %2968 = vmatpush1.msra.mxu0 0.0
  %2969 = vmatprep.subr.mxu0 0.0
  %2970 = vmatpush1.msra.mxu0 0.0
  %2971 = vmatprep.subr.mxu0 0.0
  %2972 = vmatpush1.msra.mxu0 0.0
  %2973 = vmatprep.subr.mxu0 0.0
  %2974 = vmatpush1.msra.mxu0 0.0
  %2975 = vmatprep.subr.mxu0 0.0
  %2976 = vmatpush1.msra.mxu0 0.0
  %2977 = vmatprep.subr.mxu0 0.0
  %2978 = vmatpush1.msra.mxu0 0.0
  %2979 = vmatprep.subr.mxu0 0.0
  %2980 = vmatpush1.msra.mxu0 0.0
  %2981 = vmatprep.subr.mxu0 0.0
  %2982 = vmatpush1.msra.mxu0 0.0
  %2983 = vmatprep.subr.mxu0 0.0
  %2984 = vmatpush1.msra.mxu0 0.0
  %2985 = vmatprep.subr.mxu0 0.0
  %2986 = vmatpush1.msra.mxu0 0.0
  %2987 = vmatprep.subr.mxu0 0.0
  %2988 = vmatpush1.msra.mxu0 0.0
  %2989 = vmatprep.subr.mxu0 0.0
  %2990 = vmatpush1.msra.mxu0 0.0
  %2991 = vmatprep.subr.mxu0 0.0
  %2992 = vmatpush1.msra.mxu0 0.0
  %2993 = vmatprep.subr.mxu0 0.0
  %2994 = vmatpush1.msra.mxu0 0.0
  %2995 = vmatprep.subr.mxu0 0.0
  %2996 = vmatpush1.msra.mxu0 0.0
  %2997 = vmatprep.mubr.f32.mxu0 0.0
  %2998 = vmatmul.mubr.f32.gmra.mrb[0].mxu0 %v2848
  %v2999 = vpop.f32.mrb[0].mxu0
  %v3000 = vadd.f32 0.0, %v2999
  %v3001 = vpop.f32.mrb[0].mxu0
  %v3002 = vadd.f32 0.0, %v3001
  %3003 = vdwg.mxu0
  %v3004 = vadd.f32 %v2811, %v2929
  %v3005 = vadd.f32 %v2812, %v2931
  %v3006 = vadd.f32 %v2813, %v3000
  %v3007 = vadd.f32 %v2814, %v3002
  %3008 = vrot.lane.b32.xlu0 %v1866, 113
  %v3009 = vpop.permute.xlu0 %3008
  %3010 = vrot.lane.b32.xlu0 %v1867, 113
  %v3011 = vpop.permute.xlu0 %3010
  %3012 = vrot.lane.b32.xlu0 %v1868, 113
  %v3013 = vpop.permute.xlu0 %3012
  %3014 = vrot.lane.b32.xlu0 %v1869, 113
  %v3015 = vpop.permute.xlu0 %3014
  %v3016 = vsel %vm1230, %v3013, %v3015
  %v3017 = vsel %vm1230, %v3011, %v3013
  %v3018 = vsel %vm1230, %v3009, %v3011
  %v3019 = vsel %vm1230, %v3015, %v3009
  %v3020 = vlaneseq
  %v3021 = vshrl.u32 %v3020, 7
  %v3022 = vsub.s32 6, %v3021
  %v3023 = vrot.slane %v54, %v3022
  %v3024 = vlaneseq
  %v3025 = vshrl.u32 %v3024, 7
  %v3026 = vsub.s32 6, %v3025
  %v3027 = vrot.slane %v55, %v3026
  %v3028 = vlaneseq
  %v3029 = vshrl.u32 %v3028, 7
  %v3030 = vsub.s32 6, %v3029
  %v3031 = vrot.slane %v56, %v3030
  %v3032 = vlaneseq
  %v3033 = vshrl.u32 %v3032, 7
  %v3034 = vsub.s32 6, %v3033
  %v3035 = vrot.slane %v57, %v3034
  %v3036 = vmul.f32 %v3018, %v3023
  %v3037 = vmul.f32 %v3017, %v3027
  %v3038 = vmul.f32 %v3016, %v3031
  %v3039 = vmul.f32 %v3019, %v3035
  %v3041 = vsel %vm137, %v43, 0
  %v3044 = vsel %vm141, %v3036, 0
  %v3047 = vsel %vm141, %v3037, 0
  %v3050 = vsel %vm141, %v3038, 0
  %v3053 = vsel %vm141, %v3039, 0
  %3055 = vmatprep.subr.mxu0 %v3047
  %3056 = vmatpush1.msra.mxu0 %v3044
  %3057 = vmatprep.subr.mxu0 0.0
  %3058 = vmatpush1.msra.mxu0 0.0
  %3059 = vmatprep.subr.mxu0 0.0
  %3060 = vmatpush1.msra.mxu0 0.0
  %3061 = vmatprep.subr.mxu0 0.0
  %3062 = vmatpush1.msra.mxu0 0.0
  %3063 = vmatprep.subr.mxu0 0.0
  %3064 = vmatpush1.msra.mxu0 0.0
  %3065 = vmatprep.subr.mxu0 0.0
  %3066 = vmatpush1.msra.mxu0 0.0
  %3067 = vmatprep.subr.mxu0 0.0
  %3068 = vmatpush1.msra.mxu0 0.0
  %3069 = vmatprep.subr.mxu0 0.0
  %3070 = vmatpush1.msra.mxu0 0.0
  %3071 = vmatprep.subr.mxu0 0.0
  %3072 = vmatpush1.msra.mxu0 0.0
  %3073 = vmatprep.subr.mxu0 0.0
  %3074 = vmatpush1.msra.mxu0 0.0
  %3075 = vmatprep.subr.mxu0 0.0
  %3076 = vmatpush1.msra.mxu0 0.0
  %3077 = vmatprep.subr.mxu0 0.0
  %3078 = vmatpush1.msra.mxu0 0.0
  %3079 = vmatprep.subr.mxu0 0.0
  %3080 = vmatpush1.msra.mxu0 0.0
  %3081 = vmatprep.subr.mxu0 0.0
  %3082 = vmatpush1.msra.mxu0 0.0
  %3083 = vmatprep.subr.mxu0 0.0
  %3084 = vmatpush1.msra.mxu0 0.0
  %3085 = vmatprep.subr.mxu0 0.0
  %3086 = vmatpush1.msra.mxu0 0.0
  %3087 = vmatprep.subr.mxu0 0.0
  %3088 = vmatpush1.msra.mxu0 0.0
  %3089 = vmatprep.subr.mxu0 0.0
  %3090 = vmatpush1.msra.mxu0 0.0
  %3091 = vmatprep.subr.mxu0 0.0
  %3092 = vmatpush1.msra.mxu0 0.0
  %3093 = vmatprep.subr.mxu0 0.0
  %3094 = vmatpush1.msra.mxu0 0.0
  %3095 = vmatprep.subr.mxu0 0.0
  %3096 = vmatpush1.msra.mxu0 0.0
  %3097 = vmatprep.subr.mxu0 0.0
  %3098 = vmatpush1.msra.mxu0 0.0
  %3099 = vmatprep.subr.mxu0 0.0
  %3100 = vmatpush1.msra.mxu0 0.0
  %3101 = vmatprep.subr.mxu0 0.0
  %3102 = vmatpush1.msra.mxu0 0.0
  %3103 = vmatprep.subr.mxu0 0.0
  %3104 = vmatpush1.msra.mxu0 0.0
  %3105 = vmatprep.subr.mxu0 0.0
  %3106 = vmatpush1.msra.mxu0 0.0
  %3107 = vmatprep.subr.mxu0 0.0
  %3108 = vmatpush1.msra.mxu0 0.0
  %3109 = vmatprep.subr.mxu0 0.0
  %3110 = vmatpush1.msra.mxu0 0.0
  %3111 = vmatprep.subr.mxu0 0.0
  %3112 = vmatpush1.msra.mxu0 0.0
  %3113 = vmatprep.subr.mxu0 0.0
  %3114 = vmatpush1.msra.mxu0 0.0
  %3115 = vmatprep.subr.mxu0 0.0
  %3116 = vmatpush1.msra.mxu0 0.0
  %3117 = vmatprep.subr.mxu0 0.0
  %3118 = vmatpush1.msra.mxu0 0.0
  %3119 = vmatprep.mubr.f32.mxu0 0.0
  %3120 = vmatmul.mubr.f32.gmra.mrb[0].mxu0 %v3041
  %v3121 = vpop.f32.mrb[0].mxu0
  %v3122 = vadd.f32 0.0, %v3121
  %v3123 = vpop.f32.mrb[0].mxu0
  %v3124 = vadd.f32 0.0, %v3123
  %3125 = vdwg.mxu0
  %3126 = vmatprep.subr.mxu0 %v3053
  %3127 = vmatpush1.msra.mxu0 %v3050
  %3128 = vmatprep.subr.mxu0 0.0
  %3129 = vmatpush1.msra.mxu0 0.0
  %3130 = vmatprep.subr.mxu0 0.0
  %3131 = vmatpush1.msra.mxu0 0.0
  %3132 = vmatprep.subr.mxu0 0.0
  %3133 = vmatpush1.msra.mxu0 0.0
  %3134 = vmatprep.subr.mxu0 0.0
  %3135 = vmatpush1.msra.mxu0 0.0
  %3136 = vmatprep.subr.mxu0 0.0
  %3137 = vmatpush1.msra.mxu0 0.0
  %3138 = vmatprep.subr.mxu0 0.0
  %3139 = vmatpush1.msra.mxu0 0.0
  %3140 = vmatprep.subr.mxu0 0.0
  %3141 = vmatpush1.msra.mxu0 0.0
  %3142 = vmatprep.subr.mxu0 0.0
  %3143 = vmatpush1.msra.mxu0 0.0
  %3144 = vmatprep.subr.mxu0 0.0
  %3145 = vmatpush1.msra.mxu0 0.0
  %3146 = vmatprep.subr.mxu0 0.0
  %3147 = vmatpush1.msra.mxu0 0.0
  %3148 = vmatprep.subr.mxu0 0.0
  %3149 = vmatpush1.msra.mxu0 0.0
  %3150 = vmatprep.subr.mxu0 0.0
  %3151 = vmatpush1.msra.mxu0 0.0
  %3152 = vmatprep.subr.mxu0 0.0
  %3153 = vmatpush1.msra.mxu0 0.0
  %3154 = vmatprep.subr.mxu0 0.0
  %3155 = vmatpush1.msra.mxu0 0.0
  %3156 = vmatprep.subr.mxu0 0.0
  %3157 = vmatpush1.msra.mxu0 0.0
  %3158 = vmatprep.subr.mxu0 0.0
  %3159 = vmatpush1.msra.mxu0 0.0
  %3160 = vmatprep.subr.mxu0 0.0
  %3161 = vmatpush1.msra.mxu0 0.0
  %3162 = vmatprep.subr.mxu0 0.0
  %3163 = vmatpush1.msra.mxu0 0.0
  %3164 = vmatprep.subr.mxu0 0.0
  %3165 = vmatpush1.msra.mxu0 0.0
  %3166 = vmatprep.subr.mxu0 0.0
  %3167 = vmatpush1.msra.mxu0 0.0
  %3168 = vmatprep.subr.mxu0 0.0
  %3169 = vmatpush1.msra.mxu0 0.0
  %3170 = vmatprep.subr.mxu0 0.0
  %3171 = vmatpush1.msra.mxu0 0.0
  %3172 = vmatprep.subr.mxu0 0.0
  %3173 = vmatpush1.msra.mxu0 0.0
  %3174 = vmatprep.subr.mxu0 0.0
  %3175 = vmatpush1.msra.mxu0 0.0
  %3176 = vmatprep.subr.mxu0 0.0
  %3177 = vmatpush1.msra.mxu0 0.0
  %3178 = vmatprep.subr.mxu0 0.0
  %3179 = vmatpush1.msra.mxu0 0.0
  %3180 = vmatprep.subr.mxu0 0.0
  %3181 = vmatpush1.msra.mxu0 0.0
  %3182 = vmatprep.subr.mxu0 0.0
  %3183 = vmatpush1.msra.mxu0 0.0
  %3184 = vmatprep.subr.mxu0 0.0
  %3185 = vmatpush1.msra.mxu0 0.0
  %3186 = vmatprep.subr.mxu0 0.0
  %3187 = vmatpush1.msra.mxu0 0.0
  %3188 = vmatprep.subr.mxu0 0.0
  %3189 = vmatpush1.msra.mxu0 0.0
  %3190 = vmatprep.mubr.f32.mxu0 0.0
  %3191 = vmatmul.mubr.f32.gmra.mrb[0].mxu0 %v3041
  %v3192 = vpop.f32.mrb[0].mxu0
  %v3193 = vadd.f32 0.0, %v3192
  %v3194 = vpop.f32.mrb[0].mxu0
  %v3195 = vadd.f32 0.0, %v3194
  %3196 = vdwg.mxu0
  %v3197 = vadd.f32 %v3004, %v3122
  %v3198 = vadd.f32 %v3005, %v3124
  %v3199 = vadd.f32 %v3006, %v3193
  %v3200 = vadd.f32 %v3007, %v3195
  %3201 = vrot.lane.b32.xlu0 %v1866, 112
  %v3202 = vpop.permute.xlu0 %3201
  %3203 = vrot.lane.b32.xlu0 %v1867, 112
  %v3204 = vpop.permute.xlu0 %3203
  %3205 = vrot.lane.b32.xlu0 %v1868, 112
  %v3206 = vpop.permute.xlu0 %3205
  %3207 = vrot.lane.b32.xlu0 %v1869, 112
  %v3208 = vpop.permute.xlu0 %3207
  %v3209 = vsel %vm1424, %v3206, %v3208
  %v3210 = vsel %vm1424, %v3204, %v3206
  %v3211 = vsel %vm1424, %v3202, %v3204
  %v3212 = vsel %vm1424, %v3208, %v3202
  %v3213 = vlaneseq
  %v3214 = vshrl.u32 %v3213, 7
  %v3215 = vsub.s32 7, %v3214
  %v3216 = vrot.slane %v54, %v3215
  %v3217 = vlaneseq
  %v3218 = vshrl.u32 %v3217, 7
  %v3219 = vsub.s32 7, %v3218
  %v3220 = vrot.slane %v55, %v3219
  %v3221 = vlaneseq
  %v3222 = vshrl.u32 %v3221, 7
  %v3223 = vsub.s32 7, %v3222
  %v3224 = vrot.slane %v56, %v3223
  %v3225 = vlaneseq
  %v3226 = vshrl.u32 %v3225, 7
  %v3227 = vsub.s32 7, %v3226
  %v3228 = vrot.slane %v57, %v3227
  %v3229 = vmul.f32 %v3211, %v3216
  %v3230 = vmul.f32 %v3210, %v3220
  %v3231 = vmul.f32 %v3209, %v3224
  %v3232 = vmul.f32 %v3212, %v3228
  %v3234 = vsel %vm137, %v44, 0
  %v3237 = vsel %vm141, %v3229, 0
  %v3240 = vsel %vm141, %v3230, 0
  %v3243 = vsel %vm141, %v3231, 0
  %v3246 = vsel %vm141, %v3232, 0
  %3248 = vmatprep.subr.mxu0 %v3240
  %3249 = vmatpush1.msra.mxu0 %v3237
  %3250 = vmatprep.subr.mxu0 0.0
  %3251 = vmatpush1.msra.mxu0 0.0
  %3252 = vmatprep.subr.mxu0 0.0
  %3253 = vmatpush1.msra.mxu0 0.0
  %3254 = vmatprep.subr.mxu0 0.0
  %3255 = vmatpush1.msra.mxu0 0.0
  %3256 = vmatprep.subr.mxu0 0.0
  %3257 = vmatpush1.msra.mxu0 0.0
  %3258 = vmatprep.subr.mxu0 0.0
  %3259 = vmatpush1.msra.mxu0 0.0
  %3260 = vmatprep.subr.mxu0 0.0
  %3261 = vmatpush1.msra.mxu0 0.0
  %3262 = vmatprep.subr.mxu0 0.0
  %3263 = vmatpush1.msra.mxu0 0.0
  %3264 = vmatprep.subr.mxu0 0.0
  %3265 = vmatpush1.msra.mxu0 0.0
  %3266 = vmatprep.subr.mxu0 0.0
  %3267 = vmatpush1.msra.mxu0 0.0
  %3268 = vmatprep.subr.mxu0 0.0
  %3269 = vmatpush1.msra.mxu0 0.0
  %3270 = vmatprep.subr.mxu0 0.0
  %3271 = vmatpush1.msra.mxu0 0.0
  %3272 = vmatprep.subr.mxu0 0.0
  %3273 = vmatpush1.msra.mxu0 0.0
  %3274 = vmatprep.subr.mxu0 0.0
  %3275 = vmatpush1.msra.mxu0 0.0
  %3276 = vmatprep.subr.mxu0 0.0
  %3277 = vmatpush1.msra.mxu0 0.0
  %3278 = vmatprep.subr.mxu0 0.0
  %3279 = vmatpush1.msra.mxu0 0.0
  %3280 = vmatprep.subr.mxu0 0.0
  %3281 = vmatpush1.msra.mxu0 0.0
  %3282 = vmatprep.subr.mxu0 0.0
  %3283 = vmatpush1.msra.mxu0 0.0
  %3284 = vmatprep.subr.mxu0 0.0
  %3285 = vmatpush1.msra.mxu0 0.0
  %3286 = vmatprep.subr.mxu0 0.0
  %3287 = vmatpush1.msra.mxu0 0.0
  %3288 = vmatprep.subr.mxu0 0.0
  %3289 = vmatpush1.msra.mxu0 0.0
  %3290 = vmatprep.subr.mxu0 0.0
  %3291 = vmatpush1.msra.mxu0 0.0
  %3292 = vmatprep.subr.mxu0 0.0
  %3293 = vmatpush1.msra.mxu0 0.0
  %3294 = vmatprep.subr.mxu0 0.0
  %3295 = vmatpush1.msra.mxu0 0.0
  %3296 = vmatprep.subr.mxu0 0.0
  %3297 = vmatpush1.msra.mxu0 0.0
  %3298 = vmatprep.subr.mxu0 0.0
  %3299 = vmatpush1.msra.mxu0 0.0
  %3300 = vmatprep.subr.mxu0 0.0
  %3301 = vmatpush1.msra.mxu0 0.0
  %3302 = vmatprep.subr.mxu0 0.0
  %3303 = vmatpush1.msra.mxu0 0.0
  %3304 = vmatprep.subr.mxu0 0.0
  %3305 = vmatpush1.msra.mxu0 0.0
  %3306 = vmatprep.subr.mxu0 0.0
  %3307 = vmatpush1.msra.mxu0 0.0
  %3308 = vmatprep.subr.mxu0 0.0
  %3309 = vmatpush1.msra.mxu0 0.0
  %3310 = vmatprep.subr.mxu0 0.0
  %3311 = vmatpush1.msra.mxu0 0.0
  %3312 = vmatprep.mubr.f32.mxu0 0.0
  %3313 = vmatmul.mubr.f32.gmra.mrb[0].mxu0 %v3234
  %v3314 = vpop.f32.mrb[0].mxu0
  %v3315 = vadd.f32 0.0, %v3314
  %v3316 = vpop.f32.mrb[0].mxu0
  %v3317 = vadd.f32 0.0, %v3316
  %3318 = vdwg.mxu0
  %3319 = vmatprep.subr.mxu0 %v3246
  %3320 = vmatpush1.msra.mxu0 %v3243
  %3321 = vmatprep.subr.mxu0 0.0
  %3322 = vmatpush1.msra.mxu0 0.0
  %3323 = vmatprep.subr.mxu0 0.0
  %3324 = vmatpush1.msra.mxu0 0.0
  %3325 = vmatprep.subr.mxu0 0.0
  %3326 = vmatpush1.msra.mxu0 0.0
  %3327 = vmatprep.subr.mxu0 0.0
  %3328 = vmatpush1.msra.mxu0 0.0
  %3329 = vmatprep.subr.mxu0 0.0
  %3330 = vmatpush1.msra.mxu0 0.0
  %3331 = vmatprep.subr.mxu0 0.0
  %3332 = vmatpush1.msra.mxu0 0.0
  %3333 = vmatprep.subr.mxu0 0.0
  %3334 = vmatpush1.msra.mxu0 0.0
  %3335 = vmatprep.subr.mxu0 0.0
  %3336 = vmatpush1.msra.mxu0 0.0
  %3337 = vmatprep.subr.mxu0 0.0
  %3338 = vmatpush1.msra.mxu0 0.0
  %3339 = vmatprep.subr.mxu0 0.0
  %3340 = vmatpush1.msra.mxu0 0.0
  %3341 = vmatprep.subr.mxu0 0.0
  %3342 = vmatpush1.msra.mxu0 0.0
  %3343 = vmatprep.subr.mxu0 0.0
  %3344 = vmatpush1.msra.mxu0 0.0
  %3345 = vmatprep.subr.mxu0 0.0
  %3346 = vmatpush1.msra.mxu0 0.0
  %3347 = vmatprep.subr.mxu0 0.0
  %3348 = vmatpush1.msra.mxu0 0.0
  %3349 = vmatprep.subr.mxu0 0.0
  %3350 = vmatpush1.msra.mxu0 0.0
  %3351 = vmatprep.subr.mxu0 0.0
  %3352 = vmatpush1.msra.mxu0 0.0
  %3353 = vmatprep.subr.mxu0 0.0
  %3354 = vmatpush1.msra.mxu0 0.0
  %3355 = vmatprep.subr.mxu0 0.0
  %3356 = vmatpush1.msra.mxu0 0.0
  %3357 = vmatprep.subr.mxu0 0.0
  %3358 = vmatpush1.msra.mxu0 0.0
  %3359 = vmatprep.subr.mxu0 0.0
  %3360 = vmatpush1.msra.mxu0 0.0
  %3361 = vmatprep.subr.mxu0 0.0
  %3362 = vmatpush1.msra.mxu0 0.0
  %3363 = vmatprep.subr.mxu0 0.0
  %3364 = vmatpush1.msra.mxu0 0.0
  %3365 = vmatprep.subr.mxu0 0.0
  %3366 = vmatpush1.msra.mxu0 0.0
  %3367 = vmatprep.subr.mxu0 0.0
  %3368 = vmatpush1.msra.mxu0 0.0
  %3369 = vmatprep.subr.mxu0 0.0
  %3370 = vmatpush1.msra.mxu0 0.0
  %3371 = vmatprep.subr.mxu0 0.0
  %3372 = vmatpush1.msra.mxu0 0.0
  %3373 = vmatprep.subr.mxu0 0.0
  %3374 = vmatpush1.msra.mxu0 0.0
  %3375 = vmatprep.subr.mxu0 0.0
  %3376 = vmatpush1.msra.mxu0 0.0
  %3377 = vmatprep.subr.mxu0 0.0
  %3378 = vmatpush1.msra.mxu0 0.0
  %3379 = vmatprep.subr.mxu0 0.0
  %3380 = vmatpush1.msra.mxu0 0.0
  %3381 = vmatprep.subr.mxu0 0.0
  %3382 = vmatpush1.msra.mxu0 0.0
  %3383 = vmatprep.mubr.f32.mxu0 0.0
  %3384 = vmatmul.mubr.f32.gmra.mrb[0].mxu0 %v3234
  %v3385 = vpop.f32.mrb[0].mxu0
  %v3386 = vadd.f32 0.0, %v3385
  %v3387 = vpop.f32.mrb[0].mxu0
  %v3388 = vadd.f32 0.0, %v3387
  %3389 = vdwg.mxu0
  %v3390 = vadd.f32 %v3197, %v3315
  %v3391 = vadd.f32 %v3198, %v3317
  %v3392 = vadd.f32 %v3199, %v3386
  %v3393 = vadd.f32 %v3200, %v3388
  %3394 = vrot.lane.b32.xlu0 %v1866, 111
  %v3395 = vpop.permute.xlu0 %3394
  %3396 = vrot.lane.b32.xlu0 %v1867, 111
  %v3397 = vpop.permute.xlu0 %3396
  %3398 = vrot.lane.b32.xlu0 %v1868, 111
  %v3399 = vpop.permute.xlu0 %3398
  %3400 = vrot.lane.b32.xlu0 %v1869, 111
  %v3401 = vpop.permute.xlu0 %3400
  %v3402 = vsel %vm1618, %v3399, %v3401
  %v3403 = vsel %vm1618, %v3397, %v3399
  %v3404 = vsel %vm1618, %v3395, %v3397
  %v3405 = vsel %vm1618, %v3401, %v3395
  %v3406 = vlaneseq
  %v3407 = vshrl.u32 %v3406, 7
  %v3408 = vsub.s32 0, %v3407
  %v3409 = vrot.slane %v58, %v3408
  %v3410 = vlaneseq
  %v3411 = vshrl.u32 %v3410, 7
  %v3412 = vsub.s32 0, %v3411
  %v3413 = vrot.slane %v59, %v3412
  %v3414 = vlaneseq
  %v3415 = vshrl.u32 %v3414, 7
  %v3416 = vsub.s32 0, %v3415
  %v3417 = vrot.slane %v60, %v3416
  %v3418 = vlaneseq
  %v3419 = vshrl.u32 %v3418, 7
  %v3420 = vsub.s32 0, %v3419
  %v3421 = vrot.slane %v61, %v3420
  %v3422 = vmul.f32 %v3404, %v3409
  %v3423 = vmul.f32 %v3403, %v3413
  %v3424 = vmul.f32 %v3402, %v3417
  %v3425 = vmul.f32 %v3405, %v3421
  %v3427 = vsel %vm137, %v45, 0
  %v3430 = vsel %vm141, %v3422, 0
  %v3433 = vsel %vm141, %v3423, 0
  %v3436 = vsel %vm141, %v3424, 0
  %v3439 = vsel %vm141, %v3425, 0
  %3441 = vmatprep.subr.mxu0 %v3433
  %3442 = vmatpush1.msra.mxu0 %v3430
  %3443 = vmatprep.subr.mxu0 0.0
  %3444 = vmatpush1.msra.mxu0 0.0
  %3445 = vmatprep.subr.mxu0 0.0
  %3446 = vmatpush1.msra.mxu0 0.0
  %3447 = vmatprep.subr.mxu0 0.0
  %3448 = vmatpush1.msra.mxu0 0.0
  %3449 = vmatprep.subr.mxu0 0.0
  %3450 = vmatpush1.msra.mxu0 0.0
  %3451 = vmatprep.subr.mxu0 0.0
  %3452 = vmatpush1.msra.mxu0 0.0
  %3453 = vmatprep.subr.mxu0 0.0
  %3454 = vmatpush1.msra.mxu0 0.0
  %3455 = vmatprep.subr.mxu0 0.0
  %3456 = vmatpush1.msra.mxu0 0.0
  %3457 = vmatprep.subr.mxu0 0.0
  %3458 = vmatpush1.msra.mxu0 0.0
  %3459 = vmatprep.subr.mxu0 0.0
  %3460 = vmatpush1.msra.mxu0 0.0
  %3461 = vmatprep.subr.mxu0 0.0
  %3462 = vmatpush1.msra.mxu0 0.0
  %3463 = vmatprep.subr.mxu0 0.0
  %3464 = vmatpush1.msra.mxu0 0.0
  %3465 = vmatprep.subr.mxu0 0.0
  %3466 = vmatpush1.msra.mxu0 0.0
  %3467 = vmatprep.subr.mxu0 0.0
  %3468 = vmatpush1.msra.mxu0 0.0
  %3469 = vmatprep.subr.mxu0 0.0
  %3470 = vmatpush1.msra.mxu0 0.0
  %3471 = vmatprep.subr.mxu0 0.0
  %3472 = vmatpush1.msra.mxu0 0.0
  %3473 = vmatprep.subr.mxu0 0.0
  %3474 = vmatpush1.msra.mxu0 0.0
  %3475 = vmatprep.subr.mxu0 0.0
  %3476 = vmatpush1.msra.mxu0 0.0
  %3477 = vmatprep.subr.mxu0 0.0
  %3478 = vmatpush1.msra.mxu0 0.0
  %3479 = vmatprep.subr.mxu0 0.0
  %3480 = vmatpush1.msra.mxu0 0.0
  %3481 = vmatprep.subr.mxu0 0.0
  %3482 = vmatpush1.msra.mxu0 0.0
  %3483 = vmatprep.subr.mxu0 0.0
  %3484 = vmatpush1.msra.mxu0 0.0
  %3485 = vmatprep.subr.mxu0 0.0
  %3486 = vmatpush1.msra.mxu0 0.0
  %3487 = vmatprep.subr.mxu0 0.0
  %3488 = vmatpush1.msra.mxu0 0.0
  %3489 = vmatprep.subr.mxu0 0.0
  %3490 = vmatpush1.msra.mxu0 0.0
  %3491 = vmatprep.subr.mxu0 0.0
  %3492 = vmatpush1.msra.mxu0 0.0
  %3493 = vmatprep.subr.mxu0 0.0
  %3494 = vmatpush1.msra.mxu0 0.0
  %3495 = vmatprep.subr.mxu0 0.0
  %3496 = vmatpush1.msra.mxu0 0.0
  %3497 = vmatprep.subr.mxu0 0.0
  %3498 = vmatpush1.msra.mxu0 0.0
  %3499 = vmatprep.subr.mxu0 0.0
  %3500 = vmatpush1.msra.mxu0 0.0
  %3501 = vmatprep.subr.mxu0 0.0
  %3502 = vmatpush1.msra.mxu0 0.0
  %3503 = vmatprep.subr.mxu0 0.0
  %3504 = vmatpush1.msra.mxu0 0.0
  %3505 = vmatprep.mubr.f32.mxu0 0.0
  %3506 = vmatmul.mubr.f32.gmra.mrb[0].mxu0 %v3427
  %v3507 = vpop.f32.mrb[0].mxu0
  %v3508 = vadd.f32 0.0, %v3507
  %v3509 = vpop.f32.mrb[0].mxu0
  %v3510 = vadd.f32 0.0, %v3509
  %3511 = vdwg.mxu0
  %3512 = vmatprep.subr.mxu0 %v3439
  %3513 = vmatpush1.msra.mxu0 %v3436
  %3514 = vmatprep.subr.mxu0 0.0
  %3515 = vmatpush1.msra.mxu0 0.0
  %3516 = vmatprep.subr.mxu0 0.0
  %3517 = vmatpush1.msra.mxu0 0.0
  %3518 = vmatprep.subr.mxu0 0.0
  %3519 = vmatpush1.msra.mxu0 0.0
  %3520 = vmatprep.subr.mxu0 0.0
  %3521 = vmatpush1.msra.mxu0 0.0
  %3522 = vmatprep.subr.mxu0 0.0
  %3523 = vmatpush1.msra.mxu0 0.0
  %3524 = vmatprep.subr.mxu0 0.0
  %3525 = vmatpush1.msra.mxu0 0.0
  %3526 = vmatprep.subr.mxu0 0.0
  %3527 = vmatpush1.msra.mxu0 0.0
  %3528 = vmatprep.subr.mxu0 0.0
  %3529 = vmatpush1.msra.mxu0 0.0
  %3530 = vmatprep.subr.mxu0 0.0
  %3531 = vmatpush1.msra.mxu0 0.0
  %3532 = vmatprep.subr.mxu0 0.0
  %3533 = vmatpush1.msra.mxu0 0.0
  %3534 = vmatprep.subr.mxu0 0.0
  %3535 = vmatpush1.msra.mxu0 0.0
  %3536 = vmatprep.subr.mxu0 0.0
  %3537 = vmatpush1.msra.mxu0 0.0
  %3538 = vmatprep.subr.mxu0 0.0
  %3539 = vmatpush1.msra.mxu0 0.0
  %3540 = vmatprep.subr.mxu0 0.0
  %3541 = vmatpush1.msra.mxu0 0.0
  %3542 = vmatprep.subr.mxu0 0.0
  %3543 = vmatpush1.msra.mxu0 0.0
  %3544 = vmatprep.subr.mxu0 0.0
  %3545 = vmatpush1.msra.mxu0 0.0
  %3546 = vmatprep.subr.mxu0 0.0
  %3547 = vmatpush1.msra.mxu0 0.0
  %3548 = vmatprep.subr.mxu0 0.0
  %3549 = vmatpush1.msra.mxu0 0.0
  %3550 = vmatprep.subr.mxu0 0.0
  %3551 = vmatpush1.msra.mxu0 0.0
  %3552 = vmatprep.subr.mxu0 0.0
  %3553 = vmatpush1.msra.mxu0 0.0
  %3554 = vmatprep.subr.mxu0 0.0
  %3555 = vmatpush1.msra.mxu0 0.0
  %3556 = vmatprep.subr.mxu0 0.0
  %3557 = vmatpush1.msra.mxu0 0.0
  %3558 = vmatprep.subr.mxu0 0.0
  %3559 = vmatpush1.msra.mxu0 0.0
  %3560 = vmatprep.subr.mxu0 0.0
  %3561 = vmatpush1.msra.mxu0 0.0
  %3562 = vmatprep.subr.mxu0 0.0
  %3563 = vmatpush1.msra.mxu0 0.0
  %3564 = vmatprep.subr.mxu0 0.0
  %3565 = vmatpush1.msra.mxu0 0.0
  %3566 = vmatprep.subr.mxu0 0.0
  %3567 = vmatpush1.msra.mxu0 0.0
  %3568 = vmatprep.subr.mxu0 0.0
  %3569 = vmatpush1.msra.mxu0 0.0
  %3570 = vmatprep.subr.mxu0 0.0
  %3571 = vmatpush1.msra.mxu0 0.0
  %3572 = vmatprep.subr.mxu0 0.0
  %3573 = vmatpush1.msra.mxu0 0.0
  %3574 = vmatprep.subr.mxu0 0.0
  %3575 = vmatpush1.msra.mxu0 0.0
  %3576 = vmatprep.mubr.f32.mxu0 0.0
  %3577 = vmatmul.mubr.f32.gmra.mrb[0].mxu0 %v3427
  %v3578 = vpop.f32.mrb[0].mxu0
  %v3579 = vadd.f32 0.0, %v3578
  %v3580 = vpop.f32.mrb[0].mxu0
  %v3581 = vadd.f32 0.0, %v3580
  %3582 = vdwg.mxu0
  %v3583 = vadd.f32 %v3390, %v3508
  %v3584 = vadd.f32 %v3391, %v3510
  %v3585 = vadd.f32 %v3392, %v3579
  %v3586 = vadd.f32 %v3393, %v3581
  %v3587 = vld [vmem:[%s6] sm:$0xff]
  %v3588 = vld [vmem:[%s6 + $0x8] sm:$0xff]
  %v3589 = vld [vmem:[%s6 + $0x10] sm:$0xff]
  %v3590 = vld [vmem:[%s6 + $0x18] sm:$0xff]
  %v3591 = vld [vmem:[%s6 + $0x20] sm:$0xff]
  %v3592 = vld [vmem:[%s6 + $0x28] sm:$0xff]
  %v3593 = vld [vmem:[%s6 + $0x30] sm:$0xff]
  %v3594 = vld [vmem:[%s6 + $0x38] sm:$0xff]
  %v3595 = vld [vmem:[%s6 + $0x40] sm:$0xff]
  %v3596 = vld [vmem:[%s6 + $0x48] sm:$0xff]
  %v3597 = vld [vmem:[%s6 + $0x50] sm:$0xff]
  %v3598 = vld [vmem:[%s6 + $0x58] sm:$0xff]
  %v3599 = vld [vmem:[%s6 + $0x60] sm:$0xff]
  %v3600 = vld [vmem:[%s6 + $0x68] sm:$0xff]
  %v3601 = vld [vmem:[%s6 + $0x70] sm:$0xff]
  %v3602 = vld [vmem:[%s6 + $0x78] sm:$0xff]
  %v3603 = vld [vmem:[%s6 + $0x80] sm:$0xff]
  %v3604 = vld [vmem:[%s6 + $0x88] sm:$0xff]
  %v3605 = vld [vmem:[%s6 + $0x90] sm:$0xff]
  %v3606 = vld [vmem:[%s6 + $0x98] sm:$0xff]
  %v3607 = vld [vmem:[%s6 + $0xa0] sm:$0xff]
  %v3608 = vld [vmem:[%s6 + $0xa8] sm:$0xff]
  %v3609 = vld [vmem:[%s6 + $0xb0] sm:$0xff]
  %v3610 = vld [vmem:[%s6 + $0xb8] sm:$0xff]
  %v3611 = vld [vmem:[%s6 + $0xc0] sm:$0xff]
  %v3612 = vld [vmem:[%s6 + $0xc8] sm:$0xff]
  %v3613 = vld [vmem:[%s6 + $0xd0] sm:$0xff]
  %v3614 = vld [vmem:[%s6 + $0xd8] sm:$0xff]
  %v3615 = vld [vmem:[%s6 + $0xe0] sm:$0xff]
  %v3616 = vld [vmem:[%s6 + $0xe8] sm:$0xff]
  %v3617 = vld [vmem:[%s6 + $0xf0] sm:$0xff]
  %v3618 = vld [vmem:[%s6 + $0xf8] sm:$0xff]
  %v3619 = vld [vmem:[%s6 + $0x100] sm:$0xff]
  %v3620 = vld [vmem:[%s6 + $0x108] sm:$0xff]
  %v3621 = vld [vmem:[%s6 + $0x110] sm:$0xff]
  %v3622 = vld [vmem:[%s6 + $0x118] sm:$0xff]
  %v3623 = vld [vmem:[%s6 + $0x120] sm:$0xff]
  %v3624 = vld [vmem:[%s6 + $0x128] sm:$0xff]
  %v3625 = vld [vmem:[%s6 + $0x130] sm:$0xff]
  %v3626 = vld [vmem:[%s6 + $0x138] sm:$0xff]
  %v3627 = vld [vmem:[%s6 + $0x140] sm:$0xff]
  %v3628 = vld [vmem:[%s6 + $0x148] sm:$0xff]
  %v3629 = vld [vmem:[%s6 + $0x150] sm:$0xff]
  %v3630 = vld [vmem:[%s6 + $0x158] sm:$0xff]
  %v3631 = vld [vmem:[%s6 + $0x160] sm:$0xff]
  %v3632 = vld [vmem:[%s6 + $0x168] sm:$0xff]
  %v3633 = vld [vmem:[%s6 + $0x170] sm:$0xff]
  %v3634 = vld [vmem:[%s6 + $0x178] sm:$0xff]
  %v3635 = vld [vmem:[%s6 + $0x180] sm:$0xff]
  %v3636 = vld [vmem:[%s6 + $0x188] sm:$0xff]
  %v3637 = vld [vmem:[%s6 + $0x190] sm:$0xff]
  %v3638 = vld [vmem:[%s6 + $0x198] sm:$0xff]
  %v3639 = vld [vmem:[%s6 + $0x1a0] sm:$0xff]
  %v3640 = vld [vmem:[%s6 + $0x1a8] sm:$0xff]
  %v3641 = vld [vmem:[%s6 + $0x1b0] sm:$0xff]
  %v3642 = vld [vmem:[%s6 + $0x1b8] sm:$0xff]
  %v3643 = vld [vmem:[%s6 + $0x1c0] sm:$0xff]
  %v3644 = vld [vmem:[%s6 + $0x1c8] sm:$0xff]
  %v3645 = vld [vmem:[%s6 + $0x1d0] sm:$0xff]
  %v3646 = vld [vmem:[%s6 + $0x1d8] sm:$0xff]
  %v3647 = vld [vmem:[%s6 + $0x1e0] sm:$0xff]
  %v3648 = vld [vmem:[%s6 + $0x1e8] sm:$0xff]
  %v3649 = vld [vmem:[%s6 + $0x1f0] sm:$0xff]
  %v3650 = vld [vmem:[%s6 + $0x1f8] sm:$0xff]
  %3651 = vset.pattern.permute.xlu0 3
  %3652 = vperm.xlu0 %3651, %v62
  %v3653 = vpop.permute.xlu0 %3652
  %3655 = vmatprep.subr.mxu0 0.0
  %3656 = vmatpush1.msra.mxu0 %v3587
  %3657 = vmatprep.subr.mxu0 0.0
  %3658 = vmatpush1.msra.mxu0 %v3588
  %3659 = vmatprep.subr.mxu0 0.0
  %3660 = vmatpush1.msra.mxu0 %v3589
  %3661 = vmatprep.subr.mxu0 0.0
  %3662 = vmatpush1.msra.mxu0 %v3590
  %3663 = vmatprep.subr.mxu0 0.0
  %3664 = vmatpush1.msra.mxu0 %v3591
  %3665 = vmatprep.subr.mxu0 0.0
  %3666 = vmatpush1.msra.mxu0 %v3592
  %3667 = vmatprep.subr.mxu0 0.0
  %3668 = vmatpush1.msra.mxu0 %v3593
  %3669 = vmatprep.subr.mxu0 0.0
  %3670 = vmatpush1.msra.mxu0 %v3594
  %3671 = vmatprep.subr.mxu0 0.0
  %3672 = vmatpush1.msra.mxu0 %v3595
  %3673 = vmatprep.subr.mxu0 0.0
  %3674 = vmatpush1.msra.mxu0 %v3596
  %3675 = vmatprep.subr.mxu0 0.0
  %3676 = vmatpush1.msra.mxu0 %v3597
  %3677 = vmatprep.subr.mxu0 0.0
  %3678 = vmatpush1.msra.mxu0 %v3598
  %3679 = vmatprep.subr.mxu0 0.0
  %3680 = vmatpush1.msra.mxu0 %v3599
  %3681 = vmatprep.subr.mxu0 0.0
  %3682 = vmatpush1.msra.mxu0 %v3600
  %3683 = vmatprep.subr.mxu0 0.0
  %3684 = vmatpush1.msra.mxu0 %v3601
  %3685 = vmatprep.subr.mxu0 0.0
  %3686 = vmatpush1.msra.mxu0 %v3602
  %3687 = vmatprep.subr.mxu0 0.0
  %3688 = vmatpush1.msra.mxu0 %v3603
  %3689 = vmatprep.subr.mxu0 0.0
  %3690 = vmatpush1.msra.mxu0 %v3604
  %3691 = vmatprep.subr.mxu0 0.0
  %3692 = vmatpush1.msra.mxu0 %v3605
  %3693 = vmatprep.subr.mxu0 0.0
  %3694 = vmatpush1.msra.mxu0 %v3606
  %3695 = vmatprep.subr.mxu0 0.0
  %3696 = vmatpush1.msra.mxu0 %v3607
  %3697 = vmatprep.subr.mxu0 0.0
  %3698 = vmatpush1.msra.mxu0 %v3608
  %3699 = vmatprep.subr.mxu0 0.0
  %3700 = vmatpush1.msra.mxu0 %v3609
  %3701 = vmatprep.subr.mxu0 0.0
  %3702 = vmatpush1.msra.mxu0 %v3610
  %3703 = vmatprep.subr.mxu0 0.0
  %3704 = vmatpush1.msra.mxu0 %v3611
  %3705 = vmatprep.subr.mxu0 0.0
  %3706 = vmatpush1.msra.mxu0 %v3612
  %3707 = vmatprep.subr.mxu0 0.0
  %3708 = vmatpush1.msra.mxu0 %v3613
  %3709 = vmatprep.subr.mxu0 0.0
  %3710 = vmatpush1.msra.mxu0 %v3614
  %3711 = vmatprep.subr.mxu0 0.0
  %3712 = vmatpush1.msra.mxu0 %v3615
  %3713 = vmatprep.subr.mxu0 0.0
  %3714 = vmatpush1.msra.mxu0 %v3616
  %3715 = vmatprep.subr.mxu0 0.0
  %3716 = vmatpush1.msra.mxu0 %v3617
  %3717 = vmatprep.subr.mxu0 0.0
  %3718 = vmatpush1.msra.mxu0 %v3618
  %3719 = vmatprep.mubr.f32.mxu0 %v3584
  %3720 = vmatmul.mubr.f32.gmra.mrb[0].mxu0 %v3583
  %v3721 = vpop.f32.mrb[0].mxu0
  %v3722 = vadd.f32 %v3653, %v3721
  %v3723 = vpop.f32.mrb[0].mxu0
  %3724 = vdwg.mxu0
  %3725 = vmatprep.subr.mxu0 0.0
  %3726 = vmatpush1.msra.mxu0 %v3619
  %3727 = vmatprep.subr.mxu0 0.0
  %3728 = vmatpush1.msra.mxu0 %v3620
  %3729 = vmatprep.subr.mxu0 0.0
  %3730 = vmatpush1.msra.mxu0 %v3621
  %3731 = vmatprep.subr.mxu0 0.0
  %3732 = vmatpush1.msra.mxu0 %v3622
  %3733 = vmatprep.subr.mxu0 0.0
  %3734 = vmatpush1.msra.mxu0 %v3623
  %3735 = vmatprep.subr.mxu0 0.0
  %3736 = vmatpush1.msra.mxu0 %v3624
  %3737 = vmatprep.subr.mxu0 0.0
  %3738 = vmatpush1.msra.mxu0 %v3625
  %3739 = vmatprep.subr.mxu0 0.0
  %3740 = vmatpush1.msra.mxu0 %v3626
  %3741 = vmatprep.subr.mxu0 0.0
  %3742 = vmatpush1.msra.mxu0 %v3627
  %3743 = vmatprep.subr.mxu0 0.0
  %3744 = vmatpush1.msra.mxu0 %v3628
  %3745 = vmatprep.subr.mxu0 0.0
  %3746 = vmatpush1.msra.mxu0 %v3629
  %3747 = vmatprep.subr.mxu0 0.0
  %3748 = vmatpush1.msra.mxu0 %v3630
  %3749 = vmatprep.subr.mxu0 0.0
  %3750 = vmatpush1.msra.mxu0 %v3631
  %3751 = vmatprep.subr.mxu0 0.0
  %3752 = vmatpush1.msra.mxu0 %v3632
  %3753 = vmatprep.subr.mxu0 0.0
  %3754 = vmatpush1.msra.mxu0 %v3633
  %3755 = vmatprep.subr.mxu0 0.0
  %3756 = vmatpush1.msra.mxu0 %v3634
  %3757 = vmatprep.subr.mxu0 0.0
  %3758 = vmatpush1.msra.mxu0 %v3635
  %3759 = vmatprep.subr.mxu0 0.0
  %3760 = vmatpush1.msra.mxu0 %v3636
  %3761 = vmatprep.subr.mxu0 0.0
  %3762 = vmatpush1.msra.mxu0 %v3637
  %3763 = vmatprep.subr.mxu0 0.0
  %3764 = vmatpush1.msra.mxu0 %v3638
  %3765 = vmatprep.subr.mxu0 0.0
  %3766 = vmatpush1.msra.mxu0 %v3639
  %3767 = vmatprep.subr.mxu0 0.0
  %3768 = vmatpush1.msra.mxu0 %v3640
  %3769 = vmatprep.subr.mxu0 0.0
  %3770 = vmatpush1.msra.mxu0 %v3641
  %3771 = vmatprep.subr.mxu0 0.0
  %3772 = vmatpush1.msra.mxu0 %v3642
  %3773 = vmatprep.subr.mxu0 0.0
  %3774 = vmatpush1.msra.mxu0 %v3643
  %3775 = vmatprep.subr.mxu0 0.0
  %3776 = vmatpush1.msra.mxu0 %v3644
  %3777 = vmatprep.subr.mxu0 0.0
  %3778 = vmatpush1.msra.mxu0 %v3645
  %3779 = vmatprep.subr.mxu0 0.0
  %3780 = vmatpush1.msra.mxu0 %v3646
  %3781 = vmatprep.subr.mxu0 0.0
  %3782 = vmatpush1.msra.mxu0 %v3647
  %3783 = vmatprep.subr.mxu0 0.0
  %3784 = vmatpush1.msra.mxu0 %v3648
  %3785 = vmatprep.subr.mxu0 0.0
  %3786 = vmatpush1.msra.mxu0 %v3649
  %3787 = vmatprep.subr.mxu0 0.0
  %3788 = vmatpush1.msra.mxu0 %v3650
  %3789 = vmatprep.mubr.f32.mxu0 %v3586
  %3790 = vmatmul.mubr.f32.gmra.mrb[0].mxu0 %v3585
  %v3791 = vpop.f32.mrb[0].mxu0
  %v3792 = vadd.f32 %v3722, %v3791
  %v3793 = vpop.f32.mrb[0].mxu0
  %3794 = vdwg.mxu0
  %v3795 = vmax.f32 %v3792, 0.0
  %v3796 = vsel %vm141, %v3795, 0.0
  %3797 = vadd.xlane.f32.xlu0 %v3796
  %v3798 = vpop.xlane.xlu0 %3797
  %v3799 = vmul.f32 %v3795, %v3795
  %v3800 = vsel %vm141, %v3799, 0.0
  %3801 = vadd.xlane.f32.xlu0 %v3800
  %v3802 = vpop.xlane.xlu0 %3801
  %v3803 = vmul.f32 %v3798, 0.0078125
  %v3804 = vmul.f32 %v3802, 0.0078125
  %v3805 = vmul.f32 %v3803, %v3803
  %v3806 = vsub.f32 %v3804, %v3805
  %v3807 = vadd.f32 %v3806, 1e-05
  %v3808 = vrsqrt.pop %v3807
  %v3809 = vmul.f32 %v62, %v3808
  %v3810 = vmul.f32 %v3803, %v3809
  %3812 = vrot.lane.b32.xlu0 %v3810, 1
  %v3813 = vpop.permute.xlu0 %3812
  %v3815 = vsub.f32 %v62, %v3813
  %3817 = vset.pattern.permute.xlu0 4
  %3818 = vperm.xlu0 %3817, %v3809
  %v3819 = vpop.permute.xlu0 %3818
  %v3821 = vmul.f32 %v3795, %v3819
  %3823 = vset.pattern.permute.xlu0 5
  %3824 = vperm.xlu0 %3823, %v3815
  %v3825 = vpop.permute.xlu0 %3824
  %v3827 = vadd.f32 %v3821, %v3825
  %3828 = vst [vmem:[%s7] sm:$0xf] %v3827
  // Predicated region
  $region30: #{convolution_block.1} parent=0 // pred_check
    _
  $region31: #{convolution_block.1} parent=0 // pred_check_branch
    %3830 = sbr.rel (0) target = $region33
  $region32: #{convolution_block.1} parent=0 // pred_region
    _
  $region33: #{convolution_block.1} parent=0 // pred_fallthru
    _
  // Predicated region
  $region34: #{convolution_block.1} parent=0 // pred_check
    _
  $region35: #{convolution_block.1} parent=0 // pred_check_branch
    %3832 = sbr.rel (0) target = $region37
  $region36: #{convolution_block.1} parent=0 // pred_region
    _
  $region37: #{convolution_block.1} parent=0 // pred_fallthru
    _

</llo_original>
